<compile_context>
chip_gen: v7x
topology: tpu7x:2x2x1
jax: 0.10.0
libtpu: 0.0.40
codegen_flags: <defaults>
</compile_context>

<pallas_src>
import functools

import jax
import jax.numpy as jnp
from jax.experimental import pallas as pl
from jax.experimental.pallas import tpu as pltpu


_BN_EPS = 1e-5

_VMEM = pl.BlockSpec(memory_space=pltpu.MemorySpace.VMEM)

# Fixed parameter ordering for the encoder (used by both fused kernels and
# the in-kernel EMA update).
PARAM_NAMES = ("conv_w", "conv_b", "fc1_w", "fc1_b", "bn1_g", "bn1_b",
               "fc2_w", "bn2_g", "bn2_b", "fc3_w", "fc3_b")
PRED_NAMES = ("pw1", "pbn_g", "pbn_b", "pw2", "pb2")
_NP = len(PARAM_NAMES)
_NPRED = len(PRED_NAMES)


# --------------------------------------------------------------------------
# In-kernel helpers (operate on values, not refs)
# --------------------------------------------------------------------------

def _bf16(x):
    return x.astype(jnp.bfloat16)


def _bn_relu(y, gamma, beta, eps):
    """Training-mode BatchNorm1d (batch stats, biased variance) + ReLU."""
    mean = jnp.mean(y, axis=0, keepdims=True)
    var = jnp.mean((y - mean) ** 2, axis=0, keepdims=True)
    y = (y - mean) * jax.lax.rsqrt(var + eps)
    return jnp.maximum(y * gamma + beta, 0.0)


def _proj_head(feat, p, eps):
    """fc1(+b) -> BN -> ReLU -> fc2 -> BN -> ReLU -> fc3(+b), for one view."""
    h = jnp.dot(_bf16(feat), _bf16(p["fc1_w"]),
                preferred_element_type=jnp.float32) + p["fc1_b"]
    h = _bn_relu(h, p["bn1_g"], p["bn1_b"], eps)
    h = jnp.dot(_bf16(h), _bf16(p["fc2_w"]),
                preferred_element_type=jnp.float32)
    h = _bn_relu(h, p["bn2_g"], p["bn2_b"], eps)
    z = jnp.dot(_bf16(h), _bf16(p["fc3_w"]),
                preferred_element_type=jnp.float32) + p["fc3_b"]
    return z


def _encoder_forward(patches_bf16, p, B, HW, eps):
    """Backbone + projection head for both views.

    patches_bf16: (2*B*H*W, Cin*9) bf16 (view1 rows then view2 rows).
    Returns (z1, z2), each (B, dim) float32.  Per-view BN stats (matches the
    PyTorch module which calls the encoder separately on x1 and x2).
    """
    # conv as matmul: bf16 operands, f32 accumulation on the MXU.
    y = jnp.dot(patches_bf16, _bf16(p["conv_w"]),
                preferred_element_type=jnp.float32)
    y = jnp.maximum(y + p["conv_b"], 0.0)                     # (2BHW, Cconv)

    # Global average pool: per-sample sublane-axis mean (XLU), no pool matrix
    # and no HBM round trip of the (2BHW, Cconv) activation.
    def pool(view):                                           # view in {0, 1}
        rows = [jnp.mean(y[(view * B + b) * HW:(view * B + b + 1) * HW],
                         axis=0, keepdims=True)
                for b in range(B)]
        return jnp.concatenate(rows, axis=0)                  # (B, Cconv)

    z1 = _proj_head(pool(0), p, eps)
    z2 = _proj_head(pool(1), p, eps)
    return z1, z2


def _predictor(z, pp, eps):
    """Linear(no bias) -> BN -> ReLU -> Linear(+bias) for one view."""
    h = jnp.dot(_bf16(z), _bf16(pp["pw1"]),
                preferred_element_type=jnp.float32)
    h = _bn_relu(h, pp["pbn_g"], pp["pbn_b"], eps)
    return jnp.dot(_bf16(h), _bf16(pp["pw2"]),
                   preferred_element_type=jnp.float32) + pp["pb2"]


# --------------------------------------------------------------------------
# Pallas kernels
# --------------------------------------------------------------------------

def _student_kernel(patches_ref, *refs, B, HW, eps):
    """Query encoder + predictor for BOTH views, entirely in VMEM.

    Output: one lane-dense slab (2B, 2*dim): columns [:dim] = z, [dim:] = p;
    rows [0:B] = view1, rows [B:2B] = view2.
    """
    enc_refs = refs[:_NP]
    pred_refs = refs[_NP:_NP + _NPRED]
    zp_ref = refs[_NP + _NPRED]

    p = {n: r[...] for n, r in zip(PARAM_NAMES, enc_refs)}
    pp = {n: r[...] for n, r in zip(PRED_NAMES, pred_refs)}

    z1, z2 = _encoder_forward(patches_ref[...], p, B, HW, eps)
    p1 = _predictor(z1, pp, eps)
    p2 = _predictor(z2, pp, eps)

    zp_ref[...] = jnp.concatenate(
        [jnp.concatenate([z1, z2], axis=0),
         jnp.concatenate([p1, p2], axis=0)], axis=1)


def _teacher_kernel(patches_ref, *refs, B, HW, eps, m):
    """Momentum EMA of all key-encoder params (in place via aliasing) fused
    with the key-encoder forward for both views."""
    k_refs = refs[:_NP]
    q_refs = refs[_NP:2 * _NP]
    knew_refs = refs[2 * _NP:3 * _NP]
    tz_ref = refs[3 * _NP]

    # EMA update in VMEM; outputs are aliased onto the k inputs.
    for kr, qr, nr in zip(k_refs, q_refs, knew_refs):
        nr[...] = kr[...] * m + qr[...] * (1.0 - m)

    p = {n: r[...] for n, r in zip(PARAM_NAMES, knew_refs)}
    tz1, tz2 = _encoder_forward(patches_ref[...], p, B, HW, eps)
    # lane-dense (B, 2*dim) store: [teacher_z1 | teacher_z2]
    tz_ref[...] = jnp.concatenate([tz1, tz2], axis=1)


# --------------------------------------------------------------------------
# Wrappers
# --------------------------------------------------------------------------

def pallas_student(params_q, params_pred, patches, *, B, HW, dim, eps=_BN_EPS):
    weights = ([params_q[n] for n in PARAM_NAMES]
               + [params_pred[n] for n in PRED_NAMES])
    zp = pl.pallas_call(
        functools.partial(_student_kernel, B=B, HW=HW, eps=eps),
        out_shape=jax.ShapeDtypeStruct((2 * B, 2 * dim), jnp.float32),
        in_specs=[_VMEM] * (1 + len(weights)),
        out_specs=_VMEM,
    )(patches, *weights)
    z1, z2 = zp[:B, :dim], zp[B:, :dim]
    p1, p2 = zp[:B, dim:], zp[B:, dim:]
    return (p1, p2), (z1, z2)


def pallas_teacher_with_ema(params_k, params_q, patches, *, B, HW, dim, m,
                            eps=_BN_EPS):
    k_list = [params_k[n] for n in PARAM_NAMES]
    q_list = [params_q[n] for n in PARAM_NAMES]
    out_shapes = tuple(jax.ShapeDtypeStruct(a.shape, a.dtype) for a in k_list)
    out_shapes = out_shapes + (
        jax.ShapeDtypeStruct((B, 2 * dim), jnp.float32),)
    outs = pl.pallas_call(
        functools.partial(_teacher_kernel, B=B, HW=HW, eps=eps, m=float(m)),
        out_shape=out_shapes,
        in_specs=[_VMEM] * (1 + 2 * _NP),
        out_specs=tuple([_VMEM] * (_NP + 1)),
        # k param i (input index i+1, after patches) -> updated k param i.
        input_output_aliases={i + 1: i for i in range(_NP)},
    )(patches, *k_list, *q_list)
    params_k_new = dict(zip(PARAM_NAMES, outs[:_NP]))
    tz = outs[-1]
    return params_k_new, (tz[:, :dim], tz[:, dim:])


# --------------------------------------------------------------------------
# Glue (layout only) + forward
# --------------------------------------------------------------------------

def im2col_3x3(x_nchw):
    """3x3, stride 1, pad 1 patches -> (B*H*W, Cin*9) in bf16."""
    B, C, H, W = x_nchw.shape
    xp = jnp.pad(x_nchw, ((0, 0), (0, 0), (1, 1), (1, 1)))
    cols = [xp[:, :, di:di + H, dj:dj + W]
            for di in range(3) for dj in range(3)]
    patches = jnp.stack(cols, axis=2)                 # (B, C, 9, H, W)
    patches = patches.transpose(0, 3, 4, 1, 2)        # (B, H, W, C, 9)
    return patches.reshape(B * H * W, C * 9).astype(jnp.bfloat16)


def simsiam_momentum_forward(params_q, params_k, params_pred, params_pred_new,
                             x1, x2, m, momentum_update=True):
    B, _, H, W = x1.shape
    HW = H * W
    dim = params_q["fc3_w"].shape[1]

    # im2col once (bf16), shared by student and teacher passes.
    patches = jnp.concatenate([im2col_3x3(x1), im2col_3x3(x2)],
                              axis=0)                           # (2*BHW, Cin*9)

    pred_params = params_pred if momentum_update else params_pred_new
    (p1, p2), (z1, z2) = pallas_student(params_q, pred_params, patches,
                                        B=B, HW=HW, dim=dim)

    if momentum_update:
        # EMA update + key-encoder forward fused in one launch, matching the
        # PyTorch no_grad block (update runs before the teacher forward).
        params_k, (tz1, tz2) = pallas_teacher_with_ema(
            params_k, params_q, patches, B=B, HW=HW, dim=dim, m=m)
    else:
        tz1, tz2 = z1, z2

    tz1 = jax.lax.stop_gradient(tz1)                            # .detach()
    tz2 = jax.lax.stop_gradient(tz2)
    return ([p1, p2], [tz1, tz2]), params_k


# --------------------------------------------------------------------------
# Deterministic parameter init
# --------------------------------------------------------------------------

def init_encoder_params(key, cin, cconv, feat_dim, hidden_dim, dim):
    ks = jax.random.split(key, 4)
    s = 0.05
    return {
        "conv_w": s * jax.random.normal(ks[0], (cin * 9, cconv), jnp.float32),
        "conv_b": jnp.zeros((1, cconv), jnp.float32),
        "fc1_w": s * jax.random.normal(ks[1], (feat_dim, hidden_dim), jnp.float32),
        "fc1_b": jnp.zeros((1, hidden_dim), jnp.float32),
        "bn1_g": jnp.ones((1, hidden_dim), jnp.float32),
        "bn1_b": jnp.zeros((1, hidden_dim), jnp.float32),
        "fc2_w": s * jax.random.normal(ks[2], (hidden_dim, hidden_dim), jnp.float32),
        "bn2_g": jnp.ones((1, hidden_dim), jnp.float32),
        "bn2_b": jnp.zeros((1, hidden_dim), jnp.float32),
        "fc3_w": s * jax.random.normal(ks[3], (hidden_dim, dim), jnp.float32),
        "fc3_b": jnp.zeros((1, dim), jnp.float32),
    }


def init_predictor_params(key, dim, hidden_dim):
    ks = jax.random.split(key, 2)
    s = 0.05
    return {
        "pw1": s * jax.random.normal(ks[0], (dim, hidden_dim), jnp.float32),
        "pbn_g": jnp.ones((1, hidden_dim), jnp.float32),
        "pbn_b": jnp.zeros((1, hidden_dim), jnp.float32),
        "pw2": s * jax.random.normal(ks[1], (hidden_dim, dim), jnp.float32),
        "pb2": jnp.zeros((1, dim), jnp.float32),
    }


# --------------------------------------------------------------------------
# Main
# --------------------------------------------------------------------------

if __name__ == "__main__":
    # config: DIM=64, HIDDEN_DIM=32, MOMENTUM=0.99, NEW_DISTILL_HEAD=False
    B, CIN, H, W = 2, 3, 16, 16
    CCONV = 8                 # synthetic backbone feature width
    HIDDEN_DIM = 32           # config.SSL.SETTING.HIDDEN_DIM
    DIM = 64                  # config.SSL.SETTING.DIM
    MOMENTUM = 0.99

    key = jax.random.PRNGKey(0)
    kx1, kx2, kenc, kpred = jax.random.split(key, 4)

    x1 = jax.random.normal(kx1, (B, CIN, H, W), jnp.float32)
    x2 = jax.random.normal(kx2, (B, CIN, H, W), jnp.float32)

    params_q = init_encoder_params(kenc, CIN, CCONV, CCONV, HIDDEN_DIM, DIM)
    params_k = {k_: v.copy() for k_, v in params_q.items()}     # deepcopy(encoder_q)
    params_pred = init_predictor_params(kpred, DIM, HIDDEN_DIM)
    params_pred_new = params_pred                               # NEW_DISTILL_HEAD=False

    # donate params_k so the in-kernel EMA aliasing is a true in-place update.
    fwd = jax.jit(functools.partial(simsiam_momentum_forward,
                                    m=MOMENTUM, momentum_update=True),
                  donate_argnums=(1,))
    (ps, zs), params_k = fwd(params_q, params_k, params_pred, params_pred_new,
                             x1, x2)

    for t in ps + zs:
        jax.block_until_ready(t)
    for v in params_k.values():
        jax.block_until_ready(v)

    assert ps[0].shape == (B, DIM) and ps[1].shape == (B, DIM)
    assert zs[0].shape == (B, DIM) and zs[1].shape == (B, DIM)
    assert all(bool(jnp.all(jnp.isfinite(t))) for t in ps + zs)
    assert all(bool(jnp.all(jnp.isfinite(v))) for v in params_k.values())
    print("KERNEL_OK")
</pallas_src>

<mosaic_0001>
module attributes {stable_mosaic.version = 11 : i64} {
  func.func @_teacher_kernel(%arg0: memref<1024x27xbf16, #tpu.memory_space<vmem>>, %arg1: memref<27x8xf32, #tpu.memory_space<vmem>>, %arg2: memref<1x8xf32, #tpu.memory_space<vmem>>, %arg3: memref<8x32xf32, #tpu.memory_space<vmem>>, %arg4: memref<1x32xf32, #tpu.memory_space<vmem>>, %arg5: memref<1x32xf32, #tpu.memory_space<vmem>>, %arg6: memref<1x32xf32, #tpu.memory_space<vmem>>, %arg7: memref<32x32xf32, #tpu.memory_space<vmem>>, %arg8: memref<1x32xf32, #tpu.memory_space<vmem>>, %arg9: memref<1x32xf32, #tpu.memory_space<vmem>>, %arg10: memref<32x64xf32, #tpu.memory_space<vmem>>, %arg11: memref<1x64xf32, #tpu.memory_space<vmem>>, %arg12: memref<27x8xf32, #tpu.memory_space<vmem>>, %arg13: memref<1x8xf32, #tpu.memory_space<vmem>>, %arg14: memref<8x32xf32, #tpu.memory_space<vmem>>, %arg15: memref<1x32xf32, #tpu.memory_space<vmem>>, %arg16: memref<1x32xf32, #tpu.memory_space<vmem>>, %arg17: memref<1x32xf32, #tpu.memory_space<vmem>>, %arg18: memref<32x32xf32, #tpu.memory_space<vmem>>, %arg19: memref<1x32xf32, #tpu.memory_space<vmem>>, %arg20: memref<1x32xf32, #tpu.memory_space<vmem>>, %arg21: memref<32x64xf32, #tpu.memory_space<vmem>>, %arg22: memref<1x64xf32, #tpu.memory_space<vmem>>, %arg23: memref<27x8xf32, #tpu.memory_space<vmem>>, %arg24: memref<1x8xf32, #tpu.memory_space<vmem>>, %arg25: memref<8x32xf32, #tpu.memory_space<vmem>>, %arg26: memref<1x32xf32, #tpu.memory_space<vmem>>, %arg27: memref<1x32xf32, #tpu.memory_space<vmem>>, %arg28: memref<1x32xf32, #tpu.memory_space<vmem>>, %arg29: memref<32x32xf32, #tpu.memory_space<vmem>>, %arg30: memref<1x32xf32, #tpu.memory_space<vmem>>, %arg31: memref<1x32xf32, #tpu.memory_space<vmem>>, %arg32: memref<32x64xf32, #tpu.memory_space<vmem>>, %arg33: memref<1x64xf32, #tpu.memory_space<vmem>>, %arg34: memref<2x128xf32, #tpu.memory_space<vmem>>) attributes {dimension_semantics = [], scalar_prefetch = 0 : i64, scratch_operands = 0 : i64, tpu.core_type = #tpu.core_type<tc>} {
    %c0 = arith.constant 0 : index
    %c0_0 = arith.constant 0 : index
    %0 = vector.load %arg1[%c0, %c0_0] : memref<27x8xf32, #tpu.memory_space<vmem>>, vector<27x8xf32>
    %cst = arith.constant 9.900000e-01 : f32
    %1 = vector.broadcast %cst : f32 to vector<27x8xf32>
    %2 = arith.mulf %0, %1 : vector<27x8xf32>
    %c0_1 = arith.constant 0 : index
    %c0_2 = arith.constant 0 : index
    %3 = vector.load %arg12[%c0_1, %c0_2] : memref<27x8xf32, #tpu.memory_space<vmem>>, vector<27x8xf32>
    %cst_3 = arith.constant 0.00999999977 : f32
    %4 = vector.broadcast %cst_3 : f32 to vector<27x8xf32>
    %5 = arith.mulf %3, %4 : vector<27x8xf32>
    %6 = arith.addf %2, %5 : vector<27x8xf32>
    %c0_4 = arith.constant 0 : index
    %c0_5 = arith.constant 0 : index
    %7 = vector.load %arg23[%c0_4, %c0_5] : memref<27x8xf32, #tpu.memory_space<vmem>>, vector<27x8xf32>
    tpu.vector_store %arg23[%c0_4, %c0_5], %6 {strides = array<i32>} : memref<27x8xf32, #tpu.memory_space<vmem>>, vector<27x8xf32>,
    %c0_6 = arith.constant 0 : index
    %c0_7 = arith.constant 0 : index
    %8 = vector.load %arg2[%c0_6, %c0_7] : memref<1x8xf32, #tpu.memory_space<vmem>>, vector<1x8xf32>
    %cst_8 = arith.constant 9.900000e-01 : f32
    %9 = vector.broadcast %cst_8 : f32 to vector<1x8xf32>
    %10 = arith.mulf %8, %9 : vector<1x8xf32>
    %c0_9 = arith.constant 0 : index
    %c0_10 = arith.constant 0 : index
    %11 = vector.load %arg13[%c0_9, %c0_10] : memref<1x8xf32, #tpu.memory_space<vmem>>, vector<1x8xf32>
    %cst_11 = arith.constant 0.00999999977 : f32
    %12 = vector.broadcast %cst_11 : f32 to vector<1x8xf32>
    %13 = arith.mulf %11, %12 : vector<1x8xf32>
    %14 = arith.addf %10, %13 : vector<1x8xf32>
    %c0_12 = arith.constant 0 : index
    %c0_13 = arith.constant 0 : index
    %15 = vector.load %arg24[%c0_12, %c0_13] : memref<1x8xf32, #tpu.memory_space<vmem>>, vector<1x8xf32>
    tpu.vector_store %arg24[%c0_12, %c0_13], %14 {strides = array<i32>} : memref<1x8xf32, #tpu.memory_space<vmem>>, vector<1x8xf32>,
    %c0_14 = arith.constant 0 : index
    %c0_15 = arith.constant 0 : index
    %16 = vector.load %arg3[%c0_14, %c0_15] : memref<8x32xf32, #tpu.memory_space<vmem>>, vector<8x32xf32>
    %cst_16 = arith.constant 9.900000e-01 : f32
    %17 = vector.broadcast %cst_16 : f32 to vector<8x32xf32>
    %18 = arith.mulf %16, %17 : vector<8x32xf32>
    %c0_17 = arith.constant 0 : index
    %c0_18 = arith.constant 0 : index
    %19 = vector.load %arg14[%c0_17, %c0_18] : memref<8x32xf32, #tpu.memory_space<vmem>>, vector<8x32xf32>
    %cst_19 = arith.constant 0.00999999977 : f32
    %20 = vector.broadcast %cst_19 : f32 to vector<8x32xf32>
    %21 = arith.mulf %19, %20 : vector<8x32xf32>
    %22 = arith.addf %18, %21 : vector<8x32xf32>
    %c0_20 = arith.constant 0 : index
    %c0_21 = arith.constant 0 : index
    %23 = vector.load %arg25[%c0_20, %c0_21] : memref<8x32xf32, #tpu.memory_space<vmem>>, vector<8x32xf32>
    tpu.vector_store %arg25[%c0_20, %c0_21], %22 {strides = array<i32>} : memref<8x32xf32, #tpu.memory_space<vmem>>, vector<8x32xf32>,
    %c0_22 = arith.constant 0 : index
    %c0_23 = arith.constant 0 : index
    %24 = vector.load %arg4[%c0_22, %c0_23] : memref<1x32xf32, #tpu.memory_space<vmem>>, vector<1x32xf32>
    %cst_24 = arith.constant 9.900000e-01 : f32
    %25 = vector.broadcast %cst_24 : f32 to vector<1x32xf32>
    %26 = arith.mulf %24, %25 : vector<1x32xf32>
    %c0_25 = arith.constant 0 : index
    %c0_26 = arith.constant 0 : index
    %27 = vector.load %arg15[%c0_25, %c0_26] : memref<1x32xf32, #tpu.memory_space<vmem>>, vector<1x32xf32>
    %cst_27 = arith.constant 0.00999999977 : f32
    %28 = vector.broadcast %cst_27 : f32 to vector<1x32xf32>
    %29 = arith.mulf %27, %28 : vector<1x32xf32>
    %30 = arith.addf %26, %29 : vector<1x32xf32>
    %c0_28 = arith.constant 0 : index
    %c0_29 = arith.constant 0 : index
    %31 = vector.load %arg26[%c0_28, %c0_29] : memref<1x32xf32, #tpu.memory_space<vmem>>, vector<1x32xf32>
    tpu.vector_store %arg26[%c0_28, %c0_29], %30 {strides = array<i32>} : memref<1x32xf32, #tpu.memory_space<vmem>>, vector<1x32xf32>,
    %c0_30 = arith.constant 0 : index
    %c0_31 = arith.constant 0 : index
    %32 = vector.load %arg5[%c0_30, %c0_31] : memref<1x32xf32, #tpu.memory_space<vmem>>, vector<1x32xf32>
    %cst_32 = arith.constant 9.900000e-01 : f32
    %33 = vector.broadcast %cst_32 : f32 to vector<1x32xf32>
    %34 = arith.mulf %32, %33 : vector<1x32xf32>
    %c0_33 = arith.constant 0 : index
    %c0_34 = arith.constant 0 : index
    %35 = vector.load %arg16[%c0_33, %c0_34] : memref<1x32xf32, #tpu.memory_space<vmem>>, vector<1x32xf32>
    %cst_35 = arith.constant 0.00999999977 : f32
    %36 = vector.broadcast %cst_35 : f32 to vector<1x32xf32>
    %37 = arith.mulf %35, %36 : vector<1x32xf32>
    %38 = arith.addf %34, %37 : vector<1x32xf32>
    %c0_36 = arith.constant 0 : index
    %c0_37 = arith.constant 0 : index
    %39 = vector.load %arg27[%c0_36, %c0_37] : memref<1x32xf32, #tpu.memory_space<vmem>>, vector<1x32xf32>
    tpu.vector_store %arg27[%c0_36, %c0_37], %38 {strides = array<i32>} : memref<1x32xf32, #tpu.memory_space<vmem>>, vector<1x32xf32>,
    %c0_38 = arith.constant 0 : index
    %c0_39 = arith.constant 0 : index
    %40 = vector.load %arg6[%c0_38, %c0_39] : memref<1x32xf32, #tpu.memory_space<vmem>>, vector<1x32xf32>
    %cst_40 = arith.constant 9.900000e-01 : f32
    %41 = vector.broadcast %cst_40 : f32 to vector<1x32xf32>
    %42 = arith.mulf %40, %41 : vector<1x32xf32>
    %c0_41 = arith.constant 0 : index
    %c0_42 = arith.constant 0 : index
    %43 = vector.load %arg17[%c0_41, %c0_42] : memref<1x32xf32, #tpu.memory_space<vmem>>, vector<1x32xf32>
    %cst_43 = arith.constant 0.00999999977 : f32
    %44 = vector.broadcast %cst_43 : f32 to vector<1x32xf32>
    %45 = arith.mulf %43, %44 : vector<1x32xf32>
    %46 = arith.addf %42, %45 : vector<1x32xf32>
    %c0_44 = arith.constant 0 : index
    %c0_45 = arith.constant 0 : index
    %47 = vector.load %arg28[%c0_44, %c0_45] : memref<1x32xf32, #tpu.memory_space<vmem>>, vector<1x32xf32>
    tpu.vector_store %arg28[%c0_44, %c0_45], %46 {strides = array<i32>} : memref<1x32xf32, #tpu.memory_space<vmem>>, vector<1x32xf32>,
    %c0_46 = arith.constant 0 : index
    %c0_47 = arith.constant 0 : index
    %48 = vector.load %arg7[%c0_46, %c0_47] : memref<32x32xf32, #tpu.memory_space<vmem>>, vector<32x32xf32>
    %cst_48 = arith.constant 9.900000e-01 : f32
    %49 = vector.broadcast %cst_48 : f32 to vector<32x32xf32>
    %50 = arith.mulf %48, %49 : vector<32x32xf32>
    %c0_49 = arith.constant 0 : index
    %c0_50 = arith.constant 0 : index
    %51 = vector.load %arg18[%c0_49, %c0_50] : memref<32x32xf32, #tpu.memory_space<vmem>>, vector<32x32xf32>
    %cst_51 = arith.constant 0.00999999977 : f32
    %52 = vector.broadcast %cst_51 : f32 to vector<32x32xf32>
    %53 = arith.mulf %51, %52 : vector<32x32xf32>
    %54 = arith.addf %50, %53 : vector<32x32xf32>
    %c0_52 = arith.constant 0 : index
    %c0_53 = arith.constant 0 : index
    %55 = vector.load %arg29[%c0_52, %c0_53] : memref<32x32xf32, #tpu.memory_space<vmem>>, vector<32x32xf32>
    tpu.vector_store %arg29[%c0_52, %c0_53], %54 {strides = array<i32>} : memref<32x32xf32, #tpu.memory_space<vmem>>, vector<32x32xf32>,
    %c0_54 = arith.constant 0 : index
    %c0_55 = arith.constant 0 : index
    %56 = vector.load %arg8[%c0_54, %c0_55] : memref<1x32xf32, #tpu.memory_space<vmem>>, vector<1x32xf32>
    %cst_56 = arith.constant 9.900000e-01 : f32
    %57 = vector.broadcast %cst_56 : f32 to vector<1x32xf32>
    %58 = arith.mulf %56, %57 : vector<1x32xf32>
    %c0_57 = arith.constant 0 : index
    %c0_58 = arith.constant 0 : index
    %59 = vector.load %arg19[%c0_57, %c0_58] : memref<1x32xf32, #tpu.memory_space<vmem>>, vector<1x32xf32>
    %cst_59 = arith.constant 0.00999999977 : f32
    %60 = vector.broadcast %cst_59 : f32 to vector<1x32xf32>
    %61 = arith.mulf %59, %60 : vector<1x32xf32>
    %62 = arith.addf %58, %61 : vector<1x32xf32>
    %c0_60 = arith.constant 0 : index
    %c0_61 = arith.constant 0 : index
    %63 = vector.load %arg30[%c0_60, %c0_61] : memref<1x32xf32, #tpu.memory_space<vmem>>, vector<1x32xf32>
    tpu.vector_store %arg30[%c0_60, %c0_61], %62 {strides = array<i32>} : memref<1x32xf32, #tpu.memory_space<vmem>>, vector<1x32xf32>,
    %c0_62 = arith.constant 0 : index
    %c0_63 = arith.constant 0 : index
    %64 = vector.load %arg9[%c0_62, %c0_63] : memref<1x32xf32, #tpu.memory_space<vmem>>, vector<1x32xf32>
    %cst_64 = arith.constant 9.900000e-01 : f32
    %65 = vector.broadcast %cst_64 : f32 to vector<1x32xf32>
    %66 = arith.mulf %64, %65 : vector<1x32xf32>
    %c0_65 = arith.constant 0 : index
    %c0_66 = arith.constant 0 : index
    %67 = vector.load %arg20[%c0_65, %c0_66] : memref<1x32xf32, #tpu.memory_space<vmem>>, vector<1x32xf32>
    %cst_67 = arith.constant 0.00999999977 : f32
    %68 = vector.broadcast %cst_67 : f32 to vector<1x32xf32>
    %69 = arith.mulf %67, %68 : vector<1x32xf32>
    %70 = arith.addf %66, %69 : vector<1x32xf32>
    %c0_68 = arith.constant 0 : index
    %c0_69 = arith.constant 0 : index
    %71 = vector.load %arg31[%c0_68, %c0_69] : memref<1x32xf32, #tpu.memory_space<vmem>>, vector<1x32xf32>
    tpu.vector_store %arg31[%c0_68, %c0_69], %70 {strides = array<i32>} : memref<1x32xf32, #tpu.memory_space<vmem>>, vector<1x32xf32>,
    %c0_70 = arith.constant 0 : index
    %c0_71 = arith.constant 0 : index
    %72 = vector.load %arg10[%c0_70, %c0_71] : memref<32x64xf32, #tpu.memory_space<vmem>>, vector<32x64xf32>
    %cst_72 = arith.constant 9.900000e-01 : f32
    %73 = vector.broadcast %cst_72 : f32 to vector<32x64xf32>
    %74 = arith.mulf %72, %73 : vector<32x64xf32>
    %c0_73 = arith.constant 0 : index
    %c0_74 = arith.constant 0 : index
    %75 = vector.load %arg21[%c0_73, %c0_74] : memref<32x64xf32, #tpu.memory_space<vmem>>, vector<32x64xf32>
    %cst_75 = arith.constant 0.00999999977 : f32
    %76 = vector.broadcast %cst_75 : f32 to vector<32x64xf32>
    %77 = arith.mulf %75, %76 : vector<32x64xf32>
    %78 = arith.addf %74, %77 : vector<32x64xf32>
    %c0_76 = arith.constant 0 : index
    %c0_77 = arith.constant 0 : index
    %79 = vector.load %arg32[%c0_76, %c0_77] : memref<32x64xf32, #tpu.memory_space<vmem>>, vector<32x64xf32>
    tpu.vector_store %arg32[%c0_76, %c0_77], %78 {strides = array<i32>} : memref<32x64xf32, #tpu.memory_space<vmem>>, vector<32x64xf32>,
    %c0_78 = arith.constant 0 : index
    %c0_79 = arith.constant 0 : index
    %80 = vector.load %arg11[%c0_78, %c0_79] : memref<1x64xf32, #tpu.memory_space<vmem>>, vector<1x64xf32>
    %cst_80 = arith.constant 9.900000e-01 : f32
    %81 = vector.broadcast %cst_80 : f32 to vector<1x64xf32>
    %82 = arith.mulf %80, %81 : vector<1x64xf32>
    %c0_81 = arith.constant 0 : index
    %c0_82 = arith.constant 0 : index
    %83 = vector.load %arg22[%c0_81, %c0_82] : memref<1x64xf32, #tpu.memory_space<vmem>>, vector<1x64xf32>
    %cst_83 = arith.constant 0.00999999977 : f32
    %84 = vector.broadcast %cst_83 : f32 to vector<1x64xf32>
    %85 = arith.mulf %83, %84 : vector<1x64xf32>
    %86 = arith.addf %82, %85 : vector<1x64xf32>
    %c0_84 = arith.constant 0 : index
    %c0_85 = arith.constant 0 : index
    %87 = vector.load %arg33[%c0_84, %c0_85] : memref<1x64xf32, #tpu.memory_space<vmem>>, vector<1x64xf32>
    tpu.vector_store %arg33[%c0_84, %c0_85], %86 {strides = array<i32>} : memref<1x64xf32, #tpu.memory_space<vmem>>, vector<1x64xf32>,
    %c0_86 = arith.constant 0 : index
    %c0_87 = arith.constant 0 : index
    %88 = vector.load %arg23[%c0_86, %c0_87] : memref<27x8xf32, #tpu.memory_space<vmem>>, vector<27x8xf32>
    %c0_88 = arith.constant 0 : index
    %c0_89 = arith.constant 0 : index
    %89 = vector.load %arg24[%c0_88, %c0_89] : memref<1x8xf32, #tpu.memory_space<vmem>>, vector<1x8xf32>
    %c0_90 = arith.constant 0 : index
    %c0_91 = arith.constant 0 : index
    %90 = vector.load %arg25[%c0_90, %c0_91] : memref<8x32xf32, #tpu.memory_space<vmem>>, vector<8x32xf32>
    %c0_92 = arith.constant 0 : index
    %c0_93 = arith.constant 0 : index
    %91 = vector.load %arg26[%c0_92, %c0_93] : memref<1x32xf32, #tpu.memory_space<vmem>>, vector<1x32xf32>
    %c0_94 = arith.constant 0 : index
    %c0_95 = arith.constant 0 : index
    %92 = vector.load %arg27[%c0_94, %c0_95] : memref<1x32xf32, #tpu.memory_space<vmem>>, vector<1x32xf32>
    %c0_96 = arith.constant 0 : index
    %c0_97 = arith.constant 0 : index
    %93 = vector.load %arg28[%c0_96, %c0_97] : memref<1x32xf32, #tpu.memory_space<vmem>>, vector<1x32xf32>
    %c0_98 = arith.constant 0 : index
    %c0_99 = arith.constant 0 : index
    %94 = vector.load %arg29[%c0_98, %c0_99] : memref<32x32xf32, #tpu.memory_space<vmem>>, vector<32x32xf32>
    %c0_100 = arith.constant 0 : index
    %c0_101 = arith.constant 0 : index
    %95 = vector.load %arg30[%c0_100, %c0_101] : memref<1x32xf32, #tpu.memory_space<vmem>>, vector<1x32xf32>
    %c0_102 = arith.constant 0 : index
    %c0_103 = arith.constant 0 : index
    %96 = vector.load %arg31[%c0_102, %c0_103] : memref<1x32xf32, #tpu.memory_space<vmem>>, vector<1x32xf32>
    %c0_104 = arith.constant 0 : index
    %c0_105 = arith.constant 0 : index
    %97 = vector.load %arg32[%c0_104, %c0_105] : memref<32x64xf32, #tpu.memory_space<vmem>>, vector<32x64xf32>
    %c0_106 = arith.constant 0 : index
    %c0_107 = arith.constant 0 : index
    %98 = vector.load %arg33[%c0_106, %c0_107] : memref<1x64xf32, #tpu.memory_space<vmem>>, vector<1x64xf32>
    %c0_108 = arith.constant 0 : index
    %c0_109 = arith.constant 0 : index
    %99 = vector.load %arg0[%c0_108, %c0_109] : memref<1024x27xbf16, #tpu.memory_space<vmem>>, vector<1024x27xbf16>
    %100 = arith.truncf %88 : vector<27x8xf32> to vector<27x8xbf16>
    %cst_110 = arith.constant dense<0.000000e+00> : vector<1024x8xf32>
    %101 = tpu.matmul %99, %100, %cst_110 {dimension_numbers = #tpu.dot_dimension_numbers<[1], [0], [0], [1], [0, 0, 1, 1], [], []>} : vector<1024x27xbf16>, vector<27x8xbf16>, vector<1024x8xf32> -> vector<1024x8xf32>
    %102 = vector.broadcast %89 : vector<1x8xf32> to vector<1024x8xf32>
    %103 = arith.addf %101, %102 : vector<1024x8xf32>
    %cst_111 = arith.constant 0.000000e+00 : f32
    %104 = vector.broadcast %cst_111 : f32 to vector<1024x8xf32>
    %105 = arith.maximumf %103, %104 : vector<1024x8xf32>
    %106 = vector.extract_strided_slice %105 {offsets = [0, 0], sizes = [256, 8], strides = [1, 1]} : vector<1024x8xf32> to vector<256x8xf32>
    %cst_112 = arith.constant dense<0.000000e+00> : vector<8xf32>
    %107 = vector.multi_reduction <add>, %106, %cst_112 [0] : vector<256x8xf32> to vector<8xf32>
    %108 = vector.shape_cast %107 : vector<8xf32> to vector<1x8xf32>
    %cst_113 = arith.constant 2.560000e+02 : f32
    %109 = vector.broadcast %cst_113 : f32 to vector<1x8xf32>
    %110 = arith.divf %108, %109 : vector<1x8xf32>
    %111 = vector.extract_strided_slice %105 {offsets = [256, 0], sizes = [256, 8], strides = [1, 1]} : vector<1024x8xf32> to vector<256x8xf32>
    %cst_114 = arith.constant dense<0.000000e+00> : vector<8xf32>
    %112 = vector.multi_reduction <add>, %111, %cst_114 [0] : vector<256x8xf32> to vector<8xf32>
    %113 = vector.shape_cast %112 : vector<8xf32> to vector<1x8xf32>
    %cst_115 = arith.constant 2.560000e+02 : f32
    %114 = vector.broadcast %cst_115 : f32 to vector<1x8xf32>
    %115 = arith.divf %113, %114 : vector<1x8xf32>
    %116 = tpu.concatenate %110, %115 in 0 : vector<1x8xf32>, vector<1x8xf32> -> vector<2x8xf32>
    %117 = arith.truncf %116 : vector<2x8xf32> to vector<2x8xbf16>
    %118 = arith.truncf %90 : vector<8x32xf32> to vector<8x32xbf16>
    %cst_116 = arith.constant dense<0.000000e+00> : vector<2x32xf32>
    %119 = tpu.matmul %117, %118, %cst_116 {dimension_numbers = #tpu.dot_dimension_numbers<[1], [0], [0], [1], [0, 0, 1, 1], [], []>} : vector<2x8xbf16>, vector<8x32xbf16>, vector<2x32xf32> -> vector<2x32xf32>
    %120 = vector.broadcast %91 : vector<1x32xf32> to vector<2x32xf32>
    %121 = arith.addf %119, %120 : vector<2x32xf32>
    %cst_117 = arith.constant dense<0.000000e+00> : vector<32xf32>
    %122 = vector.multi_reduction <add>, %121, %cst_117 [0] : vector<2x32xf32> to vector<32xf32>
    %123 = vector.shape_cast %122 : vector<32xf32> to vector<1x32xf32>
    %cst_118 = arith.constant 2.000000e+00 : f32
    %124 = vector.broadcast %cst_118 : f32 to vector<1x32xf32>
    %125 = arith.divf %123, %124 : vector<1x32xf32>
    %126 = vector.broadcast %125 : vector<1x32xf32> to vector<2x32xf32>
    %127 = arith.subf %121, %126 : vector<2x32xf32>
    %128 = arith.mulf %127, %127 : vector<2x32xf32>
    %cst_119 = arith.constant dense<0.000000e+00> : vector<32xf32>
    %129 = vector.multi_reduction <add>, %128, %cst_119 [0] : vector<2x32xf32> to vector<32xf32>
    %130 = vector.shape_cast %129 : vector<32xf32> to vector<1x32xf32>
    %cst_120 = arith.constant 2.000000e+00 : f32
    %131 = vector.broadcast %cst_120 : f32 to vector<1x32xf32>
    %132 = arith.divf %130, %131 : vector<1x32xf32>
    %133 = vector.broadcast %125 : vector<1x32xf32> to vector<2x32xf32>
    %134 = arith.subf %121, %133 : vector<2x32xf32>
    %cst_121 = arith.constant 9.99999974E-6 : f32
    %135 = vector.broadcast %cst_121 : f32 to vector<1x32xf32>
    %136 = arith.addf %132, %135 : vector<1x32xf32>
    %137 = math.rsqrt %136 : vector<1x32xf32>
    %138 = vector.broadcast %137 : vector<1x32xf32> to vector<2x32xf32>
    %139 = arith.mulf %134, %138 : vector<2x32xf32>
    %140 = vector.broadcast %92 : vector<1x32xf32> to vector<2x32xf32>
    %141 = arith.mulf %139, %140 : vector<2x32xf32>
    %142 = vector.broadcast %93 : vector<1x32xf32> to vector<2x32xf32>
    %143 = arith.addf %141, %142 : vector<2x32xf32>
    %cst_122 = arith.constant 0.000000e+00 : f32
    %144 = vector.broadcast %cst_122 : f32 to vector<2x32xf32>
    %145 = arith.maximumf %143, %144 : vector<2x32xf32>
    %146 = arith.truncf %145 : vector<2x32xf32> to vector<2x32xbf16>
    %147 = arith.truncf %94 : vector<32x32xf32> to vector<32x32xbf16>
    %cst_123 = arith.constant dense<0.000000e+00> : vector<2x32xf32>
    %148 = tpu.matmul %146, %147, %cst_123 {dimension_numbers = #tpu.dot_dimension_numbers<[1], [0], [0], [1], [0, 0, 1, 1], [], []>} : vector<2x32xbf16>, vector<32x32xbf16>, vector<2x32xf32> -> vector<2x32xf32>
    %cst_124 = arith.constant dense<0.000000e+00> : vector<32xf32>
    %149 = vector.multi_reduction <add>, %148, %cst_124 [0] : vector<2x32xf32> to vector<32xf32>
    %150 = vector.shape_cast %149 : vector<32xf32> to vector<1x32xf32>
    %cst_125 = arith.constant 2.000000e+00 : f32
    %151 = vector.broadcast %cst_125 : f32 to vector<1x32xf32>
    %152 = arith.divf %150, %151 : vector<1x32xf32>
    %153 = vector.broadcast %152 : vector<1x32xf32> to vector<2x32xf32>
    %154 = arith.subf %148, %153 : vector<2x32xf32>
    %155 = arith.mulf %154, %154 : vector<2x32xf32>
    %cst_126 = arith.constant dense<0.000000e+00> : vector<32xf32>
    %156 = vector.multi_reduction <add>, %155, %cst_126 [0] : vector<2x32xf32> to vector<32xf32>
    %157 = vector.shape_cast %156 : vector<32xf32> to vector<1x32xf32>
    %cst_127 = arith.constant 2.000000e+00 : f32
    %158 = vector.broadcast %cst_127 : f32 to vector<1x32xf32>
    %159 = arith.divf %157, %158 : vector<1x32xf32>
    %160 = vector.broadcast %152 : vector<1x32xf32> to vector<2x32xf32>
    %161 = arith.subf %148, %160 : vector<2x32xf32>
    %cst_128 = arith.constant 9.99999974E-6 : f32
    %162 = vector.broadcast %cst_128 : f32 to vector<1x32xf32>
    %163 = arith.addf %159, %162 : vector<1x32xf32>
    %164 = math.rsqrt %163 : vector<1x32xf32>
    %165 = vector.broadcast %164 : vector<1x32xf32> to vector<2x32xf32>
    %166 = arith.mulf %161, %165 : vector<2x32xf32>
    %167 = vector.broadcast %95 : vector<1x32xf32> to vector<2x32xf32>
    %168 = arith.mulf %166, %167 : vector<2x32xf32>
    %169 = vector.broadcast %96 : vector<1x32xf32> to vector<2x32xf32>
    %170 = arith.addf %168, %169 : vector<2x32xf32>
    %cst_129 = arith.constant 0.000000e+00 : f32
    %171 = vector.broadcast %cst_129 : f32 to vector<2x32xf32>
    %172 = arith.maximumf %170, %171 : vector<2x32xf32>
    %173 = arith.truncf %172 : vector<2x32xf32> to vector<2x32xbf16>
    %174 = arith.truncf %97 : vector<32x64xf32> to vector<32x64xbf16>
    %cst_130 = arith.constant dense<0.000000e+00> : vector<2x64xf32>
    %175 = tpu.matmul %173, %174, %cst_130 {dimension_numbers = #tpu.dot_dimension_numbers<[1], [0], [0], [1], [0, 0, 1, 1], [], []>} : vector<2x32xbf16>, vector<32x64xbf16>, vector<2x64xf32> -> vector<2x64xf32>
    %176 = vector.broadcast %98 : vector<1x64xf32> to vector<2x64xf32>
    %177 = arith.addf %175, %176 : vector<2x64xf32>
    %178 = vector.extract_strided_slice %105 {offsets = [512, 0], sizes = [256, 8], strides = [1, 1]} : vector<1024x8xf32> to vector<256x8xf32>
    %cst_131 = arith.constant dense<0.000000e+00> : vector<8xf32>
    %179 = vector.multi_reduction <add>, %178, %cst_131 [0] : vector<256x8xf32> to vector<8xf32>
    %180 = vector.shape_cast %179 : vector<8xf32> to vector<1x8xf32>
    %cst_132 = arith.constant 2.560000e+02 : f32
    %181 = vector.broadcast %cst_132 : f32 to vector<1x8xf32>
    %182 = arith.divf %180, %181 : vector<1x8xf32>
    %183 = vector.extract_strided_slice %105 {offsets = [768, 0], sizes = [256, 8], strides = [1, 1]} : vector<1024x8xf32> to vector<256x8xf32>
    %cst_133 = arith.constant dense<0.000000e+00> : vector<8xf32>
    %184 = vector.multi_reduction <add>, %183, %cst_133 [0] : vector<256x8xf32> to vector<8xf32>
    %185 = vector.shape_cast %184 : vector<8xf32> to vector<1x8xf32>
    %cst_134 = arith.constant 2.560000e+02 : f32
    %186 = vector.broadcast %cst_134 : f32 to vector<1x8xf32>
    %187 = arith.divf %185, %186 : vector<1x8xf32>
    %188 = tpu.concatenate %182, %187 in 0 : vector<1x8xf32>, vector<1x8xf32> -> vector<2x8xf32>
    %189 = arith.truncf %188 : vector<2x8xf32> to vector<2x8xbf16>
    %190 = arith.truncf %90 : vector<8x32xf32> to vector<8x32xbf16>
    %cst_135 = arith.constant dense<0.000000e+00> : vector<2x32xf32>
    %191 = tpu.matmul %189, %190, %cst_135 {dimension_numbers = #tpu.dot_dimension_numbers<[1], [0], [0], [1], [0, 0, 1, 1], [], []>} : vector<2x8xbf16>, vector<8x32xbf16>, vector<2x32xf32> -> vector<2x32xf32>
    %192 = vector.broadcast %91 : vector<1x32xf32> to vector<2x32xf32>
    %193 = arith.addf %191, %192 : vector<2x32xf32>
    %cst_136 = arith.constant dense<0.000000e+00> : vector<32xf32>
    %194 = vector.multi_reduction <add>, %193, %cst_136 [0] : vector<2x32xf32> to vector<32xf32>
    %195 = vector.shape_cast %194 : vector<32xf32> to vector<1x32xf32>
    %cst_137 = arith.constant 2.000000e+00 : f32
    %196 = vector.broadcast %cst_137 : f32 to vector<1x32xf32>
    %197 = arith.divf %195, %196 : vector<1x32xf32>
    %198 = vector.broadcast %197 : vector<1x32xf32> to vector<2x32xf32>
    %199 = arith.subf %193, %198 : vector<2x32xf32>
    %200 = arith.mulf %199, %199 : vector<2x32xf32>
    %cst_138 = arith.constant dense<0.000000e+00> : vector<32xf32>
    %201 = vector.multi_reduction <add>, %200, %cst_138 [0] : vector<2x32xf32> to vector<32xf32>
    %202 = vector.shape_cast %201 : vector<32xf32> to vector<1x32xf32>
    %cst_139 = arith.constant 2.000000e+00 : f32
    %203 = vector.broadcast %cst_139 : f32 to vector<1x32xf32>
    %204 = arith.divf %202, %203 : vector<1x32xf32>
    %205 = vector.broadcast %197 : vector<1x32xf32> to vector<2x32xf32>
    %206 = arith.subf %193, %205 : vector<2x32xf32>
    %cst_140 = arith.constant 9.99999974E-6 : f32
    %207 = vector.broadcast %cst_140 : f32 to vector<1x32xf32>
    %208 = arith.addf %204, %207 : vector<1x32xf32>
    %209 = math.rsqrt %208 : vector<1x32xf32>
    %210 = vector.broadcast %209 : vector<1x32xf32> to vector<2x32xf32>
    %211 = arith.mulf %206, %210 : vector<2x32xf32>
    %212 = vector.broadcast %92 : vector<1x32xf32> to vector<2x32xf32>
    %213 = arith.mulf %211, %212 : vector<2x32xf32>
    %214 = vector.broadcast %93 : vector<1x32xf32> to vector<2x32xf32>
    %215 = arith.addf %213, %214 : vector<2x32xf32>
    %cst_141 = arith.constant 0.000000e+00 : f32
    %216 = vector.broadcast %cst_141 : f32 to vector<2x32xf32>
    %217 = arith.maximumf %215, %216 : vector<2x32xf32>
    %218 = arith.truncf %217 : vector<2x32xf32> to vector<2x32xbf16>
    %219 = arith.truncf %94 : vector<32x32xf32> to vector<32x32xbf16>
    %cst_142 = arith.constant dense<0.000000e+00> : vector<2x32xf32>
    %220 = tpu.matmul %218, %219, %cst_142 {dimension_numbers = #tpu.dot_dimension_numbers<[1], [0], [0], [1], [0, 0, 1, 1], [], []>} : vector<2x32xbf16>, vector<32x32xbf16>, vector<2x32xf32> -> vector<2x32xf32>
    %cst_143 = arith.constant dense<0.000000e+00> : vector<32xf32>
    %221 = vector.multi_reduction <add>, %220, %cst_143 [0] : vector<2x32xf32> to vector<32xf32>
    %222 = vector.shape_cast %221 : vector<32xf32> to vector<1x32xf32>
    %cst_144 = arith.constant 2.000000e+00 : f32
    %223 = vector.broadcast %cst_144 : f32 to vector<1x32xf32>
    %224 = arith.divf %222, %223 : vector<1x32xf32>
    %225 = vector.broadcast %224 : vector<1x32xf32> to vector<2x32xf32>
    %226 = arith.subf %220, %225 : vector<2x32xf32>
    %227 = arith.mulf %226, %226 : vector<2x32xf32>
    %cst_145 = arith.constant dense<0.000000e+00> : vector<32xf32>
    %228 = vector.multi_reduction <add>, %227, %cst_145 [0] : vector<2x32xf32> to vector<32xf32>
    %229 = vector.shape_cast %228 : vector<32xf32> to vector<1x32xf32>
    %cst_146 = arith.constant 2.000000e+00 : f32
    %230 = vector.broadcast %cst_146 : f32 to vector<1x32xf32>
    %231 = arith.divf %229, %230 : vector<1x32xf32>
    %232 = vector.broadcast %224 : vector<1x32xf32> to vector<2x32xf32>
    %233 = arith.subf %220, %232 : vector<2x32xf32>
    %cst_147 = arith.constant 9.99999974E-6 : f32
    %234 = vector.broadcast %cst_147 : f32 to vector<1x32xf32>
    %235 = arith.addf %231, %234 : vector<1x32xf32>
    %236 = math.rsqrt %235 : vector<1x32xf32>
    %237 = vector.broadcast %236 : vector<1x32xf32> to vector<2x32xf32>
    %238 = arith.mulf %233, %237 : vector<2x32xf32>
    %239 = vector.broadcast %95 : vector<1x32xf32> to vector<2x32xf32>
    %240 = arith.mulf %238, %239 : vector<2x32xf32>
    %241 = vector.broadcast %96 : vector<1x32xf32> to vector<2x32xf32>
    %242 = arith.addf %240, %241 : vector<2x32xf32>
    %cst_148 = arith.constant 0.000000e+00 : f32
    %243 = vector.broadcast %cst_148 : f32 to vector<2x32xf32>
    %244 = arith.maximumf %242, %243 : vector<2x32xf32>
    %245 = arith.truncf %244 : vector<2x32xf32> to vector<2x32xbf16>
    %246 = arith.truncf %97 : vector<32x64xf32> to vector<32x64xbf16>
    %cst_149 = arith.constant dense<0.000000e+00> : vector<2x64xf32>
    %247 = tpu.matmul %245, %246, %cst_149 {dimension_numbers = #tpu.dot_dimension_numbers<[1], [0], [0], [1], [0, 0, 1, 1], [], []>} : vector<2x32xbf16>, vector<32x64xbf16>, vector<2x64xf32> -> vector<2x64xf32>
    %248 = vector.broadcast %98 : vector<1x64xf32> to vector<2x64xf32>
    %249 = arith.addf %247, %248 : vector<2x64xf32>
    %250 = tpu.concatenate %177, %249 in 1 : vector<2x64xf32>, vector<2x64xf32> -> vector<2x128xf32>
    %c0_150 = arith.constant 0 : index
    %c0_151 = arith.constant 0 : index
    %251 = vector.load %arg34[%c0_150, %c0_151] : memref<2x128xf32, #tpu.memory_space<vmem>>, vector<2x128xf32>
    tpu.vector_store %arg34[%c0_150, %c0_151], %250 {strides = array<i32>} : memref<2x128xf32, #tpu.memory_space<vmem>>, vector<2x128xf32>,
    return
  }
}

module attributes {stable_mosaic.version = 11 : i64} {
  func.func @_student_kernel(%arg0: memref<1024x27xbf16, #tpu.memory_space<vmem>>, %arg1: memref<27x8xf32, #tpu.memory_space<vmem>>, %arg2: memref<1x8xf32, #tpu.memory_space<vmem>>, %arg3: memref<8x32xf32, #tpu.memory_space<vmem>>, %arg4: memref<1x32xf32, #tpu.memory_space<vmem>>, %arg5: memref<1x32xf32, #tpu.memory_space<vmem>>, %arg6: memref<1x32xf32, #tpu.memory_space<vmem>>, %arg7: memref<32x32xf32, #tpu.memory_space<vmem>>, %arg8: memref<1x32xf32, #tpu.memory_space<vmem>>, %arg9: memref<1x32xf32, #tpu.memory_space<vmem>>, %arg10: memref<32x64xf32, #tpu.memory_space<vmem>>, %arg11: memref<1x64xf32, #tpu.memory_space<vmem>>, %arg12: memref<64x32xf32, #tpu.memory_space<vmem>>, %arg13: memref<1x32xf32, #tpu.memory_space<vmem>>, %arg14: memref<1x32xf32, #tpu.memory_space<vmem>>, %arg15: memref<32x64xf32, #tpu.memory_space<vmem>>, %arg16: memref<1x64xf32, #tpu.memory_space<vmem>>, %arg17: memref<4x128xf32, #tpu.memory_space<vmem>>) attributes {dimension_semantics = [], scalar_prefetch = 0 : i64, scratch_operands = 0 : i64, tpu.core_type = #tpu.core_type<tc>} {
    %c0 = arith.constant 0 : index
    %c0_0 = arith.constant 0 : index
    %0 = vector.load %arg1[%c0, %c0_0] : memref<27x8xf32, #tpu.memory_space<vmem>>, vector<27x8xf32>
    %c0_1 = arith.constant 0 : index
    %c0_2 = arith.constant 0 : index
    %1 = vector.load %arg2[%c0_1, %c0_2] : memref<1x8xf32, #tpu.memory_space<vmem>>, vector<1x8xf32>
    %c0_3 = arith.constant 0 : index
    %c0_4 = arith.constant 0 : index
    %2 = vector.load %arg3[%c0_3, %c0_4] : memref<8x32xf32, #tpu.memory_space<vmem>>, vector<8x32xf32>
    %c0_5 = arith.constant 0 : index
    %c0_6 = arith.constant 0 : index
    %3 = vector.load %arg4[%c0_5, %c0_6] : memref<1x32xf32, #tpu.memory_space<vmem>>, vector<1x32xf32>
    %c0_7 = arith.constant 0 : index
    %c0_8 = arith.constant 0 : index
    %4 = vector.load %arg5[%c0_7, %c0_8] : memref<1x32xf32, #tpu.memory_space<vmem>>, vector<1x32xf32>
    %c0_9 = arith.constant 0 : index
    %c0_10 = arith.constant 0 : index
    %5 = vector.load %arg6[%c0_9, %c0_10] : memref<1x32xf32, #tpu.memory_space<vmem>>, vector<1x32xf32>
    %c0_11 = arith.constant 0 : index
    %c0_12 = arith.constant 0 : index
    %6 = vector.load %arg7[%c0_11, %c0_12] : memref<32x32xf32, #tpu.memory_space<vmem>>, vector<32x32xf32>
    %c0_13 = arith.constant 0 : index
    %c0_14 = arith.constant 0 : index
    %7 = vector.load %arg8[%c0_13, %c0_14] : memref<1x32xf32, #tpu.memory_space<vmem>>, vector<1x32xf32>
    %c0_15 = arith.constant 0 : index
    %c0_16 = arith.constant 0 : index
    %8 = vector.load %arg9[%c0_15, %c0_16] : memref<1x32xf32, #tpu.memory_space<vmem>>, vector<1x32xf32>
    %c0_17 = arith.constant 0 : index
    %c0_18 = arith.constant 0 : index
    %9 = vector.load %arg10[%c0_17, %c0_18] : memref<32x64xf32, #tpu.memory_space<vmem>>, vector<32x64xf32>
    %c0_19 = arith.constant 0 : index
    %c0_20 = arith.constant 0 : index
    %10 = vector.load %arg11[%c0_19, %c0_20] : memref<1x64xf32, #tpu.memory_space<vmem>>, vector<1x64xf32>
    %c0_21 = arith.constant 0 : index
    %c0_22 = arith.constant 0 : index
    %11 = vector.load %arg12[%c0_21, %c0_22] : memref<64x32xf32, #tpu.memory_space<vmem>>, vector<64x32xf32>
    %c0_23 = arith.constant 0 : index
    %c0_24 = arith.constant 0 : index
    %12 = vector.load %arg13[%c0_23, %c0_24] : memref<1x32xf32, #tpu.memory_space<vmem>>, vector<1x32xf32>
    %c0_25 = arith.constant 0 : index
    %c0_26 = arith.constant 0 : index
    %13 = vector.load %arg14[%c0_25, %c0_26] : memref<1x32xf32, #tpu.memory_space<vmem>>, vector<1x32xf32>
    %c0_27 = arith.constant 0 : index
    %c0_28 = arith.constant 0 : index
    %14 = vector.load %arg15[%c0_27, %c0_28] : memref<32x64xf32, #tpu.memory_space<vmem>>, vector<32x64xf32>
    %c0_29 = arith.constant 0 : index
    %c0_30 = arith.constant 0 : index
    %15 = vector.load %arg16[%c0_29, %c0_30] : memref<1x64xf32, #tpu.memory_space<vmem>>, vector<1x64xf32>
    %c0_31 = arith.constant 0 : index
    %c0_32 = arith.constant 0 : index
    %16 = vector.load %arg0[%c0_31, %c0_32] : memref<1024x27xbf16, #tpu.memory_space<vmem>>, vector<1024x27xbf16>
    %17 = arith.truncf %0 : vector<27x8xf32> to vector<27x8xbf16>
    %cst = arith.constant dense<0.000000e+00> : vector<1024x8xf32>
    %18 = tpu.matmul %16, %17, %cst {dimension_numbers = #tpu.dot_dimension_numbers<[1], [0], [0], [1], [0, 0, 1, 1], [], []>} : vector<1024x27xbf16>, vector<27x8xbf16>, vector<1024x8xf32> -> vector<1024x8xf32>
    %19 = vector.broadcast %1 : vector<1x8xf32> to vector<1024x8xf32>
    %20 = arith.addf %18, %19 : vector<1024x8xf32>
    %cst_33 = arith.constant 0.000000e+00 : f32
    %21 = vector.broadcast %cst_33 : f32 to vector<1024x8xf32>
    %22 = arith.maximumf %20, %21 : vector<1024x8xf32>
    %23 = vector.extract_strided_slice %22 {offsets = [0, 0], sizes = [256, 8], strides = [1, 1]} : vector<1024x8xf32> to vector<256x8xf32>
    %cst_34 = arith.constant dense<0.000000e+00> : vector<8xf32>
    %24 = vector.multi_reduction <add>, %23, %cst_34 [0] : vector<256x8xf32> to vector<8xf32>
    %25 = vector.shape_cast %24 : vector<8xf32> to vector<1x8xf32>
    %cst_35 = arith.constant 2.560000e+02 : f32
    %26 = vector.broadcast %cst_35 : f32 to vector<1x8xf32>
    %27 = arith.divf %25, %26 : vector<1x8xf32>
    %28 = vector.extract_strided_slice %22 {offsets = [256, 0], sizes = [256, 8], strides = [1, 1]} : vector<1024x8xf32> to vector<256x8xf32>
    %cst_36 = arith.constant dense<0.000000e+00> : vector<8xf32>
    %29 = vector.multi_reduction <add>, %28, %cst_36 [0] : vector<256x8xf32> to vector<8xf32>
    %30 = vector.shape_cast %29 : vector<8xf32> to vector<1x8xf32>
    %cst_37 = arith.constant 2.560000e+02 : f32
    %31 = vector.broadcast %cst_37 : f32 to vector<1x8xf32>
    %32 = arith.divf %30, %31 : vector<1x8xf32>
    %33 = tpu.concatenate %27, %32 in 0 : vector<1x8xf32>, vector<1x8xf32> -> vector<2x8xf32>
    %34 = arith.truncf %33 : vector<2x8xf32> to vector<2x8xbf16>
    %35 = arith.truncf %2 : vector<8x32xf32> to vector<8x32xbf16>
    %cst_38 = arith.constant dense<0.000000e+00> : vector<2x32xf32>
    %36 = tpu.matmul %34, %35, %cst_38 {dimension_numbers = #tpu.dot_dimension_numbers<[1], [0], [0], [1], [0, 0, 1, 1], [], []>} : vector<2x8xbf16>, vector<8x32xbf16>, vector<2x32xf32> -> vector<2x32xf32>
    %37 = vector.broadcast %3 : vector<1x32xf32> to vector<2x32xf32>
    %38 = arith.addf %36, %37 : vector<2x32xf32>
    %cst_39 = arith.constant dense<0.000000e+00> : vector<32xf32>
    %39 = vector.multi_reduction <add>, %38, %cst_39 [0] : vector<2x32xf32> to vector<32xf32>
    %40 = vector.shape_cast %39 : vector<32xf32> to vector<1x32xf32>
    %cst_40 = arith.constant 2.000000e+00 : f32
    %41 = vector.broadcast %cst_40 : f32 to vector<1x32xf32>
    %42 = arith.divf %40, %41 : vector<1x32xf32>
    %43 = vector.broadcast %42 : vector<1x32xf32> to vector<2x32xf32>
    %44 = arith.subf %38, %43 : vector<2x32xf32>
    %45 = arith.mulf %44, %44 : vector<2x32xf32>
    %cst_41 = arith.constant dense<0.000000e+00> : vector<32xf32>
    %46 = vector.multi_reduction <add>, %45, %cst_41 [0] : vector<2x32xf32> to vector<32xf32>
    %47 = vector.shape_cast %46 : vector<32xf32> to vector<1x32xf32>
    %cst_42 = arith.constant 2.000000e+00 : f32
    %48 = vector.broadcast %cst_42 : f32 to vector<1x32xf32>
    %49 = arith.divf %47, %48 : vector<1x32xf32>
    %50 = vector.broadcast %42 : vector<1x32xf32> to vector<2x32xf32>
    %51 = arith.subf %38, %50 : vector<2x32xf32>
    %cst_43 = arith.constant 9.99999974E-6 : f32
    %52 = vector.broadcast %cst_43 : f32 to vector<1x32xf32>
    %53 = arith.addf %49, %52 : vector<1x32xf32>
    %54 = math.rsqrt %53 : vector<1x32xf32>
    %55 = vector.broadcast %54 : vector<1x32xf32> to vector<2x32xf32>
    %56 = arith.mulf %51, %55 : vector<2x32xf32>
    %57 = vector.broadcast %4 : vector<1x32xf32> to vector<2x32xf32>
    %58 = arith.mulf %56, %57 : vector<2x32xf32>
    %59 = vector.broadcast %5 : vector<1x32xf32> to vector<2x32xf32>
    %60 = arith.addf %58, %59 : vector<2x32xf32>
    %cst_44 = arith.constant 0.000000e+00 : f32
    %61 = vector.broadcast %cst_44 : f32 to vector<2x32xf32>
    %62 = arith.maximumf %60, %61 : vector<2x32xf32>
    %63 = arith.truncf %62 : vector<2x32xf32> to vector<2x32xbf16>
    %64 = arith.truncf %6 : vector<32x32xf32> to vector<32x32xbf16>
    %cst_45 = arith.constant dense<0.000000e+00> : vector<2x32xf32>
    %65 = tpu.matmul %63, %64, %cst_45 {dimension_numbers = #tpu.dot_dimension_numbers<[1], [0], [0], [1], [0, 0, 1, 1], [], []>} : vector<2x32xbf16>, vector<32x32xbf16>, vector<2x32xf32> -> vector<2x32xf32>
    %cst_46 = arith.constant dense<0.000000e+00> : vector<32xf32>
    %66 = vector.multi_reduction <add>, %65, %cst_46 [0] : vector<2x32xf32> to vector<32xf32>
    %67 = vector.shape_cast %66 : vector<32xf32> to vector<1x32xf32>
    %cst_47 = arith.constant 2.000000e+00 : f32
    %68 = vector.broadcast %cst_47 : f32 to vector<1x32xf32>
    %69 = arith.divf %67, %68 : vector<1x32xf32>
    %70 = vector.broadcast %69 : vector<1x32xf32> to vector<2x32xf32>
    %71 = arith.subf %65, %70 : vector<2x32xf32>
    %72 = arith.mulf %71, %71 : vector<2x32xf32>
    %cst_48 = arith.constant dense<0.000000e+00> : vector<32xf32>
    %73 = vector.multi_reduction <add>, %72, %cst_48 [0] : vector<2x32xf32> to vector<32xf32>
    %74 = vector.shape_cast %73 : vector<32xf32> to vector<1x32xf32>
    %cst_49 = arith.constant 2.000000e+00 : f32
    %75 = vector.broadcast %cst_49 : f32 to vector<1x32xf32>
    %76 = arith.divf %74, %75 : vector<1x32xf32>
    %77 = vector.broadcast %69 : vector<1x32xf32> to vector<2x32xf32>
    %78 = arith.subf %65, %77 : vector<2x32xf32>
    %cst_50 = arith.constant 9.99999974E-6 : f32
    %79 = vector.broadcast %cst_50 : f32 to vector<1x32xf32>
    %80 = arith.addf %76, %79 : vector<1x32xf32>
    %81 = math.rsqrt %80 : vector<1x32xf32>
    %82 = vector.broadcast %81 : vector<1x32xf32> to vector<2x32xf32>
    %83 = arith.mulf %78, %82 : vector<2x32xf32>
    %84 = vector.broadcast %7 : vector<1x32xf32> to vector<2x32xf32>
    %85 = arith.mulf %83, %84 : vector<2x32xf32>
    %86 = vector.broadcast %8 : vector<1x32xf32> to vector<2x32xf32>
    %87 = arith.addf %85, %86 : vector<2x32xf32>
    %cst_51 = arith.constant 0.000000e+00 : f32
    %88 = vector.broadcast %cst_51 : f32 to vector<2x32xf32>
    %89 = arith.maximumf %87, %88 : vector<2x32xf32>
    %90 = arith.truncf %89 : vector<2x32xf32> to vector<2x32xbf16>
    %91 = arith.truncf %9 : vector<32x64xf32> to vector<32x64xbf16>
    %cst_52 = arith.constant dense<0.000000e+00> : vector<2x64xf32>
    %92 = tpu.matmul %90, %91, %cst_52 {dimension_numbers = #tpu.dot_dimension_numbers<[1], [0], [0], [1], [0, 0, 1, 1], [], []>} : vector<2x32xbf16>, vector<32x64xbf16>, vector<2x64xf32> -> vector<2x64xf32>
    %93 = vector.broadcast %10 : vector<1x64xf32> to vector<2x64xf32>
    %94 = arith.addf %92, %93 : vector<2x64xf32>
    %95 = vector.extract_strided_slice %22 {offsets = [512, 0], sizes = [256, 8], strides = [1, 1]} : vector<1024x8xf32> to vector<256x8xf32>
    %cst_53 = arith.constant dense<0.000000e+00> : vector<8xf32>
    %96 = vector.multi_reduction <add>, %95, %cst_53 [0] : vector<256x8xf32> to vector<8xf32>
    %97 = vector.shape_cast %96 : vector<8xf32> to vector<1x8xf32>
    %cst_54 = arith.constant 2.560000e+02 : f32
    %98 = vector.broadcast %cst_54 : f32 to vector<1x8xf32>
    %99 = arith.divf %97, %98 : vector<1x8xf32>
    %100 = vector.extract_strided_slice %22 {offsets = [768, 0], sizes = [256, 8], strides = [1, 1]} : vector<1024x8xf32> to vector<256x8xf32>
    %cst_55 = arith.constant dense<0.000000e+00> : vector<8xf32>
    %101 = vector.multi_reduction <add>, %100, %cst_55 [0] : vector<256x8xf32> to vector<8xf32>
    %102 = vector.shape_cast %101 : vector<8xf32> to vector<1x8xf32>
    %cst_56 = arith.constant 2.560000e+02 : f32
    %103 = vector.broadcast %cst_56 : f32 to vector<1x8xf32>
    %104 = arith.divf %102, %103 : vector<1x8xf32>
    %105 = tpu.concatenate %99, %104 in 0 : vector<1x8xf32>, vector<1x8xf32> -> vector<2x8xf32>
    %106 = arith.truncf %105 : vector<2x8xf32> to vector<2x8xbf16>
    %107 = arith.truncf %2 : vector<8x32xf32> to vector<8x32xbf16>
    %cst_57 = arith.constant dense<0.000000e+00> : vector<2x32xf32>
    %108 = tpu.matmul %106, %107, %cst_57 {dimension_numbers = #tpu.dot_dimension_numbers<[1], [0], [0], [1], [0, 0, 1, 1], [], []>} : vector<2x8xbf16>, vector<8x32xbf16>, vector<2x32xf32> -> vector<2x32xf32>
    %109 = vector.broadcast %3 : vector<1x32xf32> to vector<2x32xf32>
    %110 = arith.addf %108, %109 : vector<2x32xf32>
    %cst_58 = arith.constant dense<0.000000e+00> : vector<32xf32>
    %111 = vector.multi_reduction <add>, %110, %cst_58 [0] : vector<2x32xf32> to vector<32xf32>
    %112 = vector.shape_cast %111 : vector<32xf32> to vector<1x32xf32>
    %cst_59 = arith.constant 2.000000e+00 : f32
    %113 = vector.broadcast %cst_59 : f32 to vector<1x32xf32>
    %114 = arith.divf %112, %113 : vector<1x32xf32>
    %115 = vector.broadcast %114 : vector<1x32xf32> to vector<2x32xf32>
    %116 = arith.subf %110, %115 : vector<2x32xf32>
    %117 = arith.mulf %116, %116 : vector<2x32xf32>
    %cst_60 = arith.constant dense<0.000000e+00> : vector<32xf32>
    %118 = vector.multi_reduction <add>, %117, %cst_60 [0] : vector<2x32xf32> to vector<32xf32>
    %119 = vector.shape_cast %118 : vector<32xf32> to vector<1x32xf32>
    %cst_61 = arith.constant 2.000000e+00 : f32
    %120 = vector.broadcast %cst_61 : f32 to vector<1x32xf32>
    %121 = arith.divf %119, %120 : vector<1x32xf32>
    %122 = vector.broadcast %114 : vector<1x32xf32> to vector<2x32xf32>
    %123 = arith.subf %110, %122 : vector<2x32xf32>
    %cst_62 = arith.constant 9.99999974E-6 : f32
    %124 = vector.broadcast %cst_62 : f32 to vector<1x32xf32>
    %125 = arith.addf %121, %124 : vector<1x32xf32>
    %126 = math.rsqrt %125 : vector<1x32xf32>
    %127 = vector.broadcast %126 : vector<1x32xf32> to vector<2x32xf32>
    %128 = arith.mulf %123, %127 : vector<2x32xf32>
    %129 = vector.broadcast %4 : vector<1x32xf32> to vector<2x32xf32>
    %130 = arith.mulf %128, %129 : vector<2x32xf32>
    %131 = vector.broadcast %5 : vector<1x32xf32> to vector<2x32xf32>
    %132 = arith.addf %130, %131 : vector<2x32xf32>
    %cst_63 = arith.constant 0.000000e+00 : f32
    %133 = vector.broadcast %cst_63 : f32 to vector<2x32xf32>
    %134 = arith.maximumf %132, %133 : vector<2x32xf32>
    %135 = arith.truncf %134 : vector<2x32xf32> to vector<2x32xbf16>
    %136 = arith.truncf %6 : vector<32x32xf32> to vector<32x32xbf16>
    %cst_64 = arith.constant dense<0.000000e+00> : vector<2x32xf32>
    %137 = tpu.matmul %135, %136, %cst_64 {dimension_numbers = #tpu.dot_dimension_numbers<[1], [0], [0], [1], [0, 0, 1, 1], [], []>} : vector<2x32xbf16>, vector<32x32xbf16>, vector<2x32xf32> -> vector<2x32xf32>
    %cst_65 = arith.constant dense<0.000000e+00> : vector<32xf32>
    %138 = vector.multi_reduction <add>, %137, %cst_65 [0] : vector<2x32xf32> to vector<32xf32>
    %139 = vector.shape_cast %138 : vector<32xf32> to vector<1x32xf32>
    %cst_66 = arith.constant 2.000000e+00 : f32
    %140 = vector.broadcast %cst_66 : f32 to vector<1x32xf32>
    %141 = arith.divf %139, %140 : vector<1x32xf32>
    %142 = vector.broadcast %141 : vector<1x32xf32> to vector<2x32xf32>
    %143 = arith.subf %137, %142 : vector<2x32xf32>
    %144 = arith.mulf %143, %143 : vector<2x32xf32>
    %cst_67 = arith.constant dense<0.000000e+00> : vector<32xf32>
    %145 = vector.multi_reduction <add>, %144, %cst_67 [0] : vector<2x32xf32> to vector<32xf32>
    %146 = vector.shape_cast %145 : vector<32xf32> to vector<1x32xf32>
    %cst_68 = arith.constant 2.000000e+00 : f32
    %147 = vector.broadcast %cst_68 : f32 to vector<1x32xf32>
    %148 = arith.divf %146, %147 : vector<1x32xf32>
    %149 = vector.broadcast %141 : vector<1x32xf32> to vector<2x32xf32>
    %150 = arith.subf %137, %149 : vector<2x32xf32>
    %cst_69 = arith.constant 9.99999974E-6 : f32
    %151 = vector.broadcast %cst_69 : f32 to vector<1x32xf32>
    %152 = arith.addf %148, %151 : vector<1x32xf32>
    %153 = math.rsqrt %152 : vector<1x32xf32>
    %154 = vector.broadcast %153 : vector<1x32xf32> to vector<2x32xf32>
    %155 = arith.mulf %150, %154 : vector<2x32xf32>
    %156 = vector.broadcast %7 : vector<1x32xf32> to vector<2x32xf32>
    %157 = arith.mulf %155, %156 : vector<2x32xf32>
    %158 = vector.broadcast %8 : vector<1x32xf32> to vector<2x32xf32>
    %159 = arith.addf %157, %158 : vector<2x32xf32>
    %cst_70 = arith.constant 0.000000e+00 : f32
    %160 = vector.broadcast %cst_70 : f32 to vector<2x32xf32>
    %161 = arith.maximumf %159, %160 : vector<2x32xf32>
    %162 = arith.truncf %161 : vector<2x32xf32> to vector<2x32xbf16>
    %163 = arith.truncf %9 : vector<32x64xf32> to vector<32x64xbf16>
    %cst_71 = arith.constant dense<0.000000e+00> : vector<2x64xf32>
    %164 = tpu.matmul %162, %163, %cst_71 {dimension_numbers = #tpu.dot_dimension_numbers<[1], [0], [0], [1], [0, 0, 1, 1], [], []>} : vector<2x32xbf16>, vector<32x64xbf16>, vector<2x64xf32> -> vector<2x64xf32>
    %165 = vector.broadcast %10 : vector<1x64xf32> to vector<2x64xf32>
    %166 = arith.addf %164, %165 : vector<2x64xf32>
    %167 = arith.truncf %94 : vector<2x64xf32> to vector<2x64xbf16>
    %168 = arith.truncf %11 : vector<64x32xf32> to vector<64x32xbf16>
    %cst_72 = arith.constant dense<0.000000e+00> : vector<2x32xf32>
    %169 = tpu.matmul %167, %168, %cst_72 {dimension_numbers = #tpu.dot_dimension_numbers<[1], [0], [0], [1], [0, 0, 1, 1], [], []>} : vector<2x64xbf16>, vector<64x32xbf16>, vector<2x32xf32> -> vector<2x32xf32>
    %cst_73 = arith.constant dense<0.000000e+00> : vector<32xf32>
    %170 = vector.multi_reduction <add>, %169, %cst_73 [0] : vector<2x32xf32> to vector<32xf32>
    %171 = vector.shape_cast %170 : vector<32xf32> to vector<1x32xf32>
    %cst_74 = arith.constant 2.000000e+00 : f32
    %172 = vector.broadcast %cst_74 : f32 to vector<1x32xf32>
    %173 = arith.divf %171, %172 : vector<1x32xf32>
    %174 = vector.broadcast %173 : vector<1x32xf32> to vector<2x32xf32>
    %175 = arith.subf %169, %174 : vector<2x32xf32>
    %176 = arith.mulf %175, %175 : vector<2x32xf32>
    %cst_75 = arith.constant dense<0.000000e+00> : vector<32xf32>
    %177 = vector.multi_reduction <add>, %176, %cst_75 [0] : vector<2x32xf32> to vector<32xf32>
    %178 = vector.shape_cast %177 : vector<32xf32> to vector<1x32xf32>
    %cst_76 = arith.constant 2.000000e+00 : f32
    %179 = vector.broadcast %cst_76 : f32 to vector<1x32xf32>
    %180 = arith.divf %178, %179 : vector<1x32xf32>
    %181 = vector.broadcast %173 : vector<1x32xf32> to vector<2x32xf32>
    %182 = arith.subf %169, %181 : vector<2x32xf32>
    %cst_77 = arith.constant 9.99999974E-6 : f32
    %183 = vector.broadcast %cst_77 : f32 to vector<1x32xf32>
    %184 = arith.addf %180, %183 : vector<1x32xf32>
    %185 = math.rsqrt %184 : vector<1x32xf32>
    %186 = vector.broadcast %185 : vector<1x32xf32> to vector<2x32xf32>
    %187 = arith.mulf %182, %186 : vector<2x32xf32>
    %188 = vector.broadcast %12 : vector<1x32xf32> to vector<2x32xf32>
    %189 = arith.mulf %187, %188 : vector<2x32xf32>
    %190 = vector.broadcast %13 : vector<1x32xf32> to vector<2x32xf32>
    %191 = arith.addf %189, %190 : vector<2x32xf32>
    %cst_78 = arith.constant 0.000000e+00 : f32
    %192 = vector.broadcast %cst_78 : f32 to vector<2x32xf32>
    %193 = arith.maximumf %191, %192 : vector<2x32xf32>
    %194 = arith.truncf %193 : vector<2x32xf32> to vector<2x32xbf16>
    %195 = arith.truncf %14 : vector<32x64xf32> to vector<32x64xbf16>
    %cst_79 = arith.constant dense<0.000000e+00> : vector<2x64xf32>
    %196 = tpu.matmul %194, %195, %cst_79 {dimension_numbers = #tpu.dot_dimension_numbers<[1], [0], [0], [1], [0, 0, 1, 1], [], []>} : vector<2x32xbf16>, vector<32x64xbf16>, vector<2x64xf32> -> vector<2x64xf32>
    %197 = vector.broadcast %15 : vector<1x64xf32> to vector<2x64xf32>
    %198 = arith.addf %196, %197 : vector<2x64xf32>
    %199 = arith.truncf %166 : vector<2x64xf32> to vector<2x64xbf16>
    %200 = arith.truncf %11 : vector<64x32xf32> to vector<64x32xbf16>
    %cst_80 = arith.constant dense<0.000000e+00> : vector<2x32xf32>
    %201 = tpu.matmul %199, %200, %cst_80 {dimension_numbers = #tpu.dot_dimension_numbers<[1], [0], [0], [1], [0, 0, 1, 1], [], []>} : vector<2x64xbf16>, vector<64x32xbf16>, vector<2x32xf32> -> vector<2x32xf32>
    %cst_81 = arith.constant dense<0.000000e+00> : vector<32xf32>
    %202 = vector.multi_reduction <add>, %201, %cst_81 [0] : vector<2x32xf32> to vector<32xf32>
    %203 = vector.shape_cast %202 : vector<32xf32> to vector<1x32xf32>
    %cst_82 = arith.constant 2.000000e+00 : f32
    %204 = vector.broadcast %cst_82 : f32 to vector<1x32xf32>
    %205 = arith.divf %203, %204 : vector<1x32xf32>
    %206 = vector.broadcast %205 : vector<1x32xf32> to vector<2x32xf32>
    %207 = arith.subf %201, %206 : vector<2x32xf32>
    %208 = arith.mulf %207, %207 : vector<2x32xf32>
    %cst_83 = arith.constant dense<0.000000e+00> : vector<32xf32>
    %209 = vector.multi_reduction <add>, %208, %cst_83 [0] : vector<2x32xf32> to vector<32xf32>
    %210 = vector.shape_cast %209 : vector<32xf32> to vector<1x32xf32>
    %cst_84 = arith.constant 2.000000e+00 : f32
    %211 = vector.broadcast %cst_84 : f32 to vector<1x32xf32>
    %212 = arith.divf %210, %211 : vector<1x32xf32>
    %213 = vector.broadcast %205 : vector<1x32xf32> to vector<2x32xf32>
    %214 = arith.subf %201, %213 : vector<2x32xf32>
    %cst_85 = arith.constant 9.99999974E-6 : f32
    %215 = vector.broadcast %cst_85 : f32 to vector<1x32xf32>
    %216 = arith.addf %212, %215 : vector<1x32xf32>
    %217 = math.rsqrt %216 : vector<1x32xf32>
    %218 = vector.broadcast %217 : vector<1x32xf32> to vector<2x32xf32>
    %219 = arith.mulf %214, %218 : vector<2x32xf32>
    %220 = vector.broadcast %12 : vector<1x32xf32> to vector<2x32xf32>
    %221 = arith.mulf %219, %220 : vector<2x32xf32>
    %222 = vector.broadcast %13 : vector<1x32xf32> to vector<2x32xf32>
    %223 = arith.addf %221, %222 : vector<2x32xf32>
    %cst_86 = arith.constant 0.000000e+00 : f32
    %224 = vector.broadcast %cst_86 : f32 to vector<2x32xf32>
    %225 = arith.maximumf %223, %224 : vector<2x32xf32>
    %226 = arith.truncf %225 : vector<2x32xf32> to vector<2x32xbf16>
    %227 = arith.truncf %14 : vector<32x64xf32> to vector<32x64xbf16>
    %cst_87 = arith.constant dense<0.000000e+00> : vector<2x64xf32>
    %228 = tpu.matmul %226, %227, %cst_87 {dimension_numbers = #tpu.dot_dimension_numbers<[1], [0], [0], [1], [0, 0, 1, 1], [], []>} : vector<2x32xbf16>, vector<32x64xbf16>, vector<2x64xf32> -> vector<2x64xf32>
    %229 = vector.broadcast %15 : vector<1x64xf32> to vector<2x64xf32>
    %230 = arith.addf %228, %229 : vector<2x64xf32>
    %231 = tpu.concatenate %94, %166 in 0 : vector<2x64xf32>, vector<2x64xf32> -> vector<4x64xf32>
    %232 = tpu.concatenate %198, %230 in 0 : vector<2x64xf32>, vector<2x64xf32> -> vector<4x64xf32>
    %233 = tpu.concatenate %231, %232 in 1 : vector<4x64xf32>, vector<4x64xf32> -> vector<4x128xf32>
    %c0_88 = arith.constant 0 : index
    %c0_89 = arith.constant 0 : index
    %234 = vector.load %arg17[%c0_88, %c0_89] : memref<4x128xf32, #tpu.memory_space<vmem>>, vector<4x128xf32>
    tpu.vector_store %arg17[%c0_88, %c0_89], %233 {strides = array<i32>} : memref<4x128xf32, #tpu.memory_space<vmem>>, vector<4x128xf32>,
    return
  }
}

</mosaic_0001>

<llo_original>
// kernel: simsiam_momentum_forward.2
$region0: #{simsiam_momentum_forward.2}
  #allocation0 [shape = 'u32[]', space=smem, size = 0x4, offset = 0x4, fixed_abs, tag = 'smem constant byte address 0x4 - core index']
  #allocation1 [shape = 'u32[144,128]{1,0:T(1,128)}', space=vmem, size = 0x12000, scoped, tag = 'internal scratch']
  %s0 = inlined_call_operand.vmem [shape: bf16[1024,27], index: 0, kind: input, shape index: {}]
  %s1 = inlined_call_operand.vmem [shape: f32[27,8], index: 1, kind: input, shape index: {}]
  %s2 = inlined_call_operand.vmem [shape: f32[1,8], index: 2, kind: input, shape index: {}]
  %s3 = inlined_call_operand.vmem [shape: f32[8,32], index: 3, kind: input, shape index: {}]
  %s4 = inlined_call_operand.vmem [shape: f32[1,32], index: 4, kind: input, shape index: {}]
  %s5 = inlined_call_operand.vmem [shape: f32[1,32], index: 5, kind: input, shape index: {}]
  %s6 = inlined_call_operand.vmem [shape: f32[1,32], index: 6, kind: input, shape index: {}]
  %s7 = inlined_call_operand.vmem [shape: f32[32,32], index: 7, kind: input, shape index: {}]
  %s8 = inlined_call_operand.vmem [shape: f32[1,32], index: 8, kind: input, shape index: {}]
  %s9 = inlined_call_operand.vmem [shape: f32[1,32], index: 9, kind: input, shape index: {}]
  %s10 = inlined_call_operand.vmem [shape: f32[32,64], index: 10, kind: input, shape index: {}]
  %s11 = inlined_call_operand.vmem [shape: f32[1,64], index: 11, kind: input, shape index: {}]
  %s12 = inlined_call_operand.vmem [shape: f32[64,32], index: 12, kind: input, shape index: {}]
  %s13 = inlined_call_operand.vmem [shape: f32[1,32], index: 13, kind: input, shape index: {}]
  %s14 = inlined_call_operand.vmem [shape: f32[1,32], index: 14, kind: input, shape index: {}]
  %s15 = inlined_call_operand.vmem [shape: f32[32,64], index: 15, kind: input, shape index: {}]
  %s16 = inlined_call_operand.vmem [shape: f32[1,64], index: 16, kind: input, shape index: {}]
  %s17 = inlined_call_operand.vmem [shape: f32[4,128], index: 17, kind: output, shape index: {}]
  %s18 = sld [smem:[#allocation0]]
  $region78: #{simsiam_momentum_forward.2} parent=0
    _
  %s20 = ssub.s32 1, %s18
  %s21 = scalar_select 0, %s20, %s18
  // Predicated region
  $region2: #{simsiam_momentum_forward.2} parent=0 // pred_check
    _
  $region3: #{simsiam_momentum_forward.2} parent=0 // pred_check_branch
    %23 = sbr.rel (0) target = $region5
  $region4: #{simsiam_momentum_forward.2} parent=0 // pred_region
    _
  $region5: #{simsiam_momentum_forward.2} parent=0 // pred_fallthru
    _
  // Predicated region
  $region6: #{simsiam_momentum_forward.2} parent=0 // pred_check
    _
  $region7: #{simsiam_momentum_forward.2} parent=0 // pred_check_branch
    %25 = sbr.rel (0) target = $region9
  $region8: #{simsiam_momentum_forward.2} parent=0 // pred_region
    _
  $region9: #{simsiam_momentum_forward.2} parent=0 // pred_fallthru
    _
  // Predicated region
  $region10: #{simsiam_momentum_forward.2} parent=0 // pred_check
    _
  $region11: #{simsiam_momentum_forward.2} parent=0 // pred_check_branch
    %27 = sbr.rel (0) target = $region13
  $region12: #{simsiam_momentum_forward.2} parent=0 // pred_region
    _
  $region13: #{simsiam_momentum_forward.2} parent=0 // pred_fallthru
    _
  // Predicated region
  $region14: #{simsiam_momentum_forward.2} parent=0 // pred_check
    _
  $region15: #{simsiam_momentum_forward.2} parent=0 // pred_check_branch
    %29 = sbr.rel (0) target = $region17
  $region16: #{simsiam_momentum_forward.2} parent=0 // pred_region
    _
  $region17: #{simsiam_momentum_forward.2} parent=0 // pred_fallthru
    _
  // Predicated region
  $region18: #{simsiam_momentum_forward.2} parent=0 // pred_check
    _
  $region19: #{simsiam_momentum_forward.2} parent=0 // pred_check_branch
    %31 = sbr.rel (0) target = $region21
  $region20: #{simsiam_momentum_forward.2} parent=0 // pred_region
    _
  $region21: #{simsiam_momentum_forward.2} parent=0 // pred_fallthru
    _
  // Predicated region
  $region22: #{simsiam_momentum_forward.2} parent=0 // pred_check
    _
  $region23: #{simsiam_momentum_forward.2} parent=0 // pred_check_branch
    %33 = sbr.rel (0) target = $region25
  $region24: #{simsiam_momentum_forward.2} parent=0 // pred_region
    _
  $region25: #{simsiam_momentum_forward.2} parent=0 // pred_fallthru
    _
  // Predicated region
  $region26: #{simsiam_momentum_forward.2} parent=0 // pred_check
    _
  $region27: #{simsiam_momentum_forward.2} parent=0 // pred_check_branch
    %35 = sbr.rel (0) target = $region29
  $region28: #{simsiam_momentum_forward.2} parent=0 // pred_region
    _
  $region29: #{simsiam_momentum_forward.2} parent=0 // pred_fallthru
    _
  // Predicated region
  $region30: #{simsiam_momentum_forward.2} parent=0 // pred_check
    _
  $region31: #{simsiam_momentum_forward.2} parent=0 // pred_check_branch
    %37 = sbr.rel (0) target = $region33
  $region32: #{simsiam_momentum_forward.2} parent=0 // pred_region
    _
  $region33: #{simsiam_momentum_forward.2} parent=0 // pred_fallthru
    _
  // Predicated region
  $region34: #{simsiam_momentum_forward.2} parent=0 // pred_check
    _
  $region35: #{simsiam_momentum_forward.2} parent=0 // pred_check_branch
    %39 = sbr.rel (0) target = $region37
  $region36: #{simsiam_momentum_forward.2} parent=0 // pred_region
    _
  $region37: #{simsiam_momentum_forward.2} parent=0 // pred_fallthru
    _
  // Predicated region
  $region38: #{simsiam_momentum_forward.2} parent=0 // pred_check
    _
  $region39: #{simsiam_momentum_forward.2} parent=0 // pred_check_branch
    %41 = sbr.rel (0) target = $region41
  $region40: #{simsiam_momentum_forward.2} parent=0 // pred_region
    _
  $region41: #{simsiam_momentum_forward.2} parent=0 // pred_fallthru
    _
  // Predicated region
  $region42: #{simsiam_momentum_forward.2} parent=0 // pred_check
    _
  $region43: #{simsiam_momentum_forward.2} parent=0 // pred_check_branch
    %43 = sbr.rel (0) target = $region45
  $region44: #{simsiam_momentum_forward.2} parent=0 // pred_region
    _
  $region45: #{simsiam_momentum_forward.2} parent=0 // pred_fallthru
    _
  // Predicated region
  $region46: #{simsiam_momentum_forward.2} parent=0 // pred_check
    _
  $region47: #{simsiam_momentum_forward.2} parent=0 // pred_check_branch
    %45 = sbr.rel (0) target = $region49
  $region48: #{simsiam_momentum_forward.2} parent=0 // pred_region
    _
  $region49: #{simsiam_momentum_forward.2} parent=0 // pred_fallthru
    _
  // Predicated region
  $region50: #{simsiam_momentum_forward.2} parent=0 // pred_check
    _
  $region51: #{simsiam_momentum_forward.2} parent=0 // pred_check_branch
    %47 = sbr.rel (0) target = $region53
  $region52: #{simsiam_momentum_forward.2} parent=0 // pred_region
    _
  $region53: #{simsiam_momentum_forward.2} parent=0 // pred_fallthru
    _
  // Predicated region
  $region54: #{simsiam_momentum_forward.2} parent=0 // pred_check
    _
  $region55: #{simsiam_momentum_forward.2} parent=0 // pred_check_branch
    %49 = sbr.rel (0) target = $region57
  $region56: #{simsiam_momentum_forward.2} parent=0 // pred_region
    _
  $region57: #{simsiam_momentum_forward.2} parent=0 // pred_fallthru
    _
  // Predicated region
  $region58: #{simsiam_momentum_forward.2} parent=0 // pred_check
    _
  $region59: #{simsiam_momentum_forward.2} parent=0 // pred_check_branch
    %51 = sbr.rel (0) target = $region61
  $region60: #{simsiam_momentum_forward.2} parent=0 // pred_region
    _
  $region61: #{simsiam_momentum_forward.2} parent=0 // pred_fallthru
    _
  // Predicated region
  $region62: #{simsiam_momentum_forward.2} parent=0 // pred_check
    _
  $region63: #{simsiam_momentum_forward.2} parent=0 // pred_check_branch
    %53 = sbr.rel (0) target = $region65
  $region64: #{simsiam_momentum_forward.2} parent=0 // pred_region
    _
  $region65: #{simsiam_momentum_forward.2} parent=0 // pred_fallthru
    _
  // Predicated region
  $region66: #{simsiam_momentum_forward.2} parent=0 // pred_check
    _
  $region67: #{simsiam_momentum_forward.2} parent=0 // pred_check_branch
    %55 = sbr.rel (0) target = $region69
  $region68: #{simsiam_momentum_forward.2} parent=0 // pred_region
    _
  $region69: #{simsiam_momentum_forward.2} parent=0 // pred_fallthru
    _
  %v57 = vld [vmem:[%s1] sm:$0xff]
  %v58 = vld [vmem:[%s1 + $0x8] sm:$0xff]
  %v59 = vld [vmem:[%s1 + $0x10] sm:$0xff]
  %v60 = vld [vmem:[%s1 + $0x18] sm:$0x7]
  %v61 = vld [vmem:[%s2] sm:$0x1]
  %v62 = vld [vmem:[%s3] sm:$0xff]
  %v63 = vld [vmem:[%s4] sm:$0x1]
  %v64 = vld [vmem:[%s5] sm:$0x1]
  %v65 = vld [vmem:[%s6] sm:$0x1]
  %v66 = vld [vmem:[%s7] sm:$0xff]
  %v67 = vld [vmem:[%s7 + $0x8] sm:$0xff]
  %v68 = vld [vmem:[%s7 + $0x10] sm:$0xff]
  %v69 = vld [vmem:[%s7 + $0x18] sm:$0xff]
  %v70 = vld [vmem:[%s8] sm:$0x1]
  %v71 = vld [vmem:[%s9] sm:$0x1]
  %v72 = vld [vmem:[%s10] sm:$0xff]
  %v73 = vld [vmem:[%s10 + $0x8] sm:$0xff]
  %v74 = vld [vmem:[%s10 + $0x10] sm:$0xff]
  %v75 = vld [vmem:[%s10 + $0x18] sm:$0xff]
  %v76 = vld [vmem:[%s11] sm:$0x1]
  %v77 = vld [vmem:[%s12] sm:$0xff]
  %v78 = vld [vmem:[%s12 + $0x8] sm:$0xff]
  %v79 = vld [vmem:[%s12 + $0x10] sm:$0xff]
  %v80 = vld [vmem:[%s12 + $0x18] sm:$0xff]
  %v81 = vld [vmem:[%s12 + $0x20] sm:$0xff]
  %v82 = vld [vmem:[%s12 + $0x28] sm:$0xff]
  %v83 = vld [vmem:[%s12 + $0x30] sm:$0xff]
  %v84 = vld [vmem:[%s12 + $0x38] sm:$0xff]
  %v85 = vld [vmem:[%s13] sm:$0x1]
  %v86 = vld [vmem:[%s14] sm:$0x1]
  %v87 = vld [vmem:[%s15] sm:$0xff]
  %v88 = vld [vmem:[%s15 + $0x8] sm:$0xff]
  %v89 = vld [vmem:[%s15 + $0x10] sm:$0xff]
  %v90 = vld [vmem:[%s15 + $0x18] sm:$0xff]
  %v91 = vld [vmem:[%s16] sm:$0x1]
  %v92 = vld [vmem:[%s0] sm:$0xf]
  %v93 = vld [vmem:[%s0 + $0x4] sm:$0xf]
  %v94 = vld [vmem:[%s0 + $0x8] sm:$0xf]
  %v95 = vld [vmem:[%s0 + $0xc] sm:$0xf]
  %v96 = vld [vmem:[%s0 + $0x10] sm:$0xf]
  %v97 = vld [vmem:[%s0 + $0x14] sm:$0xf]
  %v98 = vld [vmem:[%s0 + $0x18] sm:$0xf]
  %v99 = vld [vmem:[%s0 + $0x1c] sm:$0xf]
  %v100 = vld [vmem:[%s0 + $0x20] sm:$0xf]
  %v101 = vld [vmem:[%s0 + $0x24] sm:$0xf]
  %v102 = vld [vmem:[%s0 + $0x28] sm:$0xf]
  %v103 = vld [vmem:[%s0 + $0x2c] sm:$0xf]
  %v104 = vld [vmem:[%s0 + $0x30] sm:$0xf]
  %v105 = vld [vmem:[%s0 + $0x34] sm:$0xf]
  %v106 = vld [vmem:[%s0 + $0x38] sm:$0xf]
  %v107 = vld [vmem:[%s0 + $0x3c] sm:$0xf]
  %v108 = vld [vmem:[%s0 + $0x40] sm:$0xf]
  %v109 = vld [vmem:[%s0 + $0x44] sm:$0xf]
  %v110 = vld [vmem:[%s0 + $0x48] sm:$0xf]
  %v111 = vld [vmem:[%s0 + $0x4c] sm:$0xf]
  %v112 = vld [vmem:[%s0 + $0x50] sm:$0xf]
  %v113 = vld [vmem:[%s0 + $0x54] sm:$0xf]
  %v114 = vld [vmem:[%s0 + $0x58] sm:$0xf]
  %v115 = vld [vmem:[%s0 + $0x5c] sm:$0xf]
  %v116 = vld [vmem:[%s0 + $0x60] sm:$0xf]
  %v117 = vld [vmem:[%s0 + $0x64] sm:$0xf]
  %v118 = vld [vmem:[%s0 + $0x68] sm:$0xf]
  %v119 = vld [vmem:[%s0 + $0x6c] sm:$0xf]
  %v120 = vld [vmem:[%s0 + $0x70] sm:$0xf]
  %v121 = vld [vmem:[%s0 + $0x74] sm:$0xf]
  %v122 = vld [vmem:[%s0 + $0x78] sm:$0xf]
  %v123 = vld [vmem:[%s0 + $0x7c] sm:$0xf]
  %v124 = vld [vmem:[%s0 + $0x80] sm:$0xf]
  %v125 = vld [vmem:[%s0 + $0x84] sm:$0xf]
  %v126 = vld [vmem:[%s0 + $0x88] sm:$0xf]
  %v127 = vld [vmem:[%s0 + $0x8c] sm:$0xf]
  %v128 = vld [vmem:[%s0 + $0x90] sm:$0xf]
  %v129 = vld [vmem:[%s0 + $0x94] sm:$0xf]
  %v130 = vld [vmem:[%s0 + $0x98] sm:$0xf]
  %v131 = vld [vmem:[%s0 + $0x9c] sm:$0xf]
  %v132 = vld [vmem:[%s0 + $0xa0] sm:$0xf]
  %v133 = vld [vmem:[%s0 + $0xa4] sm:$0xf]
  %v134 = vld [vmem:[%s0 + $0xa8] sm:$0xf]
  %v135 = vld [vmem:[%s0 + $0xac] sm:$0xf]
  %v136 = vld [vmem:[%s0 + $0xb0] sm:$0xf]
  %v137 = vld [vmem:[%s0 + $0xb4] sm:$0xf]
  %v138 = vld [vmem:[%s0 + $0xb8] sm:$0xf]
  %v139 = vld [vmem:[%s0 + $0xbc] sm:$0xf]
  %v140 = vld [vmem:[%s0 + $0xc0] sm:$0xf]
  %v141 = vld [vmem:[%s0 + $0xc4] sm:$0xf]
  %v142 = vld [vmem:[%s0 + $0xc8] sm:$0xf]
  %v143 = vld [vmem:[%s0 + $0xcc] sm:$0xf]
  %v144 = vld [vmem:[%s0 + $0xd0] sm:$0xf]
  %v145 = vld [vmem:[%s0 + $0xd4] sm:$0xf]
  %v146 = vld [vmem:[%s0 + $0xd8] sm:$0xf]
  %v147 = vld [vmem:[%s0 + $0xdc] sm:$0xf]
  %v148 = vld [vmem:[%s0 + $0xe0] sm:$0xf]
  %v149 = vld [vmem:[%s0 + $0xe4] sm:$0xf]
  %v150 = vld [vmem:[%s0 + $0xe8] sm:$0xf]
  %v151 = vld [vmem:[%s0 + $0xec] sm:$0xf]
  %v152 = vld [vmem:[%s0 + $0xf0] sm:$0xf]
  %v153 = vld [vmem:[%s0 + $0xf4] sm:$0xf]
  %v154 = vld [vmem:[%s0 + $0xf8] sm:$0xf]
  %v155 = vld [vmem:[%s0 + $0xfc] sm:$0xf]
  %v156 = vld [vmem:[%s0 + $0x100] sm:$0xf]
  %v157 = vld [vmem:[%s0 + $0x104] sm:$0xf]
  %v158 = vld [vmem:[%s0 + $0x108] sm:$0xf]
  %v159 = vld [vmem:[%s0 + $0x10c] sm:$0xf]
  %v160 = vld [vmem:[%s0 + $0x110] sm:$0xf]
  %v161 = vld [vmem:[%s0 + $0x114] sm:$0xf]
  %v162 = vld [vmem:[%s0 + $0x118] sm:$0xf]
  %v163 = vld [vmem:[%s0 + $0x11c] sm:$0xf]
  %v164 = vld [vmem:[%s0 + $0x120] sm:$0xf]
  %v165 = vld [vmem:[%s0 + $0x124] sm:$0xf]
  %v166 = vld [vmem:[%s0 + $0x128] sm:$0xf]
  %v167 = vld [vmem:[%s0 + $0x12c] sm:$0xf]
  %v168 = vld [vmem:[%s0 + $0x130] sm:$0xf]
  %v169 = vld [vmem:[%s0 + $0x134] sm:$0xf]
  %v170 = vld [vmem:[%s0 + $0x138] sm:$0xf]
  %v171 = vld [vmem:[%s0 + $0x13c] sm:$0xf]
  %v172 = vld [vmem:[%s0 + $0x140] sm:$0xf]
  %v173 = vld [vmem:[%s0 + $0x144] sm:$0xf]
  %v174 = vld [vmem:[%s0 + $0x148] sm:$0xf]
  %v175 = vld [vmem:[%s0 + $0x14c] sm:$0xf]
  %v176 = vld [vmem:[%s0 + $0x150] sm:$0xf]
  %v177 = vld [vmem:[%s0 + $0x154] sm:$0xf]
  %v178 = vld [vmem:[%s0 + $0x158] sm:$0xf]
  %v179 = vld [vmem:[%s0 + $0x15c] sm:$0xf]
  %v180 = vld [vmem:[%s0 + $0x160] sm:$0xf]
  %v181 = vld [vmem:[%s0 + $0x164] sm:$0xf]
  %v182 = vld [vmem:[%s0 + $0x168] sm:$0xf]
  %v183 = vld [vmem:[%s0 + $0x16c] sm:$0xf]
  %v184 = vld [vmem:[%s0 + $0x170] sm:$0xf]
  %v185 = vld [vmem:[%s0 + $0x174] sm:$0xf]
  %v186 = vld [vmem:[%s0 + $0x178] sm:$0xf]
  %v187 = vld [vmem:[%s0 + $0x17c] sm:$0xf]
  %v188 = vld [vmem:[%s0 + $0x180] sm:$0xf]
  %v189 = vld [vmem:[%s0 + $0x184] sm:$0xf]
  %v190 = vld [vmem:[%s0 + $0x188] sm:$0xf]
  %v191 = vld [vmem:[%s0 + $0x18c] sm:$0xf]
  %v192 = vld [vmem:[%s0 + $0x190] sm:$0xf]
  %v193 = vld [vmem:[%s0 + $0x194] sm:$0xf]
  %v194 = vld [vmem:[%s0 + $0x198] sm:$0xf]
  %v195 = vld [vmem:[%s0 + $0x19c] sm:$0xf]
  %v196 = vld [vmem:[%s0 + $0x1a0] sm:$0xf]
  %v197 = vld [vmem:[%s0 + $0x1a4] sm:$0xf]
  %v198 = vld [vmem:[%s0 + $0x1a8] sm:$0xf]
  %v199 = vld [vmem:[%s0 + $0x1ac] sm:$0xf]
  %v200 = vld [vmem:[%s0 + $0x1b0] sm:$0xf]
  %v201 = vld [vmem:[%s0 + $0x1b4] sm:$0xf]
  %v202 = vld [vmem:[%s0 + $0x1b8] sm:$0xf]
  %v203 = vld [vmem:[%s0 + $0x1bc] sm:$0xf]
  %v204 = vld [vmem:[%s0 + $0x1c0] sm:$0xf]
  %v205 = vld [vmem:[%s0 + $0x1c4] sm:$0xf]
  %v206 = vld [vmem:[%s0 + $0x1c8] sm:$0xf]
  %v207 = vld [vmem:[%s0 + $0x1cc] sm:$0xf]
  %v208 = vld [vmem:[%s0 + $0x1d0] sm:$0xf]
  %v209 = vld [vmem:[%s0 + $0x1d4] sm:$0xf]
  %v210 = vld [vmem:[%s0 + $0x1d8] sm:$0xf]
  %v211 = vld [vmem:[%s0 + $0x1dc] sm:$0xf]
  %v212 = vld [vmem:[%s0 + $0x1e0] sm:$0xf]
  %v213 = vld [vmem:[%s0 + $0x1e4] sm:$0xf]
  %v214 = vld [vmem:[%s0 + $0x1e8] sm:$0xf]
  %v215 = vld [vmem:[%s0 + $0x1ec] sm:$0xf]
  %v216 = vld [vmem:[%s0 + $0x1f0] sm:$0xf]
  %v217 = vld [vmem:[%s0 + $0x1f4] sm:$0xf]
  %v218 = vld [vmem:[%s0 + $0x1f8] sm:$0xf]
  %v219 = vld [vmem:[%s0 + $0x1fc] sm:$0xf]
  %v220 = vpack.c.bf16 %v58, %v57
  %v221 = vpack.c.bf16 %v60, %v59
  %v223 = vlaneseq
  %v224 = vshrl.u32 %v223, 7
  %v225 = vsub.s32 0, %v224
  %v226 = vrot.slane %v61, %v225
  %v356 = vunpack.c.l.b16 %v92
  %v357 = vunpack.c.l.b16 %v93
  %v358 = vunpack.c.l.b16 %v94
  %v359 = vunpack.c.l.b16 %v95
  %v360 = vunpack.c.l.b16 %v96
  %v361 = vunpack.c.l.b16 %v97
  %v362 = vunpack.c.l.b16 %v98
  %v363 = vunpack.c.l.b16 %v99
  %v364 = vunpack.c.l.b16 %v100
  %v365 = vunpack.c.l.b16 %v101
  %v366 = vunpack.c.l.b16 %v102
  %v367 = vunpack.c.l.b16 %v103
  %v368 = vunpack.c.l.b16 %v104
  %v369 = vunpack.c.l.b16 %v105
  %v370 = vunpack.c.l.b16 %v106
  %v371 = vunpack.c.l.b16 %v107
  %v372 = vunpack.c.l.b16 %v108
  %v373 = vunpack.c.l.b16 %v109
  %v374 = vunpack.c.l.b16 %v110
  %v375 = vunpack.c.l.b16 %v111
  %v376 = vunpack.c.l.b16 %v112
  %v377 = vunpack.c.l.b16 %v113
  %v378 = vunpack.c.l.b16 %v114
  %v379 = vunpack.c.l.b16 %v115
  %v380 = vunpack.c.l.b16 %v116
  %v381 = vunpack.c.l.b16 %v117
  %v382 = vunpack.c.l.b16 %v118
  %v383 = vunpack.c.l.b16 %v119
  %v384 = vunpack.c.l.b16 %v120
  %v385 = vunpack.c.l.b16 %v121
  %v386 = vunpack.c.l.b16 %v122
  %v387 = vunpack.c.l.b16 %v123
  %v388 = vunpack.c.l.b16 %v124
  %v389 = vunpack.c.l.b16 %v125
  %v390 = vunpack.c.l.b16 %v126
  %v391 = vunpack.c.l.b16 %v127
  %v392 = vunpack.c.l.b16 %v128
  %v393 = vunpack.c.l.b16 %v129
  %v394 = vunpack.c.l.b16 %v130
  %v395 = vunpack.c.l.b16 %v131
  %v396 = vunpack.c.l.b16 %v132
  %v397 = vunpack.c.l.b16 %v133
  %v398 = vunpack.c.l.b16 %v134
  %v399 = vunpack.c.l.b16 %v135
  %v400 = vunpack.c.l.b16 %v136
  %v401 = vunpack.c.l.b16 %v137
  %v402 = vunpack.c.l.b16 %v138
  %v403 = vunpack.c.l.b16 %v139
  %v404 = vunpack.c.l.b16 %v140
  %v405 = vunpack.c.l.b16 %v141
  %v406 = vunpack.c.l.b16 %v142
  %v407 = vunpack.c.l.b16 %v143
  %v408 = vunpack.c.l.b16 %v144
  %v409 = vunpack.c.l.b16 %v145
  %v410 = vunpack.c.l.b16 %v146
  %v411 = vunpack.c.l.b16 %v147
  %v412 = vunpack.c.l.b16 %v148
  %v413 = vunpack.c.l.b16 %v149
  %v414 = vunpack.c.l.b16 %v150
  %v415 = vunpack.c.l.b16 %v151
  %v416 = vunpack.c.l.b16 %v152
  %v417 = vunpack.c.l.b16 %v153
  %v418 = vunpack.c.l.b16 %v154
  %v419 = vunpack.c.l.b16 %v155
  %v420 = vunpack.c.l.b16 %v156
  %v421 = vunpack.c.l.b16 %v157
  %v422 = vunpack.c.l.b16 %v158
  %v423 = vunpack.c.l.b16 %v159
  %v424 = vunpack.c.l.b16 %v160
  %v425 = vunpack.c.l.b16 %v161
  %v426 = vunpack.c.l.b16 %v162
  %v427 = vunpack.c.l.b16 %v163
  %v428 = vunpack.c.l.b16 %v164
  %v429 = vunpack.c.l.b16 %v165
  %v430 = vunpack.c.l.b16 %v166
  %v431 = vunpack.c.l.b16 %v167
  %v432 = vunpack.c.l.b16 %v168
  %v433 = vunpack.c.l.b16 %v169
  %v434 = vunpack.c.l.b16 %v170
  %v435 = vunpack.c.l.b16 %v171
  %v436 = vunpack.c.l.b16 %v172
  %v437 = vunpack.c.l.b16 %v173
  %v438 = vunpack.c.l.b16 %v174
  %v439 = vunpack.c.l.b16 %v175
  %v440 = vunpack.c.l.b16 %v176
  %v441 = vunpack.c.l.b16 %v177
  %v442 = vunpack.c.l.b16 %v178
  %v443 = vunpack.c.l.b16 %v179
  %v444 = vunpack.c.l.b16 %v180
  %v445 = vunpack.c.l.b16 %v181
  %v446 = vunpack.c.l.b16 %v182
  %v447 = vunpack.c.l.b16 %v183
  %v448 = vunpack.c.l.b16 %v184
  %v449 = vunpack.c.l.b16 %v185
  %v450 = vunpack.c.l.b16 %v186
  %v451 = vunpack.c.l.b16 %v187
  %v452 = vunpack.c.l.b16 %v188
  %v453 = vunpack.c.l.b16 %v189
  %v454 = vunpack.c.l.b16 %v190
  %v455 = vunpack.c.l.b16 %v191
  %v456 = vunpack.c.l.b16 %v192
  %v457 = vunpack.c.l.b16 %v193
  %v458 = vunpack.c.l.b16 %v194
  %v459 = vunpack.c.l.b16 %v195
  %v460 = vunpack.c.l.b16 %v196
  %v461 = vunpack.c.l.b16 %v197
  %v462 = vunpack.c.l.b16 %v198
  %v463 = vunpack.c.l.b16 %v199
  %v464 = vunpack.c.l.b16 %v200
  %v465 = vunpack.c.l.b16 %v201
  %v466 = vunpack.c.l.b16 %v202
  %v467 = vunpack.c.l.b16 %v203
  %v468 = vunpack.c.l.b16 %v204
  %v469 = vunpack.c.l.b16 %v205
  %v470 = vunpack.c.l.b16 %v206
  %v471 = vunpack.c.l.b16 %v207
  %v472 = vunpack.c.l.b16 %v208
  %v473 = vunpack.c.l.b16 %v209
  %v474 = vunpack.c.l.b16 %v210
  %v475 = vunpack.c.l.b16 %v211
  %v476 = vunpack.c.l.b16 %v212
  %v477 = vunpack.c.l.b16 %v213
  %v478 = vunpack.c.l.b16 %v214
  %v479 = vunpack.c.l.b16 %v215
  %v480 = vunpack.c.l.b16 %v216
  %v481 = vunpack.c.l.b16 %v217
  %v482 = vunpack.c.l.b16 %v218
  %v483 = vunpack.c.l.b16 %v219
  %v484 = vpack.c.b16 %v357, %v356
  %v485 = vpack.c.b16 %v359, %v358
  %v486 = vpack.c.b16 %v361, %v360
  %v487 = vpack.c.b16 %v363, %v362
  %v488 = vpack.c.b16 %v365, %v364
  %v489 = vpack.c.b16 %v367, %v366
  %v490 = vpack.c.b16 %v369, %v368
  %v491 = vpack.c.b16 %v371, %v370
  %v492 = vpack.c.b16 %v373, %v372
  %v493 = vpack.c.b16 %v375, %v374
  %v494 = vpack.c.b16 %v377, %v376
  %v495 = vpack.c.b16 %v379, %v378
  %v496 = vpack.c.b16 %v381, %v380
  %v497 = vpack.c.b16 %v383, %v382
  %v498 = vpack.c.b16 %v385, %v384
  %v499 = vpack.c.b16 %v387, %v386
  %v500 = vpack.c.b16 %v389, %v388
  %v501 = vpack.c.b16 %v391, %v390
  %v502 = vpack.c.b16 %v393, %v392
  %v503 = vpack.c.b16 %v395, %v394
  %v504 = vpack.c.b16 %v397, %v396
  %v505 = vpack.c.b16 %v399, %v398
  %v506 = vpack.c.b16 %v401, %v400
  %v507 = vpack.c.b16 %v403, %v402
  %v508 = vpack.c.b16 %v405, %v404
  %v509 = vpack.c.b16 %v407, %v406
  %v510 = vpack.c.b16 %v409, %v408
  %v511 = vpack.c.b16 %v411, %v410
  %v512 = vpack.c.b16 %v413, %v412
  %v513 = vpack.c.b16 %v415, %v414
  %v514 = vpack.c.b16 %v417, %v416
  %v515 = vpack.c.b16 %v419, %v418
  %v516 = vpack.c.b16 %v421, %v420
  %v517 = vpack.c.b16 %v423, %v422
  %v518 = vpack.c.b16 %v425, %v424
  %v519 = vpack.c.b16 %v427, %v426
  %v520 = vpack.c.b16 %v429, %v428
  %v521 = vpack.c.b16 %v431, %v430
  %v522 = vpack.c.b16 %v433, %v432
  %v523 = vpack.c.b16 %v435, %v434
  %v524 = vpack.c.b16 %v437, %v436
  %v525 = vpack.c.b16 %v439, %v438
  %v526 = vpack.c.b16 %v441, %v440
  %v527 = vpack.c.b16 %v443, %v442
  %v528 = vpack.c.b16 %v445, %v444
  %v529 = vpack.c.b16 %v447, %v446
  %v530 = vpack.c.b16 %v449, %v448
  %v531 = vpack.c.b16 %v451, %v450
  %v532 = vpack.c.b16 %v453, %v452
  %v533 = vpack.c.b16 %v455, %v454
  %v534 = vpack.c.b16 %v457, %v456
  %v535 = vpack.c.b16 %v459, %v458
  %v536 = vpack.c.b16 %v461, %v460
  %v537 = vpack.c.b16 %v463, %v462
  %v538 = vpack.c.b16 %v465, %v464
  %v539 = vpack.c.b16 %v467, %v466
  %v540 = vpack.c.b16 %v469, %v468
  %v541 = vpack.c.b16 %v471, %v470
  %v542 = vpack.c.b16 %v473, %v472
  %v543 = vpack.c.b16 %v475, %v474
  %v544 = vpack.c.b16 %v477, %v476
  %v545 = vpack.c.b16 %v479, %v478
  %v546 = vpack.c.b16 %v481, %v480
  %v547 = vpack.c.b16 %v483, %v482
  %vm548 = vcmask 220160
  %v550 = vsel %vm548, %v484, 0
  %v553 = vsel %vm548, %v485, 0
  %v556 = vsel %vm548, %v486, 0
  %v559 = vsel %vm548, %v487, 0
  %v562 = vsel %vm548, %v488, 0
  %v565 = vsel %vm548, %v489, 0
  %v568 = vsel %vm548, %v490, 0
  %v571 = vsel %vm548, %v491, 0
  %v574 = vsel %vm548, %v492, 0
  %v577 = vsel %vm548, %v493, 0
  %v580 = vsel %vm548, %v494, 0
  %v583 = vsel %vm548, %v495, 0
  %v586 = vsel %vm548, %v496, 0
  %v589 = vsel %vm548, %v497, 0
  %v592 = vsel %vm548, %v498, 0
  %v595 = vsel %vm548, %v499, 0
  %v598 = vsel %vm548, %v500, 0
  %v601 = vsel %vm548, %v501, 0
  %v604 = vsel %vm548, %v502, 0
  %v607 = vsel %vm548, %v503, 0
  %v610 = vsel %vm548, %v504, 0
  %v613 = vsel %vm548, %v505, 0
  %v616 = vsel %vm548, %v506, 0
  %v619 = vsel %vm548, %v507, 0
  %v622 = vsel %vm548, %v508, 0
  %v625 = vsel %vm548, %v509, 0
  %v628 = vsel %vm548, %v510, 0
  %v631 = vsel %vm548, %v511, 0
  %v634 = vsel %vm548, %v512, 0
  %v637 = vsel %vm548, %v513, 0
  %v640 = vsel %vm548, %v514, 0
  %v643 = vsel %vm548, %v515, 0
  %v646 = vsel %vm548, %v516, 0
  %v649 = vsel %vm548, %v517, 0
  %v652 = vsel %vm548, %v518, 0
  %v655 = vsel %vm548, %v519, 0
  %v658 = vsel %vm548, %v520, 0
  %v661 = vsel %vm548, %v521, 0
  %v664 = vsel %vm548, %v522, 0
  %v667 = vsel %vm548, %v523, 0
  %v670 = vsel %vm548, %v524, 0
  %v673 = vsel %vm548, %v525, 0
  %v676 = vsel %vm548, %v526, 0
  %v679 = vsel %vm548, %v527, 0
  %v682 = vsel %vm548, %v528, 0
  %v685 = vsel %vm548, %v529, 0
  %v688 = vsel %vm548, %v530, 0
  %v691 = vsel %vm548, %v531, 0
  %v694 = vsel %vm548, %v532, 0
  %v697 = vsel %vm548, %v533, 0
  %v700 = vsel %vm548, %v534, 0
  %v703 = vsel %vm548, %v535, 0
  %v706 = vsel %vm548, %v536, 0
  %v709 = vsel %vm548, %v537, 0
  %v712 = vsel %vm548, %v538, 0
  %v715 = vsel %vm548, %v539, 0
  %v718 = vsel %vm548, %v540, 0
  %v721 = vsel %vm548, %v541, 0
  %v724 = vsel %vm548, %v542, 0
  %v727 = vsel %vm548, %v543, 0
  %v730 = vsel %vm548, %v544, 0
  %v733 = vsel %vm548, %v545, 0
  %v736 = vsel %vm548, %v546, 0
  %v739 = vsel %vm548, %v547, 0
  %vm741 = vcmask 1044480
  %vm742 = vcmask 1045504
  %v743 = vsel %vm741, 4294967295, 65535
  %v744 = vsel %vm742, %v743, 0
  %v746 = vand.u32 %v221, %v744
  %748 = vmatprep.subr.bf16.mxu0 0
  %749 = vmatpush1.bf16.msra.mxu0 %v220
  %750 = vmatprep.subr.bf16.mxu0 0
  %751 = vmatpush1.bf16.msra.mxu0 %v746
  %752 = vmatprep.subr.bf16.mxu0 0
  %753 = vmatpush1.bf16.msra.mxu0 0
  %754 = vmatprep.subr.bf16.mxu0 0
  %755 = vmatpush1.bf16.msra.mxu0 0
  %756 = vmatprep.subr.bf16.mxu0 0
  %757 = vmatpush1.bf16.msra.mxu0 0
  %758 = vmatprep.subr.bf16.mxu0 0
  %759 = vmatpush1.bf16.msra.mxu0 0
  %760 = vmatprep.subr.bf16.mxu0 0
  %761 = vmatpush1.bf16.msra.mxu0 0
  %762 = vmatprep.subr.bf16.mxu0 0
  %763 = vmatpush1.bf16.msra.mxu0 0
  %764 = vmatprep.subr.bf16.mxu0 0
  %765 = vmatpush1.bf16.msra.mxu0 0
  %766 = vmatprep.subr.bf16.mxu0 0
  %767 = vmatpush1.bf16.msra.mxu0 0
  %768 = vmatprep.subr.bf16.mxu0 0
  %769 = vmatpush1.bf16.msra.mxu0 0
  %770 = vmatprep.subr.bf16.mxu0 0
  %771 = vmatpush1.bf16.msra.mxu0 0
  %772 = vmatprep.subr.bf16.mxu0 0
  %773 = vmatpush1.bf16.msra.mxu0 0
  %774 = vmatprep.subr.bf16.mxu0 0
  %775 = vmatpush1.bf16.msra.mxu0 0
  %776 = vmatprep.subr.bf16.mxu0 0
  %777 = vmatpush1.bf16.msra.mxu0 0
  %778 = vmatprep.subr.bf16.mxu0 0
  %779 = vmatpush1.bf16.msra.mxu0 0
  %780 = vmatprep.mubr.bf16.mxu0 0
  %781 = vmatmul.mubr.bf16.gmra.mrb[0].mxu0 %v550
  %v782 = vpop.f32.mrb[0].mxu0
  %v783 = vadd.f32 %v226, %v782
  %v784 = vpop.f32.mrb[0].mxu0
  %v785 = vpop.f32.mrb[0].mxu0
  %v786 = vadd.f32 %v226, %v785
  %v787 = vpop.f32.mrb[0].mxu0
  %788 = vmatprep.mubr.bf16.mxu0 0
  %789 = vmatmul.mubr.bf16.gmra.mrb[0].mxu0 %v553
  %v790 = vpop.f32.mrb[0].mxu0
  %v791 = vadd.f32 %v226, %v790
  %v792 = vpop.f32.mrb[0].mxu0
  %v793 = vpop.f32.mrb[0].mxu0
  %v794 = vadd.f32 %v226, %v793
  %v795 = vpop.f32.mrb[0].mxu0
  %796 = vmatprep.mubr.bf16.mxu0 0
  %797 = vmatmul.mubr.bf16.gmra.mrb[0].mxu0 %v556
  %v798 = vpop.f32.mrb[0].mxu0
  %v799 = vadd.f32 %v226, %v798
  %v800 = vpop.f32.mrb[0].mxu0
  %v801 = vpop.f32.mrb[0].mxu0
  %v802 = vadd.f32 %v226, %v801
  %v803 = vpop.f32.mrb[0].mxu0
  %804 = vmatprep.mubr.bf16.mxu0 0
  %805 = vmatmul.mubr.bf16.gmra.mrb[0].mxu0 %v559
  %v806 = vpop.f32.mrb[0].mxu0
  %v807 = vadd.f32 %v226, %v806
  %v808 = vpop.f32.mrb[0].mxu0
  %v809 = vpop.f32.mrb[0].mxu0
  %v810 = vadd.f32 %v226, %v809
  %v811 = vpop.f32.mrb[0].mxu0
  %812 = vmatprep.mubr.bf16.mxu0 0
  %813 = vmatmul.mubr.bf16.gmra.mrb[0].mxu0 %v562
  %v814 = vpop.f32.mrb[0].mxu0
  %v815 = vadd.f32 %v226, %v814
  %v816 = vpop.f32.mrb[0].mxu0
  %v817 = vpop.f32.mrb[0].mxu0
  %v818 = vadd.f32 %v226, %v817
  %v819 = vpop.f32.mrb[0].mxu0
  %820 = vmatprep.mubr.bf16.mxu0 0
  %821 = vmatmul.mubr.bf16.gmra.mrb[0].mxu0 %v565
  %v822 = vpop.f32.mrb[0].mxu0
  %v823 = vadd.f32 %v226, %v822
  %v824 = vpop.f32.mrb[0].mxu0
  %v825 = vpop.f32.mrb[0].mxu0
  %v826 = vadd.f32 %v226, %v825
  %v827 = vpop.f32.mrb[0].mxu0
  %828 = vmatprep.mubr.bf16.mxu0 0
  %829 = vmatmul.mubr.bf16.gmra.mrb[0].mxu0 %v568
  %v830 = vpop.f32.mrb[0].mxu0
  %v831 = vadd.f32 %v226, %v830
  %v832 = vpop.f32.mrb[0].mxu0
  %v833 = vpop.f32.mrb[0].mxu0
  %v834 = vadd.f32 %v226, %v833
  %v835 = vpop.f32.mrb[0].mxu0
  %836 = vmatprep.mubr.bf16.mxu0 0
  %837 = vmatmul.mubr.bf16.gmra.mrb[0].mxu0 %v571
  %v838 = vpop.f32.mrb[0].mxu0
  %v839 = vadd.f32 %v226, %v838
  %v840 = vpop.f32.mrb[0].mxu0
  %v841 = vpop.f32.mrb[0].mxu0
  %v842 = vadd.f32 %v226, %v841
  %v843 = vpop.f32.mrb[0].mxu0
  %844 = vmatprep.mubr.bf16.mxu0 0
  %845 = vmatmul.mubr.bf16.gmra.mrb[0].mxu0 %v574
  %v846 = vpop.f32.mrb[0].mxu0
  %v847 = vadd.f32 %v226, %v846
  %v848 = vpop.f32.mrb[0].mxu0
  %v849 = vpop.f32.mrb[0].mxu0
  %v850 = vadd.f32 %v226, %v849
  %v851 = vpop.f32.mrb[0].mxu0
  %852 = vmatprep.mubr.bf16.mxu0 0
  %853 = vmatmul.mubr.bf16.gmra.mrb[0].mxu0 %v577
  %v854 = vpop.f32.mrb[0].mxu0
  %v855 = vadd.f32 %v226, %v854
  %v856 = vpop.f32.mrb[0].mxu0
  %v857 = vpop.f32.mrb[0].mxu0
  %v858 = vadd.f32 %v226, %v857
  %v859 = vpop.f32.mrb[0].mxu0
  %860 = vmatprep.mubr.bf16.mxu0 0
  %861 = vmatmul.mubr.bf16.gmra.mrb[0].mxu0 %v580
  %v862 = vpop.f32.mrb[0].mxu0
  %v863 = vadd.f32 %v226, %v862
  %v864 = vpop.f32.mrb[0].mxu0
  %v865 = vpop.f32.mrb[0].mxu0
  %v866 = vadd.f32 %v226, %v865
  %v867 = vpop.f32.mrb[0].mxu0
  %868 = vmatprep.mubr.bf16.mxu0 0
  %869 = vmatmul.mubr.bf16.gmra.mrb[0].mxu0 %v583
  %v870 = vpop.f32.mrb[0].mxu0
  %v871 = vadd.f32 %v226, %v870
  %v872 = vpop.f32.mrb[0].mxu0
  %v873 = vpop.f32.mrb[0].mxu0
  %v874 = vadd.f32 %v226, %v873
  %v875 = vpop.f32.mrb[0].mxu0
  %876 = vmatprep.mubr.bf16.mxu0 0
  %877 = vmatmul.mubr.bf16.gmra.mrb[0].mxu0 %v586
  %v878 = vpop.f32.mrb[0].mxu0
  %v879 = vadd.f32 %v226, %v878
  %v880 = vpop.f32.mrb[0].mxu0
  %v881 = vpop.f32.mrb[0].mxu0
  %v882 = vadd.f32 %v226, %v881
  %v883 = vpop.f32.mrb[0].mxu0
  %884 = vmatprep.mubr.bf16.mxu0 0
  %885 = vmatmul.mubr.bf16.gmra.mrb[0].mxu0 %v589
  %v886 = vpop.f32.mrb[0].mxu0
  %v887 = vadd.f32 %v226, %v886
  %v888 = vpop.f32.mrb[0].mxu0
  %v889 = vpop.f32.mrb[0].mxu0
  %v890 = vadd.f32 %v226, %v889
  %v891 = vpop.f32.mrb[0].mxu0
  %892 = vmatprep.mubr.bf16.mxu0 0
  %893 = vmatmul.mubr.bf16.gmra.mrb[0].mxu0 %v592
  %v894 = vpop.f32.mrb[0].mxu0
  %v895 = vadd.f32 %v226, %v894
  %v896 = vpop.f32.mrb[0].mxu0
  %v897 = vpop.f32.mrb[0].mxu0
  %v898 = vadd.f32 %v226, %v897
  %v899 = vpop.f32.mrb[0].mxu0
  %900 = vmatprep.mubr.bf16.mxu0 0
  %901 = vmatmul.mubr.bf16.gmra.mrb[0].mxu0 %v595
  %v902 = vpop.f32.mrb[0].mxu0
  %v903 = vadd.f32 %v226, %v902
  %v904 = vpop.f32.mrb[0].mxu0
  %v905 = vpop.f32.mrb[0].mxu0
  %v906 = vadd.f32 %v226, %v905
  %v907 = vpop.f32.mrb[0].mxu0
  %908 = vmatprep.mubr.bf16.mxu0 0
  %909 = vmatmul.mubr.bf16.gmra.mrb[0].mxu0 %v598
  %v910 = vpop.f32.mrb[0].mxu0
  %v911 = vadd.f32 %v226, %v910
  %v912 = vpop.f32.mrb[0].mxu0
  %v913 = vpop.f32.mrb[0].mxu0
  %v914 = vadd.f32 %v226, %v913
  %v915 = vpop.f32.mrb[0].mxu0
  %916 = vmatprep.mubr.bf16.mxu0 0
  %917 = vmatmul.mubr.bf16.gmra.mrb[0].mxu0 %v601
  %v918 = vpop.f32.mrb[0].mxu0
  %v919 = vadd.f32 %v226, %v918
  %v920 = vpop.f32.mrb[0].mxu0
  %v921 = vpop.f32.mrb[0].mxu0
  %v922 = vadd.f32 %v226, %v921
  %v923 = vpop.f32.mrb[0].mxu0
  %924 = vmatprep.mubr.bf16.mxu0 0
  %925 = vmatmul.mubr.bf16.gmra.mrb[0].mxu0 %v604
  %v926 = vpop.f32.mrb[0].mxu0
  %v927 = vadd.f32 %v226, %v926
  %v928 = vpop.f32.mrb[0].mxu0
  %v929 = vpop.f32.mrb[0].mxu0
  %v930 = vadd.f32 %v226, %v929
  %v931 = vpop.f32.mrb[0].mxu0
  %932 = vmatprep.mubr.bf16.mxu0 0
  %933 = vmatmul.mubr.bf16.gmra.mrb[0].mxu0 %v607
  %v934 = vpop.f32.mrb[0].mxu0
  %v935 = vadd.f32 %v226, %v934
  %v936 = vpop.f32.mrb[0].mxu0
  %v937 = vpop.f32.mrb[0].mxu0
  %v938 = vadd.f32 %v226, %v937
  %v939 = vpop.f32.mrb[0].mxu0
  %940 = vmatprep.mubr.bf16.mxu0 0
  %941 = vmatmul.mubr.bf16.gmra.mrb[0].mxu0 %v610
  %v942 = vpop.f32.mrb[0].mxu0
  %v943 = vadd.f32 %v226, %v942
  %v944 = vpop.f32.mrb[0].mxu0
  %v945 = vpop.f32.mrb[0].mxu0
  %v946 = vadd.f32 %v226, %v945
  %v947 = vpop.f32.mrb[0].mxu0
  %948 = vmatprep.mubr.bf16.mxu0 0
  %949 = vmatmul.mubr.bf16.gmra.mrb[0].mxu0 %v613
  %v950 = vpop.f32.mrb[0].mxu0
  %v951 = vadd.f32 %v226, %v950
  %v952 = vpop.f32.mrb[0].mxu0
  %v953 = vpop.f32.mrb[0].mxu0
  %v954 = vadd.f32 %v226, %v953
  %v955 = vpop.f32.mrb[0].mxu0
  %956 = vmatprep.mubr.bf16.mxu0 0
  %957 = vmatmul.mubr.bf16.gmra.mrb[0].mxu0 %v616
  %v958 = vpop.f32.mrb[0].mxu0
  %v959 = vadd.f32 %v226, %v958
  %v960 = vpop.f32.mrb[0].mxu0
  %v961 = vpop.f32.mrb[0].mxu0
  %v962 = vadd.f32 %v226, %v961
  %v963 = vpop.f32.mrb[0].mxu0
  %964 = vmatprep.mubr.bf16.mxu0 0
  %965 = vmatmul.mubr.bf16.gmra.mrb[0].mxu0 %v619
  %v966 = vpop.f32.mrb[0].mxu0
  %v967 = vadd.f32 %v226, %v966
  %v968 = vpop.f32.mrb[0].mxu0
  %v969 = vpop.f32.mrb[0].mxu0
  %v970 = vadd.f32 %v226, %v969
  %v971 = vpop.f32.mrb[0].mxu0
  %972 = vmatprep.mubr.bf16.mxu0 0
  %973 = vmatmul.mubr.bf16.gmra.mrb[0].mxu0 %v622
  %v974 = vpop.f32.mrb[0].mxu0
  %v975 = vadd.f32 %v226, %v974
  %v976 = vpop.f32.mrb[0].mxu0
  %v977 = vpop.f32.mrb[0].mxu0
  %v978 = vadd.f32 %v226, %v977
  %v979 = vpop.f32.mrb[0].mxu0
  %980 = vmatprep.mubr.bf16.mxu0 0
  %981 = vmatmul.mubr.bf16.gmra.mrb[0].mxu0 %v625
  %v982 = vpop.f32.mrb[0].mxu0
  %v983 = vadd.f32 %v226, %v982
  %v984 = vpop.f32.mrb[0].mxu0
  %v985 = vpop.f32.mrb[0].mxu0
  %v986 = vadd.f32 %v226, %v985
  %v987 = vpop.f32.mrb[0].mxu0
  %988 = vmatprep.mubr.bf16.mxu0 0
  %989 = vmatmul.mubr.bf16.gmra.mrb[0].mxu0 %v628
  %v990 = vpop.f32.mrb[0].mxu0
  %v991 = vadd.f32 %v226, %v990
  %v992 = vpop.f32.mrb[0].mxu0
  %v993 = vpop.f32.mrb[0].mxu0
  %v994 = vadd.f32 %v226, %v993
  %v995 = vpop.f32.mrb[0].mxu0
  %996 = vmatprep.mubr.bf16.mxu0 0
  %997 = vmatmul.mubr.bf16.gmra.mrb[0].mxu0 %v631
  %v998 = vpop.f32.mrb[0].mxu0
  %v999 = vadd.f32 %v226, %v998
  %v1000 = vpop.f32.mrb[0].mxu0
  %v1001 = vpop.f32.mrb[0].mxu0
  %v1002 = vadd.f32 %v226, %v1001
  %v1003 = vpop.f32.mrb[0].mxu0
  %1004 = vmatprep.mubr.bf16.mxu0 0
  %1005 = vmatmul.mubr.bf16.gmra.mrb[0].mxu0 %v634
  %v1006 = vpop.f32.mrb[0].mxu0
  %v1007 = vadd.f32 %v226, %v1006
  %v1008 = vpop.f32.mrb[0].mxu0
  %v1009 = vpop.f32.mrb[0].mxu0
  %v1010 = vadd.f32 %v226, %v1009
  %v1011 = vpop.f32.mrb[0].mxu0
  %1012 = vmatprep.mubr.bf16.mxu0 0
  %1013 = vmatmul.mubr.bf16.gmra.mrb[0].mxu0 %v637
  %v1014 = vpop.f32.mrb[0].mxu0
  %v1015 = vadd.f32 %v226, %v1014
  %v1016 = vpop.f32.mrb[0].mxu0
  %v1017 = vpop.f32.mrb[0].mxu0
  %v1018 = vadd.f32 %v226, %v1017
  %v1019 = vpop.f32.mrb[0].mxu0
  %1020 = vmatprep.mubr.bf16.mxu0 0
  %1021 = vmatmul.mubr.bf16.gmra.mrb[0].mxu0 %v640
  %v1022 = vpop.f32.mrb[0].mxu0
  %v1023 = vadd.f32 %v226, %v1022
  %v1024 = vpop.f32.mrb[0].mxu0
  %v1025 = vpop.f32.mrb[0].mxu0
  %v1026 = vadd.f32 %v226, %v1025
  %v1027 = vpop.f32.mrb[0].mxu0
  %1028 = vmatprep.mubr.bf16.mxu0 0
  %1029 = vmatmul.mubr.bf16.gmra.mrb[0].mxu0 %v643
  %v1030 = vpop.f32.mrb[0].mxu0
  %v1031 = vadd.f32 %v226, %v1030
  %v1032 = vpop.f32.mrb[0].mxu0
  %v1033 = vpop.f32.mrb[0].mxu0
  %v1034 = vadd.f32 %v226, %v1033
  %v1035 = vpop.f32.mrb[0].mxu0
  %1036 = vmatprep.mubr.bf16.mxu0 0
  %1037 = vmatmul.mubr.bf16.gmra.mrb[0].mxu0 %v646
  %v1038 = vpop.f32.mrb[0].mxu0
  %v1039 = vadd.f32 %v226, %v1038
  %v1040 = vpop.f32.mrb[0].mxu0
  %v1041 = vpop.f32.mrb[0].mxu0
  %v1042 = vadd.f32 %v226, %v1041
  %v1043 = vpop.f32.mrb[0].mxu0
  %1044 = vmatprep.mubr.bf16.mxu0 0
  %1045 = vmatmul.mubr.bf16.gmra.mrb[0].mxu0 %v649
  %v1046 = vpop.f32.mrb[0].mxu0
  %v1047 = vadd.f32 %v226, %v1046
  %v1048 = vpop.f32.mrb[0].mxu0
  %v1049 = vpop.f32.mrb[0].mxu0
  %v1050 = vadd.f32 %v226, %v1049
  %v1051 = vpop.f32.mrb[0].mxu0
  %1052 = vmatprep.mubr.bf16.mxu0 0
  %1053 = vmatmul.mubr.bf16.gmra.mrb[0].mxu0 %v652
  %v1054 = vpop.f32.mrb[0].mxu0
  %v1055 = vadd.f32 %v226, %v1054
  %v1056 = vpop.f32.mrb[0].mxu0
  %v1057 = vpop.f32.mrb[0].mxu0
  %v1058 = vadd.f32 %v226, %v1057
  %v1059 = vpop.f32.mrb[0].mxu0
  %1060 = vmatprep.mubr.bf16.mxu0 0
  %1061 = vmatmul.mubr.bf16.gmra.mrb[0].mxu0 %v655
  %v1062 = vpop.f32.mrb[0].mxu0
  %v1063 = vadd.f32 %v226, %v1062
  %v1064 = vpop.f32.mrb[0].mxu0
  %v1065 = vpop.f32.mrb[0].mxu0
  %v1066 = vadd.f32 %v226, %v1065
  %v1067 = vpop.f32.mrb[0].mxu0
  %1068 = vmatprep.mubr.bf16.mxu0 0
  %1069 = vmatmul.mubr.bf16.gmra.mrb[0].mxu0 %v658
  %v1070 = vpop.f32.mrb[0].mxu0
  %v1071 = vadd.f32 %v226, %v1070
  %v1072 = vpop.f32.mrb[0].mxu0
  %v1073 = vpop.f32.mrb[0].mxu0
  %v1074 = vadd.f32 %v226, %v1073
  %v1075 = vpop.f32.mrb[0].mxu0
  %1076 = vmatprep.mubr.bf16.mxu0 0
  %1077 = vmatmul.mubr.bf16.gmra.mrb[0].mxu0 %v661
  %v1078 = vpop.f32.mrb[0].mxu0
  %v1079 = vadd.f32 %v226, %v1078
  %v1080 = vpop.f32.mrb[0].mxu0
  %v1081 = vpop.f32.mrb[0].mxu0
  %v1082 = vadd.f32 %v226, %v1081
  %v1083 = vpop.f32.mrb[0].mxu0
  %1084 = vmatprep.mubr.bf16.mxu0 0
  %1085 = vmatmul.mubr.bf16.gmra.mrb[0].mxu0 %v664
  %v1086 = vpop.f32.mrb[0].mxu0
  %v1087 = vadd.f32 %v226, %v1086
  %v1088 = vpop.f32.mrb[0].mxu0
  %v1089 = vpop.f32.mrb[0].mxu0
  %v1090 = vadd.f32 %v226, %v1089
  %v1091 = vpop.f32.mrb[0].mxu0
  %1092 = vmatprep.mubr.bf16.mxu0 0
  %1093 = vmatmul.mubr.bf16.gmra.mrb[0].mxu0 %v667
  %v1094 = vpop.f32.mrb[0].mxu0
  %v1095 = vadd.f32 %v226, %v1094
  %v1096 = vpop.f32.mrb[0].mxu0
  %v1097 = vpop.f32.mrb[0].mxu0
  %v1098 = vadd.f32 %v226, %v1097
  %v1099 = vpop.f32.mrb[0].mxu0
  %1100 = vmatprep.mubr.bf16.mxu0 0
  %1101 = vmatmul.mubr.bf16.gmra.mrb[0].mxu0 %v670
  %v1102 = vpop.f32.mrb[0].mxu0
  %v1103 = vadd.f32 %v226, %v1102
  %v1104 = vpop.f32.mrb[0].mxu0
  %v1105 = vpop.f32.mrb[0].mxu0
  %v1106 = vadd.f32 %v226, %v1105
  %v1107 = vpop.f32.mrb[0].mxu0
  %1108 = vmatprep.mubr.bf16.mxu0 0
  %1109 = vmatmul.mubr.bf16.gmra.mrb[0].mxu0 %v673
  %v1110 = vpop.f32.mrb[0].mxu0
  %v1111 = vadd.f32 %v226, %v1110
  %v1112 = vpop.f32.mrb[0].mxu0
  %v1113 = vpop.f32.mrb[0].mxu0
  %v1114 = vadd.f32 %v226, %v1113
  %v1115 = vpop.f32.mrb[0].mxu0
  %1116 = vmatprep.mubr.bf16.mxu0 0
  %1117 = vmatmul.mubr.bf16.gmra.mrb[0].mxu0 %v676
  %v1118 = vpop.f32.mrb[0].mxu0
  %v1119 = vadd.f32 %v226, %v1118
  %v1120 = vpop.f32.mrb[0].mxu0
  %v1121 = vpop.f32.mrb[0].mxu0
  %v1122 = vadd.f32 %v226, %v1121
  %v1123 = vpop.f32.mrb[0].mxu0
  %1124 = vmatprep.mubr.bf16.mxu0 0
  %1125 = vmatmul.mubr.bf16.gmra.mrb[0].mxu0 %v679
  %v1126 = vpop.f32.mrb[0].mxu0
  %v1127 = vadd.f32 %v226, %v1126
  %v1128 = vpop.f32.mrb[0].mxu0
  %v1129 = vpop.f32.mrb[0].mxu0
  %v1130 = vadd.f32 %v226, %v1129
  %v1131 = vpop.f32.mrb[0].mxu0
  %1132 = vmatprep.mubr.bf16.mxu0 0
  %1133 = vmatmul.mubr.bf16.gmra.mrb[0].mxu0 %v682
  %v1134 = vpop.f32.mrb[0].mxu0
  %v1135 = vadd.f32 %v226, %v1134
  %v1136 = vpop.f32.mrb[0].mxu0
  %v1137 = vpop.f32.mrb[0].mxu0
  %v1138 = vadd.f32 %v226, %v1137
  %v1139 = vpop.f32.mrb[0].mxu0
  %1140 = vmatprep.mubr.bf16.mxu0 0
  %1141 = vmatmul.mubr.bf16.gmra.mrb[0].mxu0 %v685
  %v1142 = vpop.f32.mrb[0].mxu0
  %v1143 = vadd.f32 %v226, %v1142
  %v1144 = vpop.f32.mrb[0].mxu0
  %v1145 = vpop.f32.mrb[0].mxu0
  %v1146 = vadd.f32 %v226, %v1145
  %v1147 = vpop.f32.mrb[0].mxu0
  %1148 = vmatprep.mubr.bf16.mxu0 0
  %1149 = vmatmul.mubr.bf16.gmra.mrb[0].mxu0 %v688
  %v1150 = vpop.f32.mrb[0].mxu0
  %v1151 = vadd.f32 %v226, %v1150
  %v1152 = vpop.f32.mrb[0].mxu0
  %v1153 = vpop.f32.mrb[0].mxu0
  %v1154 = vadd.f32 %v226, %v1153
  %v1155 = vpop.f32.mrb[0].mxu0
  %1156 = vmatprep.mubr.bf16.mxu0 0
  %1157 = vmatmul.mubr.bf16.gmra.mrb[0].mxu0 %v691
  %v1158 = vpop.f32.mrb[0].mxu0
  %v1159 = vadd.f32 %v226, %v1158
  %v1160 = vpop.f32.mrb[0].mxu0
  %v1161 = vpop.f32.mrb[0].mxu0
  %v1162 = vadd.f32 %v226, %v1161
  %v1163 = vpop.f32.mrb[0].mxu0
  %1164 = vmatprep.mubr.bf16.mxu0 0
  %1165 = vmatmul.mubr.bf16.gmra.mrb[0].mxu0 %v694
  %v1166 = vpop.f32.mrb[0].mxu0
  %v1167 = vadd.f32 %v226, %v1166
  %v1168 = vpop.f32.mrb[0].mxu0
  %v1169 = vpop.f32.mrb[0].mxu0
  %v1170 = vadd.f32 %v226, %v1169
  %v1171 = vpop.f32.mrb[0].mxu0
  %1172 = vmatprep.mubr.bf16.mxu0 0
  %1173 = vmatmul.mubr.bf16.gmra.mrb[0].mxu0 %v697
  %v1174 = vpop.f32.mrb[0].mxu0
  %v1175 = vadd.f32 %v226, %v1174
  %v1176 = vpop.f32.mrb[0].mxu0
  %v1177 = vpop.f32.mrb[0].mxu0
  %v1178 = vadd.f32 %v226, %v1177
  %v1179 = vpop.f32.mrb[0].mxu0
  %1180 = vmatprep.mubr.bf16.mxu0 0
  %1181 = vmatmul.mubr.bf16.gmra.mrb[0].mxu0 %v700
  %v1182 = vpop.f32.mrb[0].mxu0
  %v1183 = vadd.f32 %v226, %v1182
  %v1184 = vpop.f32.mrb[0].mxu0
  %v1185 = vpop.f32.mrb[0].mxu0
  %v1186 = vadd.f32 %v226, %v1185
  %v1187 = vpop.f32.mrb[0].mxu0
  %1188 = vmatprep.mubr.bf16.mxu0 0
  %1189 = vmatmul.mubr.bf16.gmra.mrb[0].mxu0 %v703
  %v1190 = vpop.f32.mrb[0].mxu0
  %v1191 = vadd.f32 %v226, %v1190
  %v1192 = vpop.f32.mrb[0].mxu0
  %v1193 = vpop.f32.mrb[0].mxu0
  %v1194 = vadd.f32 %v226, %v1193
  %v1195 = vpop.f32.mrb[0].mxu0
  %1196 = vmatprep.mubr.bf16.mxu0 0
  %1197 = vmatmul.mubr.bf16.gmra.mrb[0].mxu0 %v706
  %v1198 = vpop.f32.mrb[0].mxu0
  %v1199 = vadd.f32 %v226, %v1198
  %v1200 = vpop.f32.mrb[0].mxu0
  %v1201 = vpop.f32.mrb[0].mxu0
  %v1202 = vadd.f32 %v226, %v1201
  %v1203 = vpop.f32.mrb[0].mxu0
  %1204 = vmatprep.mubr.bf16.mxu0 0
  %1205 = vmatmul.mubr.bf16.gmra.mrb[0].mxu0 %v709
  %v1206 = vpop.f32.mrb[0].mxu0
  %v1207 = vadd.f32 %v226, %v1206
  %v1208 = vpop.f32.mrb[0].mxu0
  %v1209 = vpop.f32.mrb[0].mxu0
  %v1210 = vadd.f32 %v226, %v1209
  %v1211 = vpop.f32.mrb[0].mxu0
  %1212 = vmatprep.mubr.bf16.mxu0 0
  %1213 = vmatmul.mubr.bf16.gmra.mrb[0].mxu0 %v712
  %v1214 = vpop.f32.mrb[0].mxu0
  %v1215 = vadd.f32 %v226, %v1214
  %v1216 = vpop.f32.mrb[0].mxu0
  %v1217 = vpop.f32.mrb[0].mxu0
  %v1218 = vadd.f32 %v226, %v1217
  %v1219 = vpop.f32.mrb[0].mxu0
  %1220 = vmatprep.mubr.bf16.mxu0 0
  %1221 = vmatmul.mubr.bf16.gmra.mrb[0].mxu0 %v715
  %v1222 = vpop.f32.mrb[0].mxu0
  %v1223 = vadd.f32 %v226, %v1222
  %v1224 = vpop.f32.mrb[0].mxu0
  %v1225 = vpop.f32.mrb[0].mxu0
  %v1226 = vadd.f32 %v226, %v1225
  %v1227 = vpop.f32.mrb[0].mxu0
  %1228 = vmatprep.mubr.bf16.mxu0 0
  %1229 = vmatmul.mubr.bf16.gmra.mrb[0].mxu0 %v718
  %v1230 = vpop.f32.mrb[0].mxu0
  %v1231 = vadd.f32 %v226, %v1230
  %v1232 = vpop.f32.mrb[0].mxu0
  %v1233 = vpop.f32.mrb[0].mxu0
  %v1234 = vadd.f32 %v226, %v1233
  %v1235 = vpop.f32.mrb[0].mxu0
  %1236 = vmatprep.mubr.bf16.mxu0 0
  %1237 = vmatmul.mubr.bf16.gmra.mrb[0].mxu0 %v721
  %v1238 = vpop.f32.mrb[0].mxu0
  %v1239 = vadd.f32 %v226, %v1238
  %v1240 = vpop.f32.mrb[0].mxu0
  %v1241 = vpop.f32.mrb[0].mxu0
  %v1242 = vadd.f32 %v226, %v1241
  %v1243 = vpop.f32.mrb[0].mxu0
  %1244 = vmatprep.mubr.bf16.mxu0 0
  %1245 = vmatmul.mubr.bf16.gmra.mrb[0].mxu0 %v724
  %v1246 = vpop.f32.mrb[0].mxu0
  %v1247 = vadd.f32 %v226, %v1246
  %v1248 = vpop.f32.mrb[0].mxu0
  %v1249 = vpop.f32.mrb[0].mxu0
  %v1250 = vadd.f32 %v226, %v1249
  %v1251 = vpop.f32.mrb[0].mxu0
  %1252 = vmatprep.mubr.bf16.mxu0 0
  %1253 = vmatmul.mubr.bf16.gmra.mrb[0].mxu0 %v727
  %v1254 = vpop.f32.mrb[0].mxu0
  %v1255 = vadd.f32 %v226, %v1254
  %v1256 = vpop.f32.mrb[0].mxu0
  %v1257 = vpop.f32.mrb[0].mxu0
  %v1258 = vadd.f32 %v226, %v1257
  %v1259 = vpop.f32.mrb[0].mxu0
  %1260 = vmatprep.mubr.bf16.mxu0 0
  %1261 = vmatmul.mubr.bf16.gmra.mrb[0].mxu0 %v730
  %v1262 = vpop.f32.mrb[0].mxu0
  %v1263 = vadd.f32 %v226, %v1262
  %v1264 = vpop.f32.mrb[0].mxu0
  %v1265 = vpop.f32.mrb[0].mxu0
  %v1266 = vadd.f32 %v226, %v1265
  %v1267 = vpop.f32.mrb[0].mxu0
  %1268 = vmatprep.mubr.bf16.mxu0 0
  %1269 = vmatmul.mubr.bf16.gmra.mrb[0].mxu0 %v733
  %v1270 = vpop.f32.mrb[0].mxu0
  %v1271 = vadd.f32 %v226, %v1270
  %v1272 = vpop.f32.mrb[0].mxu0
  %v1273 = vpop.f32.mrb[0].mxu0
  %v1274 = vadd.f32 %v226, %v1273
  %v1275 = vpop.f32.mrb[0].mxu0
  %1276 = vmatprep.mubr.bf16.mxu0 0
  %1277 = vmatmul.mubr.bf16.gmra.mrb[0].mxu0 %v736
  %v1278 = vpop.f32.mrb[0].mxu0
  %v1279 = vadd.f32 %v226, %v1278
  %v1280 = vpop.f32.mrb[0].mxu0
  %v1281 = vpop.f32.mrb[0].mxu0
  %v1282 = vadd.f32 %v226, %v1281
  %v1283 = vpop.f32.mrb[0].mxu0
  %1284 = vmatprep.mubr.bf16.mxu0 0
  %1285 = vmatmul.mubr.bf16.gmra.mrb[0].mxu0 %v739
  %v1286 = vpop.f32.mrb[0].mxu0
  %v1287 = vadd.f32 %v226, %v1286
  %v1288 = vpop.f32.mrb[0].mxu0
  %v1289 = vpop.f32.mrb[0].mxu0
  %v1290 = vadd.f32 %v226, %v1289
  %v1291 = vpop.f32.mrb[0].mxu0
  %1292 = vdwg.mxu0
  %v1293 = vmax.f32 %v783, 0.0
  %v1294 = vmax.f32 %v786, 0.0
  %v1295 = vmax.f32 %v791, 0.0
  %v1296 = vmax.f32 %v794, 0.0
  %v1297 = vmax.f32 %v799, 0.0
  %v1298 = vmax.f32 %v802, 0.0
  %v1299 = vmax.f32 %v807, 0.0
  %v1300 = vmax.f32 %v810, 0.0
  %v1301 = vmax.f32 %v815, 0.0
  %v1302 = vmax.f32 %v818, 0.0
  %v1303 = vmax.f32 %v823, 0.0
  %v1304 = vmax.f32 %v826, 0.0
  %v1305 = vmax.f32 %v831, 0.0
  %v1306 = vmax.f32 %v834, 0.0
  %v1307 = vmax.f32 %v839, 0.0
  %v1308 = vmax.f32 %v842, 0.0
  %v1309 = vmax.f32 %v847, 0.0
  %v1310 = vmax.f32 %v850, 0.0
  %v1311 = vmax.f32 %v855, 0.0
  %v1312 = vmax.f32 %v858, 0.0
  %v1313 = vmax.f32 %v863, 0.0
  %v1314 = vmax.f32 %v866, 0.0
  %v1315 = vmax.f32 %v871, 0.0
  %v1316 = vmax.f32 %v874, 0.0
  %v1317 = vmax.f32 %v879, 0.0
  %v1318 = vmax.f32 %v882, 0.0
  %v1319 = vmax.f32 %v887, 0.0
  %v1320 = vmax.f32 %v890, 0.0
  %v1321 = vmax.f32 %v895, 0.0
  %v1322 = vmax.f32 %v898, 0.0
  %v1323 = vmax.f32 %v903, 0.0
  %v1324 = vmax.f32 %v906, 0.0
  %v1325 = vmax.f32 %v911, 0.0
  %v1326 = vmax.f32 %v914, 0.0
  %v1327 = vmax.f32 %v919, 0.0
  %v1328 = vmax.f32 %v922, 0.0
  %v1329 = vmax.f32 %v927, 0.0
  %v1330 = vmax.f32 %v930, 0.0
  %v1331 = vmax.f32 %v935, 0.0
  %v1332 = vmax.f32 %v938, 0.0
  %v1333 = vmax.f32 %v943, 0.0
  %v1334 = vmax.f32 %v946, 0.0
  %v1335 = vmax.f32 %v951, 0.0
  %v1336 = vmax.f32 %v954, 0.0
  %v1337 = vmax.f32 %v959, 0.0
  %v1338 = vmax.f32 %v962, 0.0
  %v1339 = vmax.f32 %v967, 0.0
  %v1340 = vmax.f32 %v970, 0.0
  %v1341 = vmax.f32 %v975, 0.0
  %v1342 = vmax.f32 %v978, 0.0
  %v1343 = vmax.f32 %v983, 0.0
  %v1344 = vmax.f32 %v986, 0.0
  %v1345 = vmax.f32 %v991, 0.0
  %v1346 = vmax.f32 %v994, 0.0
  %v1347 = vmax.f32 %v999, 0.0
  %v1348 = vmax.f32 %v1002, 0.0
  %v1349 = vmax.f32 %v1007, 0.0
  %v1350 = vmax.f32 %v1010, 0.0
  %v1351 = vmax.f32 %v1015, 0.0
  %v1352 = vmax.f32 %v1018, 0.0
  %v1353 = vmax.f32 %v1023, 0.0
  %v1354 = vmax.f32 %v1026, 0.0
  %v1355 = vmax.f32 %v1031, 0.0
  %v1356 = vmax.f32 %v1034, 0.0
  %v1357 = vmax.f32 %v1039, 0.0
  %v1358 = vmax.f32 %v1042, 0.0
  %v1359 = vmax.f32 %v1047, 0.0
  %v1360 = vmax.f32 %v1050, 0.0
  %v1361 = vmax.f32 %v1055, 0.0
  %v1362 = vmax.f32 %v1058, 0.0
  %v1363 = vmax.f32 %v1063, 0.0
  %v1364 = vmax.f32 %v1066, 0.0
  %v1365 = vmax.f32 %v1071, 0.0
  %v1366 = vmax.f32 %v1074, 0.0
  %v1367 = vmax.f32 %v1079, 0.0
  %v1368 = vmax.f32 %v1082, 0.0
  %v1369 = vmax.f32 %v1087, 0.0
  %v1370 = vmax.f32 %v1090, 0.0
  %v1371 = vmax.f32 %v1095, 0.0
  %v1372 = vmax.f32 %v1098, 0.0
  %v1373 = vmax.f32 %v1103, 0.0
  %v1374 = vmax.f32 %v1106, 0.0
  %v1375 = vmax.f32 %v1111, 0.0
  %v1376 = vmax.f32 %v1114, 0.0
  %v1377 = vmax.f32 %v1119, 0.0
  %v1378 = vmax.f32 %v1122, 0.0
  %v1379 = vmax.f32 %v1127, 0.0
  %v1380 = vmax.f32 %v1130, 0.0
  %v1381 = vmax.f32 %v1135, 0.0
  %v1382 = vmax.f32 %v1138, 0.0
  %v1383 = vmax.f32 %v1143, 0.0
  %v1384 = vmax.f32 %v1146, 0.0
  %v1385 = vmax.f32 %v1151, 0.0
  %v1386 = vmax.f32 %v1154, 0.0
  %v1387 = vmax.f32 %v1159, 0.0
  %v1388 = vmax.f32 %v1162, 0.0
  %v1389 = vmax.f32 %v1167, 0.0
  %v1390 = vmax.f32 %v1170, 0.0
  %v1391 = vmax.f32 %v1175, 0.0
  %v1392 = vmax.f32 %v1178, 0.0
  %v1393 = vmax.f32 %v1183, 0.0
  %v1394 = vmax.f32 %v1186, 0.0
  %v1395 = vmax.f32 %v1191, 0.0
  %v1396 = vmax.f32 %v1194, 0.0
  %v1397 = vmax.f32 %v1199, 0.0
  %v1398 = vmax.f32 %v1202, 0.0
  %v1399 = vmax.f32 %v1207, 0.0
  %v1400 = vmax.f32 %v1210, 0.0
  %v1401 = vmax.f32 %v1215, 0.0
  %v1402 = vmax.f32 %v1218, 0.0
  %v1403 = vmax.f32 %v1223, 0.0
  %v1404 = vmax.f32 %v1226, 0.0
  %v1405 = vmax.f32 %v1231, 0.0
  %v1406 = vmax.f32 %v1234, 0.0
  %v1407 = vmax.f32 %v1239, 0.0
  %v1408 = vmax.f32 %v1242, 0.0
  %v1409 = vmax.f32 %v1247, 0.0
  %v1410 = vmax.f32 %v1250, 0.0
  %v1411 = vmax.f32 %v1255, 0.0
  %v1412 = vmax.f32 %v1258, 0.0
  %v1413 = vmax.f32 %v1263, 0.0
  %v1414 = vmax.f32 %v1266, 0.0
  %v1415 = vmax.f32 %v1271, 0.0
  %v1416 = vmax.f32 %v1274, 0.0
  %v1417 = vmax.f32 %v1279, 0.0
  %v1418 = vmax.f32 %v1282, 0.0
  %v1419 = vmax.f32 %v1287, 0.0
  %v1420 = vmax.f32 %v1290, 0.0
  %vm1421 = vcmask 64512
  %v1422 = vsel %vm1421, %v1293, 0.0
  %v1423 = vsel %vm1421, %v1294, 0.0
  %v1424 = vadd.f32 %v1422, %v1423
  %v1425 = vsel %vm1421, %v1295, 0.0
  %v1426 = vadd.f32 %v1424, %v1425
  %v1427 = vsel %vm1421, %v1296, 0.0
  %v1428 = vadd.f32 %v1426, %v1427
  %v1429 = vsel %vm1421, %v1297, 0.0
  %v1430 = vadd.f32 %v1428, %v1429
  %v1431 = vsel %vm1421, %v1298, 0.0
  %v1432 = vadd.f32 %v1430, %v1431
  %v1433 = vsel %vm1421, %v1299, 0.0
  %v1434 = vadd.f32 %v1432, %v1433
  %v1435 = vsel %vm1421, %v1300, 0.0
  %v1436 = vadd.f32 %v1434, %v1435
  %v1437 = vsel %vm1421, %v1301, 0.0
  %v1438 = vadd.f32 %v1436, %v1437
  %v1439 = vsel %vm1421, %v1302, 0.0
  %v1440 = vadd.f32 %v1438, %v1439
  %v1441 = vsel %vm1421, %v1303, 0.0
  %v1442 = vadd.f32 %v1440, %v1441
  %v1443 = vsel %vm1421, %v1304, 0.0
  %v1444 = vadd.f32 %v1442, %v1443
  %v1445 = vsel %vm1421, %v1305, 0.0
  %v1446 = vadd.f32 %v1444, %v1445
  %v1447 = vsel %vm1421, %v1306, 0.0
  %v1448 = vadd.f32 %v1446, %v1447
  %v1449 = vsel %vm1421, %v1307, 0.0
  %v1450 = vadd.f32 %v1448, %v1449
  %v1451 = vsel %vm1421, %v1308, 0.0
  %v1452 = vadd.f32 %v1450, %v1451
  %v1453 = vsel %vm1421, %v1309, 0.0
  %v1454 = vadd.f32 %v1452, %v1453
  %v1455 = vsel %vm1421, %v1310, 0.0
  %v1456 = vadd.f32 %v1454, %v1455
  %v1457 = vsel %vm1421, %v1311, 0.0
  %v1458 = vadd.f32 %v1456, %v1457
  %v1459 = vsel %vm1421, %v1312, 0.0
  %v1460 = vadd.f32 %v1458, %v1459
  %v1461 = vsel %vm1421, %v1313, 0.0
  %v1462 = vadd.f32 %v1460, %v1461
  %v1463 = vsel %vm1421, %v1314, 0.0
  %v1464 = vadd.f32 %v1462, %v1463
  %v1465 = vsel %vm1421, %v1315, 0.0
  %v1466 = vadd.f32 %v1464, %v1465
  %v1467 = vsel %vm1421, %v1316, 0.0
  %v1468 = vadd.f32 %v1466, %v1467
  %v1469 = vsel %vm1421, %v1317, 0.0
  %v1470 = vadd.f32 %v1468, %v1469
  %v1471 = vsel %vm1421, %v1318, 0.0
  %v1472 = vadd.f32 %v1470, %v1471
  %v1473 = vsel %vm1421, %v1319, 0.0
  %v1474 = vadd.f32 %v1472, %v1473
  %v1475 = vsel %vm1421, %v1320, 0.0
  %v1476 = vadd.f32 %v1474, %v1475
  %v1477 = vsel %vm1421, %v1321, 0.0
  %v1478 = vadd.f32 %v1476, %v1477
  %v1479 = vsel %vm1421, %v1322, 0.0
  %v1480 = vadd.f32 %v1478, %v1479
  %v1481 = vsel %vm1421, %v1323, 0.0
  %v1482 = vadd.f32 %v1480, %v1481
  %v1483 = vsel %vm1421, %v1324, 0.0
  %v1484 = vadd.f32 %v1482, %v1483
  %v1485 = vrot.slane %v1484, 4
  %v1486 = vadd.f32 %v1484, %v1485
  %v1487 = vrot.slane %v1486, 2
  %v1488 = vadd.f32 %v1486, %v1487
  %v1489 = vrot.slane %v1488, 1
  %v1490 = vadd.f32 %v1488, %v1489
  %v1491 = vrcp.pop 256.0
  %v1492 = vmul.f32 %v1490, %v1491
  %v1493 = vsel %vm1421, %v1325, 0.0
  %v1494 = vsel %vm1421, %v1326, 0.0
  %v1495 = vadd.f32 %v1493, %v1494
  %v1496 = vsel %vm1421, %v1327, 0.0
  %v1497 = vadd.f32 %v1495, %v1496
  %v1498 = vsel %vm1421, %v1328, 0.0
  %v1499 = vadd.f32 %v1497, %v1498
  %v1500 = vsel %vm1421, %v1329, 0.0
  %v1501 = vadd.f32 %v1499, %v1500
  %v1502 = vsel %vm1421, %v1330, 0.0
  %v1503 = vadd.f32 %v1501, %v1502
  %v1504 = vsel %vm1421, %v1331, 0.0
  %v1505 = vadd.f32 %v1503, %v1504
  %v1506 = vsel %vm1421, %v1332, 0.0
  %v1507 = vadd.f32 %v1505, %v1506
  %v1508 = vsel %vm1421, %v1333, 0.0
  %v1509 = vadd.f32 %v1507, %v1508
  %v1510 = vsel %vm1421, %v1334, 0.0
  %v1511 = vadd.f32 %v1509, %v1510
  %v1512 = vsel %vm1421, %v1335, 0.0
  %v1513 = vadd.f32 %v1511, %v1512
  %v1514 = vsel %vm1421, %v1336, 0.0
  %v1515 = vadd.f32 %v1513, %v1514
  %v1516 = vsel %vm1421, %v1337, 0.0
  %v1517 = vadd.f32 %v1515, %v1516
  %v1518 = vsel %vm1421, %v1338, 0.0
  %v1519 = vadd.f32 %v1517, %v1518
  %v1520 = vsel %vm1421, %v1339, 0.0
  %v1521 = vadd.f32 %v1519, %v1520
  %v1522 = vsel %vm1421, %v1340, 0.0
  %v1523 = vadd.f32 %v1521, %v1522
  %v1524 = vsel %vm1421, %v1341, 0.0
  %v1525 = vadd.f32 %v1523, %v1524
  %v1526 = vsel %vm1421, %v1342, 0.0
  %v1527 = vadd.f32 %v1525, %v1526
  %v1528 = vsel %vm1421, %v1343, 0.0
  %v1529 = vadd.f32 %v1527, %v1528
  %v1530 = vsel %vm1421, %v1344, 0.0
  %v1531 = vadd.f32 %v1529, %v1530
  %v1532 = vsel %vm1421, %v1345, 0.0
  %v1533 = vadd.f32 %v1531, %v1532
  %v1534 = vsel %vm1421, %v1346, 0.0
  %v1535 = vadd.f32 %v1533, %v1534
  %v1536 = vsel %vm1421, %v1347, 0.0
  %v1537 = vadd.f32 %v1535, %v1536
  %v1538 = vsel %vm1421, %v1348, 0.0
  %v1539 = vadd.f32 %v1537, %v1538
  %v1540 = vsel %vm1421, %v1349, 0.0
  %v1541 = vadd.f32 %v1539, %v1540
  %v1542 = vsel %vm1421, %v1350, 0.0
  %v1543 = vadd.f32 %v1541, %v1542
  %v1544 = vsel %vm1421, %v1351, 0.0
  %v1545 = vadd.f32 %v1543, %v1544
  %v1546 = vsel %vm1421, %v1352, 0.0
  %v1547 = vadd.f32 %v1545, %v1546
  %v1548 = vsel %vm1421, %v1353, 0.0
  %v1549 = vadd.f32 %v1547, %v1548
  %v1550 = vsel %vm1421, %v1354, 0.0
  %v1551 = vadd.f32 %v1549, %v1550
  %v1552 = vsel %vm1421, %v1355, 0.0
  %v1553 = vadd.f32 %v1551, %v1552
  %v1554 = vsel %vm1421, %v1356, 0.0
  %v1555 = vadd.f32 %v1553, %v1554
  %v1556 = vrot.slane %v1555, 4
  %v1557 = vadd.f32 %v1555, %v1556
  %v1558 = vrot.slane %v1557, 2
  %v1559 = vadd.f32 %v1557, %v1558
  %v1560 = vrot.slane %v1559, 1
  %v1561 = vadd.f32 %v1559, %v1560
  %v1562 = vmul.f32 %v1561, %v1491
  %vm1563 = vcmask 1040384
  %v1564 = vsel %vm1563, %v1492, %v1562
  %v1565 = vpack.c.bf16 %v1564, %v1564
  %v1566 = vpack.c.bf16 %v62, %v62
  %v1568 = vlaneseq
  %v1569 = vshrl.u32 %v1568, 7
  %v1570 = vsub.s32 0, %v1569
  %v1571 = vrot.slane %v63, %v1570
  %v1574 = vsel %vm1421, %v1565, 0
  %vm1576 = vcmask 1043456
  %v1578 = vsel %vm1576, %v1566, 0
  %1580 = vmatprep.subr.bf16.mxu0 0
  %1581 = vmatpush1.bf16.msra.mxu0 %v1578
  %1582 = vmatprep.subr.bf16.mxu0 0
  %1583 = vmatpush1.bf16.msra.mxu0 0
  %1584 = vmatprep.subr.bf16.mxu0 0
  %1585 = vmatpush1.bf16.msra.mxu0 0
  %1586 = vmatprep.subr.bf16.mxu0 0
  %1587 = vmatpush1.bf16.msra.mxu0 0
  %1588 = vmatprep.subr.bf16.mxu0 0
  %1589 = vmatpush1.bf16.msra.mxu0 0
  %1590 = vmatprep.subr.bf16.mxu0 0
  %1591 = vmatpush1.bf16.msra.mxu0 0
  %1592 = vmatprep.subr.bf16.mxu0 0
  %1593 = vmatpush1.bf16.msra.mxu0 0
  %1594 = vmatprep.subr.bf16.mxu0 0
  %1595 = vmatpush1.bf16.msra.mxu0 0
  %1596 = vmatprep.subr.bf16.mxu0 0
  %1597 = vmatpush1.bf16.msra.mxu0 0
  %1598 = vmatprep.subr.bf16.mxu0 0
  %1599 = vmatpush1.bf16.msra.mxu0 0
  %1600 = vmatprep.subr.bf16.mxu0 0
  %1601 = vmatpush1.bf16.msra.mxu0 0
  %1602 = vmatprep.subr.bf16.mxu0 0
  %1603 = vmatpush1.bf16.msra.mxu0 0
  %1604 = vmatprep.subr.bf16.mxu0 0
  %1605 = vmatpush1.bf16.msra.mxu0 0
  %1606 = vmatprep.subr.bf16.mxu0 0
  %1607 = vmatpush1.bf16.msra.mxu0 0
  %1608 = vmatprep.subr.bf16.mxu0 0
  %1609 = vmatpush1.bf16.msra.mxu0 0
  %1610 = vmatprep.subr.bf16.mxu0 0
  %1611 = vmatpush1.bf16.msra.mxu0 0
  %1612 = vmatprep.mubr.bf16.mxu0 0
  %1613 = vmatmul.mubr.bf16.gmra.mrb[0].mxu0 %v1574
  %v1614 = vpop.f32.mrb[0].mxu0
  %v1615 = vadd.f32 %v1571, %v1614
  %v1616 = vpop.f32.mrb[0].mxu0
  %v1617 = vpop.f32.mrb[0].mxu0
  %v1618 = vpop.f32.mrb[0].mxu0
  %1619 = vdwg.mxu0
  %vm1620 = vcmask 254976
  %v1621 = vsel %vm1620, %v1615, 0.0
  %v1622 = vrot.slane %v1621, 4
  %v1623 = vadd.f32 %v1621, %v1622
  %v1624 = vrot.slane %v1623, 2
  %v1625 = vadd.f32 %v1623, %v1624
  %v1626 = vrot.slane %v1625, 1
  %v1627 = vadd.f32 %v1625, %v1626
  %v1628 = vrcp.pop 2.0
  %v1629 = vmul.f32 %v1627, %v1628
  %v1630 = vsub.f32 %v1615, %v1629
  %v1631 = vmul.f32 %v1630, %v1630
  %v1632 = vsel %vm1620, %v1631, 0.0
  %v1633 = vrot.slane %v1632, 4
  %v1634 = vadd.f32 %v1632, %v1633
  %v1635 = vrot.slane %v1634, 2
  %v1636 = vadd.f32 %v1634, %v1635
  %v1637 = vrot.slane %v1636, 1
  %v1638 = vadd.f32 %v1636, %v1637
  %v1639 = vmul.f32 %v1638, %v1628
  %v1640 = vadd.f32 %v1639, 1e-05
  %v1641 = vrsqrt.pop %v1640
  %v1642 = vmul.f32 %v1630, %v1641
  %v1644 = vlaneseq
  %v1645 = vshrl.u32 %v1644, 7
  %v1646 = vsub.s32 0, %v1645
  %v1647 = vrot.slane %v64, %v1646
  %v1649 = vmul.f32 %v1642, %v1647
  %v1651 = vlaneseq
  %v1652 = vshrl.u32 %v1651, 7
  %v1653 = vsub.s32 0, %v1652
  %v1654 = vrot.slane %v65, %v1653
  %v1656 = vadd.f32 %v1649, %v1654
  %v1657 = vmax.f32 %v1656, 0.0
  %v1658 = vpack.c.bf16 %v1657, %v1657
  %v1659 = vpack.c.bf16 %v67, %v66
  %v1660 = vpack.c.bf16 %v69, %v68
  %vm1661 = vcmask 261120
  %v1663 = vsel %vm1661, %v1658, 0
  %1665 = vmatprep.subr.bf16.mxu0 0
  %1666 = vmatpush1.bf16.msra.mxu0 %v1659
  %1667 = vmatprep.subr.bf16.mxu0 0
  %1668 = vmatpush1.bf16.msra.mxu0 %v1660
  %1669 = vmatprep.subr.bf16.mxu0 0
  %1670 = vmatpush1.bf16.msra.mxu0 0
  %1671 = vmatprep.subr.bf16.mxu0 0
  %1672 = vmatpush1.bf16.msra.mxu0 0
  %1673 = vmatprep.subr.bf16.mxu0 0
  %1674 = vmatpush1.bf16.msra.mxu0 0
  %1675 = vmatprep.subr.bf16.mxu0 0
  %1676 = vmatpush1.bf16.msra.mxu0 0
  %1677 = vmatprep.subr.bf16.mxu0 0
  %1678 = vmatpush1.bf16.msra.mxu0 0
  %1679 = vmatprep.subr.bf16.mxu0 0
  %1680 = vmatpush1.bf16.msra.mxu0 0
  %1681 = vmatprep.subr.bf16.mxu0 0
  %1682 = vmatpush1.bf16.msra.mxu0 0
  %1683 = vmatprep.subr.bf16.mxu0 0
  %1684 = vmatpush1.bf16.msra.mxu0 0
  %1685 = vmatprep.subr.bf16.mxu0 0
  %1686 = vmatpush1.bf16.msra.mxu0 0
  %1687 = vmatprep.subr.bf16.mxu0 0
  %1688 = vmatpush1.bf16.msra.mxu0 0
  %1689 = vmatprep.subr.bf16.mxu0 0
  %1690 = vmatpush1.bf16.msra.mxu0 0
  %1691 = vmatprep.subr.bf16.mxu0 0
  %1692 = vmatpush1.bf16.msra.mxu0 0
  %1693 = vmatprep.subr.bf16.mxu0 0
  %1694 = vmatpush1.bf16.msra.mxu0 0
  %1695 = vmatprep.subr.bf16.mxu0 0
  %1696 = vmatpush1.bf16.msra.mxu0 0
  %1697 = vmatprep.mubr.bf16.mxu0 0
  %1698 = vmatmul.mubr.bf16.gmra.mrb[0].mxu0 %v1663
  %v1699 = vpop.f32.mrb[0].mxu0
  %v1700 = vadd.f32 0.0, %v1699
  %v1701 = vpop.f32.mrb[0].mxu0
  %v1702 = vpop.f32.mrb[0].mxu0
  %v1703 = vpop.f32.mrb[0].mxu0
  %1704 = vdwg.mxu0
  %v1705 = vsel %vm1620, %v1700, 0.0
  %v1706 = vrot.slane %v1705, 4
  %v1707 = vadd.f32 %v1705, %v1706
  %v1708 = vrot.slane %v1707, 2
  %v1709 = vadd.f32 %v1707, %v1708
  %v1710 = vrot.slane %v1709, 1
  %v1711 = vadd.f32 %v1709, %v1710
  %v1712 = vmul.f32 %v1711, %v1628
  %v1713 = vsub.f32 %v1700, %v1712
  %v1714 = vmul.f32 %v1713, %v1713
  %v1715 = vsel %vm1620, %v1714, 0.0
  %v1716 = vrot.slane %v1715, 4
  %v1717 = vadd.f32 %v1715, %v1716
  %v1718 = vrot.slane %v1717, 2
  %v1719 = vadd.f32 %v1717, %v1718
  %v1720 = vrot.slane %v1719, 1
  %v1721 = vadd.f32 %v1719, %v1720
  %v1722 = vmul.f32 %v1721, %v1628
  %v1723 = vadd.f32 %v1722, 1e-05
  %v1724 = vrsqrt.pop %v1723
  %v1725 = vmul.f32 %v1713, %v1724
  %v1727 = vlaneseq
  %v1728 = vshrl.u32 %v1727, 7
  %v1729 = vsub.s32 0, %v1728
  %v1730 = vrot.slane %v70, %v1729
  %v1732 = vmul.f32 %v1725, %v1730
  %v1734 = vlaneseq
  %v1735 = vshrl.u32 %v1734, 7
  %v1736 = vsub.s32 0, %v1735
  %v1737 = vrot.slane %v71, %v1736
  %v1739 = vadd.f32 %v1732, %v1737
  %v1740 = vmax.f32 %v1739, 0.0
  %v1741 = vpack.c.bf16 %v1740, %v1740
  %v1742 = vpack.c.bf16 %v73, %v72
  %v1743 = vpack.c.bf16 %v75, %v74
  %v1745 = vlaneseq
  %v1746 = vshrl.u32 %v1745, 7
  %v1747 = vsub.s32 0, %v1746
  %v1748 = vrot.slane %v76, %v1747
  %v1751 = vsel %vm1661, %v1741, 0
  %1753 = vmatprep.subr.bf16.mxu0 0
  %1754 = vmatpush1.bf16.msra.mxu0 %v1742
  %1755 = vmatprep.subr.bf16.mxu0 0
  %1756 = vmatpush1.bf16.msra.mxu0 %v1743
  %1757 = vmatprep.subr.bf16.mxu0 0
  %1758 = vmatpush1.bf16.msra.mxu0 0
  %1759 = vmatprep.subr.bf16.mxu0 0
  %1760 = vmatpush1.bf16.msra.mxu0 0
  %1761 = vmatprep.subr.bf16.mxu0 0
  %1762 = vmatpush1.bf16.msra.mxu0 0
  %1763 = vmatprep.subr.bf16.mxu0 0
  %1764 = vmatpush1.bf16.msra.mxu0 0
  %1765 = vmatprep.subr.bf16.mxu0 0
  %1766 = vmatpush1.bf16.msra.mxu0 0
  %1767 = vmatprep.subr.bf16.mxu0 0
  %1768 = vmatpush1.bf16.msra.mxu0 0
  %1769 = vmatprep.subr.bf16.mxu0 0
  %1770 = vmatpush1.bf16.msra.mxu0 0
  %1771 = vmatprep.subr.bf16.mxu0 0
  %1772 = vmatpush1.bf16.msra.mxu0 0
  %1773 = vmatprep.subr.bf16.mxu0 0
  %1774 = vmatpush1.bf16.msra.mxu0 0
  %1775 = vmatprep.subr.bf16.mxu0 0
  %1776 = vmatpush1.bf16.msra.mxu0 0
  %1777 = vmatprep.subr.bf16.mxu0 0
  %1778 = vmatpush1.bf16.msra.mxu0 0
  %1779 = vmatprep.subr.bf16.mxu0 0
  %1780 = vmatpush1.bf16.msra.mxu0 0
  %1781 = vmatprep.subr.bf16.mxu0 0
  %1782 = vmatpush1.bf16.msra.mxu0 0
  %1783 = vmatprep.subr.bf16.mxu0 0
  %1784 = vmatpush1.bf16.msra.mxu0 0
  %1785 = vmatprep.mubr.bf16.mxu0 0
  %1786 = vmatmul.mubr.bf16.gmra.mrb[0].mxu0 %v1751
  %v1787 = vpop.f32.mrb[0].mxu0
  %v1788 = vadd.f32 %v1748, %v1787
  %v1789 = vpop.f32.mrb[0].mxu0
  %v1790 = vpop.f32.mrb[0].mxu0
  %v1791 = vpop.f32.mrb[0].mxu0
  %1792 = vdwg.mxu0
  %v1793 = vsel %vm1421, %v1357, 0.0
  %v1794 = vsel %vm1421, %v1358, 0.0
  %v1795 = vadd.f32 %v1793, %v1794
  %v1796 = vsel %vm1421, %v1359, 0.0
  %v1797 = vadd.f32 %v1795, %v1796
  %v1798 = vsel %vm1421, %v1360, 0.0
  %v1799 = vadd.f32 %v1797, %v1798
  %v1800 = vsel %vm1421, %v1361, 0.0
  %v1801 = vadd.f32 %v1799, %v1800
  %v1802 = vsel %vm1421, %v1362, 0.0
  %v1803 = vadd.f32 %v1801, %v1802
  %v1804 = vsel %vm1421, %v1363, 0.0
  %v1805 = vadd.f32 %v1803, %v1804
  %v1806 = vsel %vm1421, %v1364, 0.0
  %v1807 = vadd.f32 %v1805, %v1806
  %v1808 = vsel %vm1421, %v1365, 0.0
  %v1809 = vadd.f32 %v1807, %v1808
  %v1810 = vsel %vm1421, %v1366, 0.0
  %v1811 = vadd.f32 %v1809, %v1810
  %v1812 = vsel %vm1421, %v1367, 0.0
  %v1813 = vadd.f32 %v1811, %v1812
  %v1814 = vsel %vm1421, %v1368, 0.0
  %v1815 = vadd.f32 %v1813, %v1814
  %v1816 = vsel %vm1421, %v1369, 0.0
  %v1817 = vadd.f32 %v1815, %v1816
  %v1818 = vsel %vm1421, %v1370, 0.0
  %v1819 = vadd.f32 %v1817, %v1818
  %v1820 = vsel %vm1421, %v1371, 0.0
  %v1821 = vadd.f32 %v1819, %v1820
  %v1822 = vsel %vm1421, %v1372, 0.0
  %v1823 = vadd.f32 %v1821, %v1822
  %v1824 = vsel %vm1421, %v1373, 0.0
  %v1825 = vadd.f32 %v1823, %v1824
  %v1826 = vsel %vm1421, %v1374, 0.0
  %v1827 = vadd.f32 %v1825, %v1826
  %v1828 = vsel %vm1421, %v1375, 0.0
  %v1829 = vadd.f32 %v1827, %v1828
  %v1830 = vsel %vm1421, %v1376, 0.0
  %v1831 = vadd.f32 %v1829, %v1830
  %v1832 = vsel %vm1421, %v1377, 0.0
  %v1833 = vadd.f32 %v1831, %v1832
  %v1834 = vsel %vm1421, %v1378, 0.0
  %v1835 = vadd.f32 %v1833, %v1834
  %v1836 = vsel %vm1421, %v1379, 0.0
  %v1837 = vadd.f32 %v1835, %v1836
  %v1838 = vsel %vm1421, %v1380, 0.0
  %v1839 = vadd.f32 %v1837, %v1838
  %v1840 = vsel %vm1421, %v1381, 0.0
  %v1841 = vadd.f32 %v1839, %v1840
  %v1842 = vsel %vm1421, %v1382, 0.0
  %v1843 = vadd.f32 %v1841, %v1842
  %v1844 = vsel %vm1421, %v1383, 0.0
  %v1845 = vadd.f32 %v1843, %v1844
  %v1846 = vsel %vm1421, %v1384, 0.0
  %v1847 = vadd.f32 %v1845, %v1846
  %v1848 = vsel %vm1421, %v1385, 0.0
  %v1849 = vadd.f32 %v1847, %v1848
  %v1850 = vsel %vm1421, %v1386, 0.0
  %v1851 = vadd.f32 %v1849, %v1850
  %v1852 = vsel %vm1421, %v1387, 0.0
  %v1853 = vadd.f32 %v1851, %v1852
  %v1854 = vsel %vm1421, %v1388, 0.0
  %v1855 = vadd.f32 %v1853, %v1854
  %v1856 = vrot.slane %v1855, 4
  %v1857 = vadd.f32 %v1855, %v1856
  %v1858 = vrot.slane %v1857, 2
  %v1859 = vadd.f32 %v1857, %v1858
  %v1860 = vrot.slane %v1859, 1
  %v1861 = vadd.f32 %v1859, %v1860
  %v1862 = vmul.f32 %v1861, %v1491
  %v1863 = vsel %vm1421, %v1389, 0.0
  %v1864 = vsel %vm1421, %v1390, 0.0
  %v1865 = vadd.f32 %v1863, %v1864
  %v1866 = vsel %vm1421, %v1391, 0.0
  %v1867 = vadd.f32 %v1865, %v1866
  %v1868 = vsel %vm1421, %v1392, 0.0
  %v1869 = vadd.f32 %v1867, %v1868
  %v1870 = vsel %vm1421, %v1393, 0.0
  %v1871 = vadd.f32 %v1869, %v1870
  %v1872 = vsel %vm1421, %v1394, 0.0
  %v1873 = vadd.f32 %v1871, %v1872
  %v1874 = vsel %vm1421, %v1395, 0.0
  %v1875 = vadd.f32 %v1873, %v1874
  %v1876 = vsel %vm1421, %v1396, 0.0
  %v1877 = vadd.f32 %v1875, %v1876
  %v1878 = vsel %vm1421, %v1397, 0.0
  %v1879 = vadd.f32 %v1877, %v1878
  %v1880 = vsel %vm1421, %v1398, 0.0
  %v1881 = vadd.f32 %v1879, %v1880
  %v1882 = vsel %vm1421, %v1399, 0.0
  %v1883 = vadd.f32 %v1881, %v1882
  %v1884 = vsel %vm1421, %v1400, 0.0
  %v1885 = vadd.f32 %v1883, %v1884
  %v1886 = vsel %vm1421, %v1401, 0.0
  %v1887 = vadd.f32 %v1885, %v1886
  %v1888 = vsel %vm1421, %v1402, 0.0
  %v1889 = vadd.f32 %v1887, %v1888
  %v1890 = vsel %vm1421, %v1403, 0.0
  %v1891 = vadd.f32 %v1889, %v1890
  %v1892 = vsel %vm1421, %v1404, 0.0
  %v1893 = vadd.f32 %v1891, %v1892
  %v1894 = vsel %vm1421, %v1405, 0.0
  %v1895 = vadd.f32 %v1893, %v1894
  %v1896 = vsel %vm1421, %v1406, 0.0
  %v1897 = vadd.f32 %v1895, %v1896
  %v1898 = vsel %vm1421, %v1407, 0.0
  %v1899 = vadd.f32 %v1897, %v1898
  %v1900 = vsel %vm1421, %v1408, 0.0
  %v1901 = vadd.f32 %v1899, %v1900
  %v1902 = vsel %vm1421, %v1409, 0.0
  %v1903 = vadd.f32 %v1901, %v1902
  %v1904 = vsel %vm1421, %v1410, 0.0
  %v1905 = vadd.f32 %v1903, %v1904
  %v1906 = vsel %vm1421, %v1411, 0.0
  %v1907 = vadd.f32 %v1905, %v1906
  %v1908 = vsel %vm1421, %v1412, 0.0
  %v1909 = vadd.f32 %v1907, %v1908
  %v1910 = vsel %vm1421, %v1413, 0.0
  %v1911 = vadd.f32 %v1909, %v1910
  %v1912 = vsel %vm1421, %v1414, 0.0
  %v1913 = vadd.f32 %v1911, %v1912
  %v1914 = vsel %vm1421, %v1415, 0.0
  %v1915 = vadd.f32 %v1913, %v1914
  %v1916 = vsel %vm1421, %v1416, 0.0
  %v1917 = vadd.f32 %v1915, %v1916
  %v1918 = vsel %vm1421, %v1417, 0.0
  %v1919 = vadd.f32 %v1917, %v1918
  %v1920 = vsel %vm1421, %v1418, 0.0
  %v1921 = vadd.f32 %v1919, %v1920
  %v1922 = vsel %vm1421, %v1419, 0.0
  %v1923 = vadd.f32 %v1921, %v1922
  %v1924 = vsel %vm1421, %v1420, 0.0
  %v1925 = vadd.f32 %v1923, %v1924
  %v1926 = vrot.slane %v1925, 4
  %v1927 = vadd.f32 %v1925, %v1926
  %v1928 = vrot.slane %v1927, 2
  %v1929 = vadd.f32 %v1927, %v1928
  %v1930 = vrot.slane %v1929, 1
  %v1931 = vadd.f32 %v1929, %v1930
  %v1932 = vmul.f32 %v1931, %v1491
  %v1933 = vsel %vm1563, %v1862, %v1932
  %v1934 = vpack.c.bf16 %v1933, %v1933
  %v1936 = vsel %vm1421, %v1934, 0
  %1938 = vmatprep.subr.bf16.mxu0 0
  %1939 = vmatpush1.bf16.msra.mxu0 %v1578
  %1940 = vmatprep.subr.bf16.mxu0 0
  %1941 = vmatpush1.bf16.msra.mxu0 0
  %1942 = vmatprep.subr.bf16.mxu0 0
  %1943 = vmatpush1.bf16.msra.mxu0 0
  %1944 = vmatprep.subr.bf16.mxu0 0
  %1945 = vmatpush1.bf16.msra.mxu0 0
  %1946 = vmatprep.subr.bf16.mxu0 0
  %1947 = vmatpush1.bf16.msra.mxu0 0
  %1948 = vmatprep.subr.bf16.mxu0 0
  %1949 = vmatpush1.bf16.msra.mxu0 0
  %1950 = vmatprep.subr.bf16.mxu0 0
  %1951 = vmatpush1.bf16.msra.mxu0 0
  %1952 = vmatprep.subr.bf16.mxu0 0
  %1953 = vmatpush1.bf16.msra.mxu0 0
  %1954 = vmatprep.subr.bf16.mxu0 0
  %1955 = vmatpush1.bf16.msra.mxu0 0
  %1956 = vmatprep.subr.bf16.mxu0 0
  %1957 = vmatpush1.bf16.msra.mxu0 0
  %1958 = vmatprep.subr.bf16.mxu0 0
  %1959 = vmatpush1.bf16.msra.mxu0 0
  %1960 = vmatprep.subr.bf16.mxu0 0
  %1961 = vmatpush1.bf16.msra.mxu0 0
  %1962 = vmatprep.subr.bf16.mxu0 0
  %1963 = vmatpush1.bf16.msra.mxu0 0
  %1964 = vmatprep.subr.bf16.mxu0 0
  %1965 = vmatpush1.bf16.msra.mxu0 0
  %1966 = vmatprep.subr.bf16.mxu0 0
  %1967 = vmatpush1.bf16.msra.mxu0 0
  %1968 = vmatprep.subr.bf16.mxu0 0
  %1969 = vmatpush1.bf16.msra.mxu0 0
  %1970 = vmatprep.mubr.bf16.mxu0 0
  %1971 = vmatmul.mubr.bf16.gmra.mrb[0].mxu0 %v1936
  %v1972 = vpop.f32.mrb[0].mxu0
  %v1973 = vadd.f32 %v1571, %v1972
  %v1974 = vpop.f32.mrb[0].mxu0
  %v1975 = vpop.f32.mrb[0].mxu0
  %v1976 = vpop.f32.mrb[0].mxu0
  %1977 = vdwg.mxu0
  %v1978 = vsel %vm1620, %v1973, 0.0
  %v1979 = vrot.slane %v1978, 4
  %v1980 = vadd.f32 %v1978, %v1979
  %v1981 = vrot.slane %v1980, 2
  %v1982 = vadd.f32 %v1980, %v1981
  %v1983 = vrot.slane %v1982, 1
  %v1984 = vadd.f32 %v1982, %v1983
  %v1985 = vmul.f32 %v1984, %v1628
  %v1986 = vsub.f32 %v1973, %v1985
  %v1987 = vmul.f32 %v1986, %v1986
  %v1988 = vsel %vm1620, %v1987, 0.0
  %v1989 = vrot.slane %v1988, 4
  %v1990 = vadd.f32 %v1988, %v1989
  %v1991 = vrot.slane %v1990, 2
  %v1992 = vadd.f32 %v1990, %v1991
  %v1993 = vrot.slane %v1992, 1
  %v1994 = vadd.f32 %v1992, %v1993
  %v1995 = vmul.f32 %v1994, %v1628
  %v1996 = vadd.f32 %v1995, 1e-05
  %v1997 = vrsqrt.pop %v1996
  %v1998 = vmul.f32 %v1986, %v1997
  %v1999 = vmul.f32 %v1998, %v1647
  %v2000 = vadd.f32 %v1999, %v1654
  %v2001 = vmax.f32 %v2000, 0.0
  %v2002 = vpack.c.bf16 %v2001, %v2001
  %v2004 = vsel %vm1661, %v2002, 0
  %2006 = vmatprep.subr.bf16.mxu0 0
  %2007 = vmatpush1.bf16.msra.mxu0 %v1659
  %2008 = vmatprep.subr.bf16.mxu0 0
  %2009 = vmatpush1.bf16.msra.mxu0 %v1660
  %2010 = vmatprep.subr.bf16.mxu0 0
  %2011 = vmatpush1.bf16.msra.mxu0 0
  %2012 = vmatprep.subr.bf16.mxu0 0
  %2013 = vmatpush1.bf16.msra.mxu0 0
  %2014 = vmatprep.subr.bf16.mxu0 0
  %2015 = vmatpush1.bf16.msra.mxu0 0
  %2016 = vmatprep.subr.bf16.mxu0 0
  %2017 = vmatpush1.bf16.msra.mxu0 0
  %2018 = vmatprep.subr.bf16.mxu0 0
  %2019 = vmatpush1.bf16.msra.mxu0 0
  %2020 = vmatprep.subr.bf16.mxu0 0
  %2021 = vmatpush1.bf16.msra.mxu0 0
  %2022 = vmatprep.subr.bf16.mxu0 0
  %2023 = vmatpush1.bf16.msra.mxu0 0
  %2024 = vmatprep.subr.bf16.mxu0 0
  %2025 = vmatpush1.bf16.msra.mxu0 0
  %2026 = vmatprep.subr.bf16.mxu0 0
  %2027 = vmatpush1.bf16.msra.mxu0 0
  %2028 = vmatprep.subr.bf16.mxu0 0
  %2029 = vmatpush1.bf16.msra.mxu0 0
  %2030 = vmatprep.subr.bf16.mxu0 0
  %2031 = vmatpush1.bf16.msra.mxu0 0
  %2032 = vmatprep.subr.bf16.mxu0 0
  %2033 = vmatpush1.bf16.msra.mxu0 0
  %2034 = vmatprep.subr.bf16.mxu0 0
  %2035 = vmatpush1.bf16.msra.mxu0 0
  %2036 = vmatprep.subr.bf16.mxu0 0
  %2037 = vmatpush1.bf16.msra.mxu0 0
  %2038 = vmatprep.mubr.bf16.mxu0 0
  %2039 = vmatmul.mubr.bf16.gmra.mrb[0].mxu0 %v2004
  %v2040 = vpop.f32.mrb[0].mxu0
  %v2041 = vadd.f32 0.0, %v2040
  %v2042 = vpop.f32.mrb[0].mxu0
  %v2043 = vpop.f32.mrb[0].mxu0
  %v2044 = vpop.f32.mrb[0].mxu0
  %2045 = vdwg.mxu0
  %v2046 = vsel %vm1620, %v2041, 0.0
  %v2047 = vrot.slane %v2046, 4
  %v2048 = vadd.f32 %v2046, %v2047
  %v2049 = vrot.slane %v2048, 2
  %v2050 = vadd.f32 %v2048, %v2049
  %v2051 = vrot.slane %v2050, 1
  %v2052 = vadd.f32 %v2050, %v2051
  %v2053 = vmul.f32 %v2052, %v1628
  %v2054 = vsub.f32 %v2041, %v2053
  %v2055 = vmul.f32 %v2054, %v2054
  %v2056 = vsel %vm1620, %v2055, 0.0
  %v2057 = vrot.slane %v2056, 4
  %v2058 = vadd.f32 %v2056, %v2057
  %v2059 = vrot.slane %v2058, 2
  %v2060 = vadd.f32 %v2058, %v2059
  %v2061 = vrot.slane %v2060, 1
  %v2062 = vadd.f32 %v2060, %v2061
  %v2063 = vmul.f32 %v2062, %v1628
  %v2064 = vadd.f32 %v2063, 1e-05
  %v2065 = vrsqrt.pop %v2064
  %v2066 = vmul.f32 %v2054, %v2065
  %v2067 = vmul.f32 %v2066, %v1730
  %v2068 = vadd.f32 %v2067, %v1737
  %v2069 = vmax.f32 %v2068, 0.0
  %v2070 = vpack.c.bf16 %v2069, %v2069
  %v2072 = vsel %vm1661, %v2070, 0
  %2074 = vmatprep.subr.bf16.mxu0 0
  %2075 = vmatpush1.bf16.msra.mxu0 %v1742
  %2076 = vmatprep.subr.bf16.mxu0 0
  %2077 = vmatpush1.bf16.msra.mxu0 %v1743
  %2078 = vmatprep.subr.bf16.mxu0 0
  %2079 = vmatpush1.bf16.msra.mxu0 0
  %2080 = vmatprep.subr.bf16.mxu0 0
  %2081 = vmatpush1.bf16.msra.mxu0 0
  %2082 = vmatprep.subr.bf16.mxu0 0
  %2083 = vmatpush1.bf16.msra.mxu0 0
  %2084 = vmatprep.subr.bf16.mxu0 0
  %2085 = vmatpush1.bf16.msra.mxu0 0
  %2086 = vmatprep.subr.bf16.mxu0 0
  %2087 = vmatpush1.bf16.msra.mxu0 0
  %2088 = vmatprep.subr.bf16.mxu0 0
  %2089 = vmatpush1.bf16.msra.mxu0 0
  %2090 = vmatprep.subr.bf16.mxu0 0
  %2091 = vmatpush1.bf16.msra.mxu0 0
  %2092 = vmatprep.subr.bf16.mxu0 0
  %2093 = vmatpush1.bf16.msra.mxu0 0
  %2094 = vmatprep.subr.bf16.mxu0 0
  %2095 = vmatpush1.bf16.msra.mxu0 0
  %2096 = vmatprep.subr.bf16.mxu0 0
  %2097 = vmatpush1.bf16.msra.mxu0 0
  %2098 = vmatprep.subr.bf16.mxu0 0
  %2099 = vmatpush1.bf16.msra.mxu0 0
  %2100 = vmatprep.subr.bf16.mxu0 0
  %2101 = vmatpush1.bf16.msra.mxu0 0
  %2102 = vmatprep.subr.bf16.mxu0 0
  %2103 = vmatpush1.bf16.msra.mxu0 0
  %2104 = vmatprep.subr.bf16.mxu0 0
  %2105 = vmatpush1.bf16.msra.mxu0 0
  %2106 = vmatprep.mubr.bf16.mxu0 0
  %2107 = vmatmul.mubr.bf16.gmra.mrb[0].mxu0 %v2072
  %v2108 = vpop.f32.mrb[0].mxu0
  %v2109 = vadd.f32 %v1748, %v2108
  %v2110 = vpop.f32.mrb[0].mxu0
  %v2111 = vpop.f32.mrb[0].mxu0
  %v2112 = vpop.f32.mrb[0].mxu0
  %2113 = vdwg.mxu0
  %v2114 = vpack.c.bf16 %v1788, %v1788
  %v2115 = vpack.c.bf16 %v78, %v77
  %v2116 = vpack.c.bf16 %v80, %v79
  %v2117 = vpack.c.bf16 %v82, %v81
  %v2118 = vpack.c.bf16 %v84, %v83
  %vm2119 = vcmask 523264
  %v2121 = vsel %vm2119, %v2114, 0
  %2123 = vmatprep.subr.bf16.mxu0 0
  %2124 = vmatpush1.bf16.msra.mxu0 %v2115
  %2125 = vmatprep.subr.bf16.mxu0 0
  %2126 = vmatpush1.bf16.msra.mxu0 %v2116
  %2127 = vmatprep.subr.bf16.mxu0 0
  %2128 = vmatpush1.bf16.msra.mxu0 %v2117
  %2129 = vmatprep.subr.bf16.mxu0 0
  %2130 = vmatpush1.bf16.msra.mxu0 %v2118
  %2131 = vmatprep.subr.bf16.mxu0 0
  %2132 = vmatpush1.bf16.msra.mxu0 0
  %2133 = vmatprep.subr.bf16.mxu0 0
  %2134 = vmatpush1.bf16.msra.mxu0 0
  %2135 = vmatprep.subr.bf16.mxu0 0
  %2136 = vmatpush1.bf16.msra.mxu0 0
  %2137 = vmatprep.subr.bf16.mxu0 0
  %2138 = vmatpush1.bf16.msra.mxu0 0
  %2139 = vmatprep.subr.bf16.mxu0 0
  %2140 = vmatpush1.bf16.msra.mxu0 0
  %2141 = vmatprep.subr.bf16.mxu0 0
  %2142 = vmatpush1.bf16.msra.mxu0 0
  %2143 = vmatprep.subr.bf16.mxu0 0
  %2144 = vmatpush1.bf16.msra.mxu0 0
  %2145 = vmatprep.subr.bf16.mxu0 0
  %2146 = vmatpush1.bf16.msra.mxu0 0
  %2147 = vmatprep.subr.bf16.mxu0 0
  %2148 = vmatpush1.bf16.msra.mxu0 0
  %2149 = vmatprep.subr.bf16.mxu0 0
  %2150 = vmatpush1.bf16.msra.mxu0 0
  %2151 = vmatprep.subr.bf16.mxu0 0
  %2152 = vmatpush1.bf16.msra.mxu0 0
  %2153 = vmatprep.subr.bf16.mxu0 0
  %2154 = vmatpush1.bf16.msra.mxu0 0
  %2155 = vmatprep.mubr.bf16.mxu0 0
  %2156 = vmatmul.mubr.bf16.gmra.mrb[0].mxu0 %v2121
  %v2157 = vpop.f32.mrb[0].mxu0
  %v2158 = vadd.f32 0.0, %v2157
  %v2159 = vpop.f32.mrb[0].mxu0
  %v2160 = vpop.f32.mrb[0].mxu0
  %v2161 = vpop.f32.mrb[0].mxu0
  %2162 = vdwg.mxu0
  %v2163 = vsel %vm1620, %v2158, 0.0
  %v2164 = vrot.slane %v2163, 4
  %v2165 = vadd.f32 %v2163, %v2164
  %v2166 = vrot.slane %v2165, 2
  %v2167 = vadd.f32 %v2165, %v2166
  %v2168 = vrot.slane %v2167, 1
  %v2169 = vadd.f32 %v2167, %v2168
  %v2170 = vmul.f32 %v2169, %v1628
  %v2171 = vsub.f32 %v2158, %v2170
  %v2172 = vmul.f32 %v2171, %v2171
  %v2173 = vsel %vm1620, %v2172, 0.0
  %v2174 = vrot.slane %v2173, 4
  %v2175 = vadd.f32 %v2173, %v2174
  %v2176 = vrot.slane %v2175, 2
  %v2177 = vadd.f32 %v2175, %v2176
  %v2178 = vrot.slane %v2177, 1
  %v2179 = vadd.f32 %v2177, %v2178
  %v2180 = vmul.f32 %v2179, %v1628
  %v2181 = vadd.f32 %v2180, 1e-05
  %v2182 = vrsqrt.pop %v2181
  %v2183 = vmul.f32 %v2171, %v2182
  %v2185 = vlaneseq
  %v2186 = vshrl.u32 %v2185, 7
  %v2187 = vsub.s32 0, %v2186
  %v2188 = vrot.slane %v85, %v2187
  %v2190 = vmul.f32 %v2183, %v2188
  %v2192 = vlaneseq
  %v2193 = vshrl.u32 %v2192, 7
  %v2194 = vsub.s32 0, %v2193
  %v2195 = vrot.slane %v86, %v2194
  %v2197 = vadd.f32 %v2190, %v2195
  %v2198 = vmax.f32 %v2197, 0.0
  %v2199 = vpack.c.bf16 %v2198, %v2198
  %v2200 = vpack.c.bf16 %v88, %v87
  %v2201 = vpack.c.bf16 %v90, %v89
  %v2203 = vlaneseq
  %v2204 = vshrl.u32 %v2203, 7
  %v2205 = vsub.s32 0, %v2204
  %v2206 = vrot.slane %v91, %v2205
  %v2209 = vsel %vm1661, %v2199, 0
  %2211 = vmatprep.subr.bf16.mxu0 0
  %2212 = vmatpush1.bf16.msra.mxu0 %v2200
  %2213 = vmatprep.subr.bf16.mxu0 0
  %2214 = vmatpush1.bf16.msra.mxu0 %v2201
  %2215 = vmatprep.subr.bf16.mxu0 0
  %2216 = vmatpush1.bf16.msra.mxu0 0
  %2217 = vmatprep.subr.bf16.mxu0 0
  %2218 = vmatpush1.bf16.msra.mxu0 0
  %2219 = vmatprep.subr.bf16.mxu0 0
  %2220 = vmatpush1.bf16.msra.mxu0 0
  %2221 = vmatprep.subr.bf16.mxu0 0
  %2222 = vmatpush1.bf16.msra.mxu0 0
  %2223 = vmatprep.subr.bf16.mxu0 0
  %2224 = vmatpush1.bf16.msra.mxu0 0
  %2225 = vmatprep.subr.bf16.mxu0 0
  %2226 = vmatpush1.bf16.msra.mxu0 0
  %2227 = vmatprep.subr.bf16.mxu0 0
  %2228 = vmatpush1.bf16.msra.mxu0 0
  %2229 = vmatprep.subr.bf16.mxu0 0
  %2230 = vmatpush1.bf16.msra.mxu0 0
  %2231 = vmatprep.subr.bf16.mxu0 0
  %2232 = vmatpush1.bf16.msra.mxu0 0
  %2233 = vmatprep.subr.bf16.mxu0 0
  %2234 = vmatpush1.bf16.msra.mxu0 0
  %2235 = vmatprep.subr.bf16.mxu0 0
  %2236 = vmatpush1.bf16.msra.mxu0 0
  %2237 = vmatprep.subr.bf16.mxu0 0
  %2238 = vmatpush1.bf16.msra.mxu0 0
  %2239 = vmatprep.subr.bf16.mxu0 0
  %2240 = vmatpush1.bf16.msra.mxu0 0
  %2241 = vmatprep.subr.bf16.mxu0 0
  %2242 = vmatpush1.bf16.msra.mxu0 0
  %2243 = vmatprep.mubr.bf16.mxu0 0
  %2244 = vmatmul.mubr.bf16.gmra.mrb[0].mxu0 %v2209
  %v2245 = vpop.f32.mrb[0].mxu0
  %v2246 = vadd.f32 %v2206, %v2245
  %v2247 = vpop.f32.mrb[0].mxu0
  %v2248 = vpop.f32.mrb[0].mxu0
  %v2249 = vpop.f32.mrb[0].mxu0
  %2250 = vdwg.mxu0
  %v2251 = vpack.c.bf16 %v2109, %v2109
  %v2253 = vsel %vm2119, %v2251, 0
  %2255 = vmatprep.subr.bf16.mxu0 0
  %2256 = vmatpush1.bf16.msra.mxu0 %v2115
  %2257 = vmatprep.subr.bf16.mxu0 0
  %2258 = vmatpush1.bf16.msra.mxu0 %v2116
  %2259 = vmatprep.subr.bf16.mxu0 0
  %2260 = vmatpush1.bf16.msra.mxu0 %v2117
  %2261 = vmatprep.subr.bf16.mxu0 0
  %2262 = vmatpush1.bf16.msra.mxu0 %v2118
  %2263 = vmatprep.subr.bf16.mxu0 0
  %2264 = vmatpush1.bf16.msra.mxu0 0
  %2265 = vmatprep.subr.bf16.mxu0 0
  %2266 = vmatpush1.bf16.msra.mxu0 0
  %2267 = vmatprep.subr.bf16.mxu0 0
  %2268 = vmatpush1.bf16.msra.mxu0 0
  %2269 = vmatprep.subr.bf16.mxu0 0
  %2270 = vmatpush1.bf16.msra.mxu0 0
  %2271 = vmatprep.subr.bf16.mxu0 0
  %2272 = vmatpush1.bf16.msra.mxu0 0
  %2273 = vmatprep.subr.bf16.mxu0 0
  %2274 = vmatpush1.bf16.msra.mxu0 0
  %2275 = vmatprep.subr.bf16.mxu0 0
  %2276 = vmatpush1.bf16.msra.mxu0 0
  %2277 = vmatprep.subr.bf16.mxu0 0
  %2278 = vmatpush1.bf16.msra.mxu0 0
  %2279 = vmatprep.subr.bf16.mxu0 0
  %2280 = vmatpush1.bf16.msra.mxu0 0
  %2281 = vmatprep.subr.bf16.mxu0 0
  %2282 = vmatpush1.bf16.msra.mxu0 0
  %2283 = vmatprep.subr.bf16.mxu0 0
  %2284 = vmatpush1.bf16.msra.mxu0 0
  %2285 = vmatprep.subr.bf16.mxu0 0
  %2286 = vmatpush1.bf16.msra.mxu0 0
  %2287 = vmatprep.mubr.bf16.mxu0 0
  %2288 = vmatmul.mubr.bf16.gmra.mrb[0].mxu0 %v2253
  %v2289 = vpop.f32.mrb[0].mxu0
  %v2290 = vadd.f32 0.0, %v2289
  %v2291 = vpop.f32.mrb[0].mxu0
  %v2292 = vpop.f32.mrb[0].mxu0
  %v2293 = vpop.f32.mrb[0].mxu0
  %2294 = vdwg.mxu0
  %v2295 = vsel %vm1620, %v2290, 0.0
  %v2296 = vrot.slane %v2295, 4
  %v2297 = vadd.f32 %v2295, %v2296
  %v2298 = vrot.slane %v2297, 2
  %v2299 = vadd.f32 %v2297, %v2298
  %v2300 = vrot.slane %v2299, 1
  %v2301 = vadd.f32 %v2299, %v2300
  %v2302 = vmul.f32 %v2301, %v1628
  %v2303 = vsub.f32 %v2290, %v2302
  %v2304 = vmul.f32 %v2303, %v2303
  %v2305 = vsel %vm1620, %v2304, 0.0
  %v2306 = vrot.slane %v2305, 4
  %v2307 = vadd.f32 %v2305, %v2306
  %v2308 = vrot.slane %v2307, 2
  %v2309 = vadd.f32 %v2307, %v2308
  %v2310 = vrot.slane %v2309, 1
  %v2311 = vadd.f32 %v2309, %v2310
  %v2312 = vmul.f32 %v2311, %v1628
  %v2313 = vadd.f32 %v2312, 1e-05
  %v2314 = vrsqrt.pop %v2313
  %v2315 = vmul.f32 %v2303, %v2314
  %v2316 = vmul.f32 %v2315, %v2188
  %v2317 = vadd.f32 %v2316, %v2195
  %v2318 = vmax.f32 %v2317, 0.0
  %v2319 = vpack.c.bf16 %v2318, %v2318
  %v2321 = vsel %vm1661, %v2319, 0
  %2323 = vmatprep.subr.bf16.mxu0 0
  %2324 = vmatpush1.bf16.msra.mxu0 %v2200
  %2325 = vmatprep.subr.bf16.mxu0 0
  %2326 = vmatpush1.bf16.msra.mxu0 %v2201
  %2327 = vmatprep.subr.bf16.mxu0 0
  %2328 = vmatpush1.bf16.msra.mxu0 0
  %2329 = vmatprep.subr.bf16.mxu0 0
  %2330 = vmatpush1.bf16.msra.mxu0 0
  %2331 = vmatprep.subr.bf16.mxu0 0
  %2332 = vmatpush1.bf16.msra.mxu0 0
  %2333 = vmatprep.subr.bf16.mxu0 0
  %2334 = vmatpush1.bf16.msra.mxu0 0
  %2335 = vmatprep.subr.bf16.mxu0 0
  %2336 = vmatpush1.bf16.msra.mxu0 0
  %2337 = vmatprep.subr.bf16.mxu0 0
  %2338 = vmatpush1.bf16.msra.mxu0 0
  %2339 = vmatprep.subr.bf16.mxu0 0
  %2340 = vmatpush1.bf16.msra.mxu0 0
  %2341 = vmatprep.subr.bf16.mxu0 0
  %2342 = vmatpush1.bf16.msra.mxu0 0
  %2343 = vmatprep.subr.bf16.mxu0 0
  %2344 = vmatpush1.bf16.msra.mxu0 0
  %2345 = vmatprep.subr.bf16.mxu0 0
  %2346 = vmatpush1.bf16.msra.mxu0 0
  %2347 = vmatprep.subr.bf16.mxu0 0
  %2348 = vmatpush1.bf16.msra.mxu0 0
  %2349 = vmatprep.subr.bf16.mxu0 0
  %2350 = vmatpush1.bf16.msra.mxu0 0
  %2351 = vmatprep.subr.bf16.mxu0 0
  %2352 = vmatpush1.bf16.msra.mxu0 0
  %2353 = vmatprep.subr.bf16.mxu0 0
  %2354 = vmatpush1.bf16.msra.mxu0 0
  %2355 = vmatprep.mubr.bf16.mxu0 0
  %2356 = vmatmul.mubr.bf16.gmra.mrb[0].mxu0 %v2321
  %v2357 = vpop.f32.mrb[0].mxu0
  %v2358 = vadd.f32 %v2206, %v2357
  %v2359 = vpop.f32.mrb[0].mxu0
  %v2360 = vpop.f32.mrb[0].mxu0
  %v2361 = vpop.f32.mrb[0].mxu0
  %2362 = vdwg.mxu0
  %v2364 = vrot.slane %v2109, 6
  %vm2366 = vcmask 1041408
  %v2367 = vsel %vm2366, %v1788, %v2364
  %v2369 = vrot.slane %v2358, 6
  %v2371 = vsel %vm2366, %v2246, %v2369
  %2373 = vrot.lane.b32.xlu0 %v2371, 64
  %v2374 = vpop.permute.xlu0 %2373
  %v2376 = vsel %vm2119, %v2367, %v2374
  %2377 = vst [vmem:[%s17] sm:$0xf] %v2376
  // Predicated region
  $region70: #{simsiam_momentum_forward.2} parent=0 // pred_check
    _
  $region71: #{simsiam_momentum_forward.2} parent=0 // pred_check_branch
    %2379 = sbr.rel (0) target = $region73
  $region72: #{simsiam_momentum_forward.2} parent=0 // pred_region
    _
  $region73: #{simsiam_momentum_forward.2} parent=0 // pred_fallthru
    _
  // Predicated region
  $region74: #{simsiam_momentum_forward.2} parent=0 // pred_check
    _
  $region75: #{simsiam_momentum_forward.2} parent=0 // pred_check_branch
    %2381 = sbr.rel (0) target = $region77
  $region76: #{simsiam_momentum_forward.2} parent=0 // pred_region
    _
  $region77: #{simsiam_momentum_forward.2} parent=0 // pred_fallthru
    _

// kernel: simsiam_momentum_forward.3
$region0: #{simsiam_momentum_forward.3}
  #allocation0 [shape = 'u32[]', space=smem, size = 0x4, offset = 0x4, fixed_abs, tag = 'smem constant byte address 0x4 - core index']
  #allocation1 [shape = 'u32[144,128]{1,0:T(1,128)}', space=vmem, size = 0x12000, scoped, tag = 'internal scratch']
  %s0 = inlined_call_operand.smem [shape: u32[35], index: -1, kind: input, shape index: {}]
  %s1 = sld [smem:[%s0]]
  %s2 = scalar_lea.smem %s0, 1
  %s3 = sld [smem:[%s2]]
  %s4 = scalar_lea.smem %s0, 2
  %s5 = sld [smem:[%s4]]
  %s6 = scalar_lea.smem %s0, 3
  %s7 = sld [smem:[%s6]]
  %s8 = scalar_lea.smem %s0, 4
  %s9 = sld [smem:[%s8]]
  %s10 = scalar_lea.smem %s0, 5
  %s11 = sld [smem:[%s10]]
  %s12 = scalar_lea.smem %s0, 6
  %s13 = sld [smem:[%s12]]
  %s14 = scalar_lea.smem %s0, 7
  %s15 = sld [smem:[%s14]]
  %s16 = scalar_lea.smem %s0, 8
  %s17 = sld [smem:[%s16]]
  %s18 = scalar_lea.smem %s0, 9
  %s19 = sld [smem:[%s18]]
  %s20 = scalar_lea.smem %s0, 10
  %s21 = sld [smem:[%s20]]
  %s22 = scalar_lea.smem %s0, 11
  %s23 = sld [smem:[%s22]]
  %s24 = scalar_lea.smem %s0, 12
  %s25 = sld [smem:[%s24]]
  %s26 = scalar_lea.smem %s0, 13
  %s27 = sld [smem:[%s26]]
  %s28 = scalar_lea.smem %s0, 14
  %s29 = sld [smem:[%s28]]
  %s30 = scalar_lea.smem %s0, 15
  %s31 = sld [smem:[%s30]]
  %s32 = scalar_lea.smem %s0, 16
  %s33 = sld [smem:[%s32]]
  %s34 = scalar_lea.smem %s0, 17
  %s35 = sld [smem:[%s34]]
  %s36 = scalar_lea.smem %s0, 18
  %s37 = sld [smem:[%s36]]
  %s38 = scalar_lea.smem %s0, 19
  %s39 = sld [smem:[%s38]]
  %s40 = scalar_lea.smem %s0, 20
  %s41 = sld [smem:[%s40]]
  %s42 = scalar_lea.smem %s0, 21
  %s43 = sld [smem:[%s42]]
  %s44 = scalar_lea.smem %s0, 22
  %s45 = sld [smem:[%s44]]
  %s46 = scalar_lea.smem %s0, 23
  %s47 = sld [smem:[%s46]]
  %s48 = scalar_lea.smem %s0, 24
  %s49 = sld [smem:[%s48]]
  %s50 = scalar_lea.smem %s0, 25
  %s51 = sld [smem:[%s50]]
  %s52 = scalar_lea.smem %s0, 26
  %s53 = sld [smem:[%s52]]
  %s54 = scalar_lea.smem %s0, 27
  %s55 = sld [smem:[%s54]]
  %s56 = scalar_lea.smem %s0, 28
  %s57 = sld [smem:[%s56]]
  %s58 = scalar_lea.smem %s0, 29
  %s59 = sld [smem:[%s58]]
  %s60 = scalar_lea.smem %s0, 30
  %s61 = sld [smem:[%s60]]
  %s62 = scalar_lea.smem %s0, 31
  %s63 = sld [smem:[%s62]]
  %s64 = scalar_lea.smem %s0, 32
  %s65 = sld [smem:[%s64]]
  %s66 = scalar_lea.smem %s0, 33
  %s67 = sld [smem:[%s66]]
  %s68 = scalar_lea.smem %s0, 34
  %s69 = sld [smem:[%s68]]
  %70 = xla_tuple %s47, %s49, %s51, %s53, %s55, %s57, %s59, %s61, %s63, %s65, %s67, %s69
  %s71 = sld [smem:[#allocation0]]
  $region190: #{simsiam_momentum_forward.3} parent=0
    _
  %s73 = ssub.s32 1, %s71
  %s74 = scalar_select 0, %s73, %s71
  // Predicated region
  $region2: #{simsiam_momentum_forward.3} parent=0 // pred_check
    _
  $region3: #{simsiam_momentum_forward.3} parent=0 // pred_check_branch
    %76 = sbr.rel (0) target = $region5
  $region4: #{simsiam_momentum_forward.3} parent=0 // pred_region
    _
  $region5: #{simsiam_momentum_forward.3} parent=0 // pred_fallthru
    _
  // Predicated region
  $region6: #{simsiam_momentum_forward.3} parent=0 // pred_check
    _
  $region7: #{simsiam_momentum_forward.3} parent=0 // pred_check_branch
    %78 = sbr.rel (0) target = $region9
  $region8: #{simsiam_momentum_forward.3} parent=0 // pred_region
    _
  $region9: #{simsiam_momentum_forward.3} parent=0 // pred_fallthru
    _
  // Predicated region
  $region10: #{simsiam_momentum_forward.3} parent=0 // pred_check
    _
  $region11: #{simsiam_momentum_forward.3} parent=0 // pred_check_branch
    %80 = sbr.rel (0) target = $region13
  $region12: #{simsiam_momentum_forward.3} parent=0 // pred_region
    _
  $region13: #{simsiam_momentum_forward.3} parent=0 // pred_fallthru
    _
  // Predicated region
  $region14: #{simsiam_momentum_forward.3} parent=0 // pred_check
    _
  $region15: #{simsiam_momentum_forward.3} parent=0 // pred_check_branch
    %82 = sbr.rel (0) target = $region17
  $region16: #{simsiam_momentum_forward.3} parent=0 // pred_region
    _
  $region17: #{simsiam_momentum_forward.3} parent=0 // pred_fallthru
    _
  // Predicated region
  $region18: #{simsiam_momentum_forward.3} parent=0 // pred_check
    _
  $region19: #{simsiam_momentum_forward.3} parent=0 // pred_check_branch
    %84 = sbr.rel (0) target = $region21
  $region20: #{simsiam_momentum_forward.3} parent=0 // pred_region
    _
  $region21: #{simsiam_momentum_forward.3} parent=0 // pred_fallthru
    _
  // Predicated region
  $region22: #{simsiam_momentum_forward.3} parent=0 // pred_check
    _
  $region23: #{simsiam_momentum_forward.3} parent=0 // pred_check_branch
    %86 = sbr.rel (0) target = $region25
  $region24: #{simsiam_momentum_forward.3} parent=0 // pred_region
    _
  $region25: #{simsiam_momentum_forward.3} parent=0 // pred_fallthru
    _
  // Predicated region
  $region26: #{simsiam_momentum_forward.3} parent=0 // pred_check
    _
  $region27: #{simsiam_momentum_forward.3} parent=0 // pred_check_branch
    %88 = sbr.rel (0) target = $region29
  $region28: #{simsiam_momentum_forward.3} parent=0 // pred_region
    _
  $region29: #{simsiam_momentum_forward.3} parent=0 // pred_fallthru
    _
  // Predicated region
  $region30: #{simsiam_momentum_forward.3} parent=0 // pred_check
    _
  $region31: #{simsiam_momentum_forward.3} parent=0 // pred_check_branch
    %90 = sbr.rel (0) target = $region33
  $region32: #{simsiam_momentum_forward.3} parent=0 // pred_region
    _
  $region33: #{simsiam_momentum_forward.3} parent=0 // pred_fallthru
    _
  // Predicated region
  $region34: #{simsiam_momentum_forward.3} parent=0 // pred_check
    _
  $region35: #{simsiam_momentum_forward.3} parent=0 // pred_check_branch
    %92 = sbr.rel (0) target = $region37
  $region36: #{simsiam_momentum_forward.3} parent=0 // pred_region
    _
  $region37: #{simsiam_momentum_forward.3} parent=0 // pred_fallthru
    _
  // Predicated region
  $region38: #{simsiam_momentum_forward.3} parent=0 // pred_check
    _
  $region39: #{simsiam_momentum_forward.3} parent=0 // pred_check_branch
    %94 = sbr.rel (0) target = $region41
  $region40: #{simsiam_momentum_forward.3} parent=0 // pred_region
    _
  $region41: #{simsiam_momentum_forward.3} parent=0 // pred_fallthru
    _
  // Predicated region
  $region42: #{simsiam_momentum_forward.3} parent=0 // pred_check
    _
  $region43: #{simsiam_momentum_forward.3} parent=0 // pred_check_branch
    %96 = sbr.rel (0) target = $region45
  $region44: #{simsiam_momentum_forward.3} parent=0 // pred_region
    _
  $region45: #{simsiam_momentum_forward.3} parent=0 // pred_fallthru
    _
  // Predicated region
  $region46: #{simsiam_momentum_forward.3} parent=0 // pred_check
    _
  $region47: #{simsiam_momentum_forward.3} parent=0 // pred_check_branch
    %98 = sbr.rel (0) target = $region49
  $region48: #{simsiam_momentum_forward.3} parent=0 // pred_region
    _
  $region49: #{simsiam_momentum_forward.3} parent=0 // pred_fallthru
    _
  // Predicated region
  $region50: #{simsiam_momentum_forward.3} parent=0 // pred_check
    _
  $region51: #{simsiam_momentum_forward.3} parent=0 // pred_check_branch
    %100 = sbr.rel (0) target = $region53
  $region52: #{simsiam_momentum_forward.3} parent=0 // pred_region
    _
  $region53: #{simsiam_momentum_forward.3} parent=0 // pred_fallthru
    _
  // Predicated region
  $region54: #{simsiam_momentum_forward.3} parent=0 // pred_check
    _
  $region55: #{simsiam_momentum_forward.3} parent=0 // pred_check_branch
    %102 = sbr.rel (0) target = $region57
  $region56: #{simsiam_momentum_forward.3} parent=0 // pred_region
    _
  $region57: #{simsiam_momentum_forward.3} parent=0 // pred_fallthru
    _
  // Predicated region
  $region58: #{simsiam_momentum_forward.3} parent=0 // pred_check
    _
  $region59: #{simsiam_momentum_forward.3} parent=0 // pred_check_branch
    %104 = sbr.rel (0) target = $region61
  $region60: #{simsiam_momentum_forward.3} parent=0 // pred_region
    _
  $region61: #{simsiam_momentum_forward.3} parent=0 // pred_fallthru
    _
  // Predicated region
  $region62: #{simsiam_momentum_forward.3} parent=0 // pred_check
    _
  $region63: #{simsiam_momentum_forward.3} parent=0 // pred_check_branch
    %106 = sbr.rel (0) target = $region65
  $region64: #{simsiam_momentum_forward.3} parent=0 // pred_region
    _
  $region65: #{simsiam_momentum_forward.3} parent=0 // pred_fallthru
    _
  // Predicated region
  $region66: #{simsiam_momentum_forward.3} parent=0 // pred_check
    _
  $region67: #{simsiam_momentum_forward.3} parent=0 // pred_check_branch
    %108 = sbr.rel (0) target = $region69
  $region68: #{simsiam_momentum_forward.3} parent=0 // pred_region
    _
  $region69: #{simsiam_momentum_forward.3} parent=0 // pred_fallthru
    _
  // Predicated region
  $region70: #{simsiam_momentum_forward.3} parent=0 // pred_check
    _
  $region71: #{simsiam_momentum_forward.3} parent=0 // pred_check_branch
    %110 = sbr.rel (0) target = $region73
  $region72: #{simsiam_momentum_forward.3} parent=0 // pred_region
    _
  $region73: #{simsiam_momentum_forward.3} parent=0 // pred_fallthru
    _
  // Predicated region
  $region74: #{simsiam_momentum_forward.3} parent=0 // pred_check
    _
  $region75: #{simsiam_momentum_forward.3} parent=0 // pred_check_branch
    %112 = sbr.rel (0) target = $region77
  $region76: #{simsiam_momentum_forward.3} parent=0 // pred_region
    _
  $region77: #{simsiam_momentum_forward.3} parent=0 // pred_fallthru
    _
  // Predicated region
  $region78: #{simsiam_momentum_forward.3} parent=0 // pred_check
    _
  $region79: #{simsiam_momentum_forward.3} parent=0 // pred_check_branch
    %114 = sbr.rel (0) target = $region81
  $region80: #{simsiam_momentum_forward.3} parent=0 // pred_region
    _
  $region81: #{simsiam_momentum_forward.3} parent=0 // pred_fallthru
    _
  // Predicated region
  $region82: #{simsiam_momentum_forward.3} parent=0 // pred_check
    _
  $region83: #{simsiam_momentum_forward.3} parent=0 // pred_check_branch
    %116 = sbr.rel (0) target = $region85
  $region84: #{simsiam_momentum_forward.3} parent=0 // pred_region
    _
  $region85: #{simsiam_momentum_forward.3} parent=0 // pred_fallthru
    _
  // Predicated region
  $region86: #{simsiam_momentum_forward.3} parent=0 // pred_check
    _
  $region87: #{simsiam_momentum_forward.3} parent=0 // pred_check_branch
    %118 = sbr.rel (0) target = $region89
  $region88: #{simsiam_momentum_forward.3} parent=0 // pred_region
    _
  $region89: #{simsiam_momentum_forward.3} parent=0 // pred_fallthru
    _
  // Predicated region
  $region90: #{simsiam_momentum_forward.3} parent=0 // pred_check
    _
  $region91: #{simsiam_momentum_forward.3} parent=0 // pred_check_branch
    %120 = sbr.rel (0) target = $region93
  $region92: #{simsiam_momentum_forward.3} parent=0 // pred_region
    _
  $region93: #{simsiam_momentum_forward.3} parent=0 // pred_fallthru
    _
  %v122 = vld [vmem:[%s3] sm:$0xff]
  %v123 = vld [vmem:[%s3 + $0x8] sm:$0xff]
  %v124 = vld [vmem:[%s3 + $0x10] sm:$0xff]
  %v125 = vld [vmem:[%s3 + $0x18] sm:$0x7]
  %v126 = vmul.f32 %v122, 0.99
  %v127 = vmul.f32 %v123, 0.99
  %v128 = vmul.f32 %v124, 0.99
  %v129 = vmul.f32 %v125, 0.99
  %v130 = vld [vmem:[%s25] sm:$0xff]
  %v131 = vld [vmem:[%s25 + $0x8] sm:$0xff]
  %v132 = vld [vmem:[%s25 + $0x10] sm:$0xff]
  %v133 = vld [vmem:[%s25 + $0x18] sm:$0x7]
  %v134 = vmul.f32 %v130, 0.01
  %v135 = vmul.f32 %v131, 0.01
  %v136 = vmul.f32 %v132, 0.01
  %v137 = vmul.f32 %v133, 0.01
  %v138 = vadd.f32 %v126, %v134
  %v139 = vadd.f32 %v127, %v135
  %v140 = vadd.f32 %v128, %v136
  %v141 = vadd.f32 %v129, %v137
  %vm142 = vcmask 64512
  %143 = vst.msk [vmem:[%s47] sm:$0xff] %vm142, %v138
  %144 = vst.msk [vmem:[%s47 + $0x8] sm:$0xff] %vm142, %v139
  %145 = vst.msk [vmem:[%s47 + $0x10] sm:$0xff] %vm142, %v140
  %vm146 = vcmask 59392
  %147 = vst.msk [vmem:[%s47 + $0x18] sm:$0x7] %vm146, %v141
  %v148 = vld [vmem:[%s5] sm:$0x1]
  %v149 = vmul.f32 %v148, 0.99
  %v150 = vld [vmem:[%s27] sm:$0x1]
  %v151 = vmul.f32 %v150, 0.01
  %v152 = vadd.f32 %v149, %v151
  %vm153 = vcmask 57344
  %154 = vst.msk [vmem:[%s49] sm:$0x1] %vm153, %v152
  %v155 = vld [vmem:[%s7] sm:$0xff]
  %v156 = vmul.f32 %v155, 0.99
  %v157 = vld [vmem:[%s29] sm:$0xff]
  %v158 = vmul.f32 %v157, 0.01
  %v159 = vadd.f32 %v156, %v158
  %vm160 = vcmask 261120
  %161 = vst.msk [vmem:[%s51] sm:$0xff] %vm160, %v159
  %v162 = vld [vmem:[%s9] sm:$0x1]
  %v163 = vmul.f32 %v162, 0.99
  %v164 = vld [vmem:[%s31] sm:$0x1]
  %v165 = vmul.f32 %v164, 0.01
  %v166 = vadd.f32 %v163, %v165
  %vm167 = vcmask 253952
  %168 = vst.msk [vmem:[%s53] sm:$0x1] %vm167, %v166
  %v169 = vld [vmem:[%s11] sm:$0x1]
  %v170 = vmul.f32 %v169, 0.99
  %v171 = vld [vmem:[%s33] sm:$0x1]
  %v172 = vmul.f32 %v171, 0.01
  %v173 = vadd.f32 %v170, %v172
  %174 = vst.msk [vmem:[%s55] sm:$0x1] %vm167, %v173
  %v175 = vld [vmem:[%s13] sm:$0x1]
  %v176 = vmul.f32 %v175, 0.99
  %v177 = vld [vmem:[%s35] sm:$0x1]
  %v178 = vmul.f32 %v177, 0.01
  %v179 = vadd.f32 %v176, %v178
  %180 = vst.msk [vmem:[%s57] sm:$0x1] %vm167, %v179
  %v181 = vld [vmem:[%s15] sm:$0xff]
  %v182 = vld [vmem:[%s15 + $0x8] sm:$0xff]
  %v183 = vld [vmem:[%s15 + $0x10] sm:$0xff]
  %v184 = vld [vmem:[%s15 + $0x18] sm:$0xff]
  %v185 = vmul.f32 %v181, 0.99
  %v186 = vmul.f32 %v182, 0.99
  %v187 = vmul.f32 %v183, 0.99
  %v188 = vmul.f32 %v184, 0.99
  %v189 = vld [vmem:[%s37] sm:$0xff]
  %v190 = vld [vmem:[%s37 + $0x8] sm:$0xff]
  %v191 = vld [vmem:[%s37 + $0x10] sm:$0xff]
  %v192 = vld [vmem:[%s37 + $0x18] sm:$0xff]
  %v193 = vmul.f32 %v189, 0.01
  %v194 = vmul.f32 %v190, 0.01
  %v195 = vmul.f32 %v191, 0.01
  %v196 = vmul.f32 %v192, 0.01
  %v197 = vadd.f32 %v185, %v193
  %v198 = vadd.f32 %v186, %v194
  %v199 = vadd.f32 %v187, %v195
  %v200 = vadd.f32 %v188, %v196
  %201 = vst.msk [vmem:[%s59] sm:$0xff] %vm160, %v197
  %202 = vst.msk [vmem:[%s59 + $0x8] sm:$0xff] %vm160, %v198
  %203 = vst.msk [vmem:[%s59 + $0x10] sm:$0xff] %vm160, %v199
  %204 = vst.msk [vmem:[%s59 + $0x18] sm:$0xff] %vm160, %v200
  %v205 = vld [vmem:[%s17] sm:$0x1]
  %v206 = vmul.f32 %v205, 0.99
  %v207 = vld [vmem:[%s39] sm:$0x1]
  %v208 = vmul.f32 %v207, 0.01
  %v209 = vadd.f32 %v206, %v208
  %210 = vst.msk [vmem:[%s61] sm:$0x1] %vm167, %v209
  %v211 = vld [vmem:[%s19] sm:$0x1]
  %v212 = vmul.f32 %v211, 0.99
  %v213 = vld [vmem:[%s41] sm:$0x1]
  %v214 = vmul.f32 %v213, 0.01
  %v215 = vadd.f32 %v212, %v214
  %216 = vst.msk [vmem:[%s63] sm:$0x1] %vm167, %v215
  %v217 = vld [vmem:[%s21] sm:$0xff]
  %v218 = vld [vmem:[%s21 + $0x8] sm:$0xff]
  %v219 = vld [vmem:[%s21 + $0x10] sm:$0xff]
  %v220 = vld [vmem:[%s21 + $0x18] sm:$0xff]
  %v221 = vmul.f32 %v217, 0.99
  %v222 = vmul.f32 %v218, 0.99
  %v223 = vmul.f32 %v219, 0.99
  %v224 = vmul.f32 %v220, 0.99
  %v225 = vld [vmem:[%s43] sm:$0xff]
  %v226 = vld [vmem:[%s43 + $0x8] sm:$0xff]
  %v227 = vld [vmem:[%s43 + $0x10] sm:$0xff]
  %v228 = vld [vmem:[%s43 + $0x18] sm:$0xff]
  %v229 = vmul.f32 %v225, 0.01
  %v230 = vmul.f32 %v226, 0.01
  %v231 = vmul.f32 %v227, 0.01
  %v232 = vmul.f32 %v228, 0.01
  %v233 = vadd.f32 %v221, %v229
  %v234 = vadd.f32 %v222, %v230
  %v235 = vadd.f32 %v223, %v231
  %v236 = vadd.f32 %v224, %v232
  %vm237 = vcmask 523264
  %238 = vst.msk [vmem:[%s65] sm:$0xff] %vm237, %v233
  %239 = vst.msk [vmem:[%s65 + $0x8] sm:$0xff] %vm237, %v234
  %240 = vst.msk [vmem:[%s65 + $0x10] sm:$0xff] %vm237, %v235
  %241 = vst.msk [vmem:[%s65 + $0x18] sm:$0xff] %vm237, %v236
  %v242 = vld [vmem:[%s23] sm:$0x1]
  %v243 = vmul.f32 %v242, 0.99
  %v244 = vld [vmem:[%s45] sm:$0x1]
  %v245 = vmul.f32 %v244, 0.01
  %v246 = vadd.f32 %v243, %v245
  %vm247 = vcmask 516096
  %248 = vst.msk [vmem:[%s67] sm:$0x1] %vm247, %v246
  %v249 = vld [vmem:[%s47] sm:$0xff]
  %v250 = vld [vmem:[%s47 + $0x8] sm:$0xff]
  %v251 = vld [vmem:[%s47 + $0x10] sm:$0xff]
  %v252 = vld [vmem:[%s47 + $0x18] sm:$0x7]
  %v253 = vld [vmem:[%s49] sm:$0x1]
  %v254 = vld [vmem:[%s51] sm:$0xff]
  %v255 = vld [vmem:[%s53] sm:$0x1]
  %v256 = vld [vmem:[%s55] sm:$0x1]
  %v257 = vld [vmem:[%s57] sm:$0x1]
  %v258 = vld [vmem:[%s59] sm:$0xff]
  %v259 = vld [vmem:[%s59 + $0x8] sm:$0xff]
  %v260 = vld [vmem:[%s59 + $0x10] sm:$0xff]
  %v261 = vld [vmem:[%s59 + $0x18] sm:$0xff]
  %v262 = vld [vmem:[%s61] sm:$0x1]
  %v263 = vld [vmem:[%s63] sm:$0x1]
  %v264 = vld [vmem:[%s65] sm:$0xff]
  %v265 = vld [vmem:[%s65 + $0x8] sm:$0xff]
  %v266 = vld [vmem:[%s65 + $0x10] sm:$0xff]
  %v267 = vld [vmem:[%s65 + $0x18] sm:$0xff]
  %v268 = vld [vmem:[%s67] sm:$0x1]
  %v269 = vld [vmem:[%s1] sm:$0xf]
  %v270 = vld [vmem:[%s1 + $0x4] sm:$0xf]
  %v271 = vld [vmem:[%s1 + $0x8] sm:$0xf]
  %v272 = vld [vmem:[%s1 + $0xc] sm:$0xf]
  %v273 = vld [vmem:[%s1 + $0x10] sm:$0xf]
  %v274 = vld [vmem:[%s1 + $0x14] sm:$0xf]
  %v275 = vld [vmem:[%s1 + $0x18] sm:$0xf]
  %v276 = vld [vmem:[%s1 + $0x1c] sm:$0xf]
  %v277 = vld [vmem:[%s1 + $0x20] sm:$0xf]
  %v278 = vld [vmem:[%s1 + $0x24] sm:$0xf]
  %v279 = vld [vmem:[%s1 + $0x28] sm:$0xf]
  %v280 = vld [vmem:[%s1 + $0x2c] sm:$0xf]
  %v281 = vld [vmem:[%s1 + $0x30] sm:$0xf]
  %v282 = vld [vmem:[%s1 + $0x34] sm:$0xf]
  %v283 = vld [vmem:[%s1 + $0x38] sm:$0xf]
  %v284 = vld [vmem:[%s1 + $0x3c] sm:$0xf]
  %v285 = vld [vmem:[%s1 + $0x40] sm:$0xf]
  %v286 = vld [vmem:[%s1 + $0x44] sm:$0xf]
  %v287 = vld [vmem:[%s1 + $0x48] sm:$0xf]
  %v288 = vld [vmem:[%s1 + $0x4c] sm:$0xf]
  %v289 = vld [vmem:[%s1 + $0x50] sm:$0xf]
  %v290 = vld [vmem:[%s1 + $0x54] sm:$0xf]
  %v291 = vld [vmem:[%s1 + $0x58] sm:$0xf]
  %v292 = vld [vmem:[%s1 + $0x5c] sm:$0xf]
  %v293 = vld [vmem:[%s1 + $0x60] sm:$0xf]
  %v294 = vld [vmem:[%s1 + $0x64] sm:$0xf]
  %v295 = vld [vmem:[%s1 + $0x68] sm:$0xf]
  %v296 = vld [vmem:[%s1 + $0x6c] sm:$0xf]
  %v297 = vld [vmem:[%s1 + $0x70] sm:$0xf]
  %v298 = vld [vmem:[%s1 + $0x74] sm:$0xf]
  %v299 = vld [vmem:[%s1 + $0x78] sm:$0xf]
  %v300 = vld [vmem:[%s1 + $0x7c] sm:$0xf]
  %v301 = vld [vmem:[%s1 + $0x80] sm:$0xf]
  %v302 = vld [vmem:[%s1 + $0x84] sm:$0xf]
  %v303 = vld [vmem:[%s1 + $0x88] sm:$0xf]
  %v304 = vld [vmem:[%s1 + $0x8c] sm:$0xf]
  %v305 = vld [vmem:[%s1 + $0x90] sm:$0xf]
  %v306 = vld [vmem:[%s1 + $0x94] sm:$0xf]
  %v307 = vld [vmem:[%s1 + $0x98] sm:$0xf]
  %v308 = vld [vmem:[%s1 + $0x9c] sm:$0xf]
  %v309 = vld [vmem:[%s1 + $0xa0] sm:$0xf]
  %v310 = vld [vmem:[%s1 + $0xa4] sm:$0xf]
  %v311 = vld [vmem:[%s1 + $0xa8] sm:$0xf]
  %v312 = vld [vmem:[%s1 + $0xac] sm:$0xf]
  %v313 = vld [vmem:[%s1 + $0xb0] sm:$0xf]
  %v314 = vld [vmem:[%s1 + $0xb4] sm:$0xf]
  %v315 = vld [vmem:[%s1 + $0xb8] sm:$0xf]
  %v316 = vld [vmem:[%s1 + $0xbc] sm:$0xf]
  %v317 = vld [vmem:[%s1 + $0xc0] sm:$0xf]
  %v318 = vld [vmem:[%s1 + $0xc4] sm:$0xf]
  %v319 = vld [vmem:[%s1 + $0xc8] sm:$0xf]
  %v320 = vld [vmem:[%s1 + $0xcc] sm:$0xf]
  %v321 = vld [vmem:[%s1 + $0xd0] sm:$0xf]
  %v322 = vld [vmem:[%s1 + $0xd4] sm:$0xf]
  %v323 = vld [vmem:[%s1 + $0xd8] sm:$0xf]
  %v324 = vld [vmem:[%s1 + $0xdc] sm:$0xf]
  %v325 = vld [vmem:[%s1 + $0xe0] sm:$0xf]
  %v326 = vld [vmem:[%s1 + $0xe4] sm:$0xf]
  %v327 = vld [vmem:[%s1 + $0xe8] sm:$0xf]
  %v328 = vld [vmem:[%s1 + $0xec] sm:$0xf]
  %v329 = vld [vmem:[%s1 + $0xf0] sm:$0xf]
  %v330 = vld [vmem:[%s1 + $0xf4] sm:$0xf]
  %v331 = vld [vmem:[%s1 + $0xf8] sm:$0xf]
  %v332 = vld [vmem:[%s1 + $0xfc] sm:$0xf]
  %v333 = vld [vmem:[%s1 + $0x100] sm:$0xf]
  %v334 = vld [vmem:[%s1 + $0x104] sm:$0xf]
  %v335 = vld [vmem:[%s1 + $0x108] sm:$0xf]
  %v336 = vld [vmem:[%s1 + $0x10c] sm:$0xf]
  %v337 = vld [vmem:[%s1 + $0x110] sm:$0xf]
  %v338 = vld [vmem:[%s1 + $0x114] sm:$0xf]
  %v339 = vld [vmem:[%s1 + $0x118] sm:$0xf]
  %v340 = vld [vmem:[%s1 + $0x11c] sm:$0xf]
  %v341 = vld [vmem:[%s1 + $0x120] sm:$0xf]
  %v342 = vld [vmem:[%s1 + $0x124] sm:$0xf]
  %v343 = vld [vmem:[%s1 + $0x128] sm:$0xf]
  %v344 = vld [vmem:[%s1 + $0x12c] sm:$0xf]
  %v345 = vld [vmem:[%s1 + $0x130] sm:$0xf]
  %v346 = vld [vmem:[%s1 + $0x134] sm:$0xf]
  %v347 = vld [vmem:[%s1 + $0x138] sm:$0xf]
  %v348 = vld [vmem:[%s1 + $0x13c] sm:$0xf]
  %v349 = vld [vmem:[%s1 + $0x140] sm:$0xf]
  %v350 = vld [vmem:[%s1 + $0x144] sm:$0xf]
  %v351 = vld [vmem:[%s1 + $0x148] sm:$0xf]
  %v352 = vld [vmem:[%s1 + $0x14c] sm:$0xf]
  %v353 = vld [vmem:[%s1 + $0x150] sm:$0xf]
  %v354 = vld [vmem:[%s1 + $0x154] sm:$0xf]
  %v355 = vld [vmem:[%s1 + $0x158] sm:$0xf]
  %v356 = vld [vmem:[%s1 + $0x15c] sm:$0xf]
  %v357 = vld [vmem:[%s1 + $0x160] sm:$0xf]
  %v358 = vld [vmem:[%s1 + $0x164] sm:$0xf]
  %v359 = vld [vmem:[%s1 + $0x168] sm:$0xf]
  %v360 = vld [vmem:[%s1 + $0x16c] sm:$0xf]
  %v361 = vld [vmem:[%s1 + $0x170] sm:$0xf]
  %v362 = vld [vmem:[%s1 + $0x174] sm:$0xf]
  %v363 = vld [vmem:[%s1 + $0x178] sm:$0xf]
  %v364 = vld [vmem:[%s1 + $0x17c] sm:$0xf]
  %v365 = vld [vmem:[%s1 + $0x180] sm:$0xf]
  %v366 = vld [vmem:[%s1 + $0x184] sm:$0xf]
  %v367 = vld [vmem:[%s1 + $0x188] sm:$0xf]
  %v368 = vld [vmem:[%s1 + $0x18c] sm:$0xf]
  %v369 = vld [vmem:[%s1 + $0x190] sm:$0xf]
  %v370 = vld [vmem:[%s1 + $0x194] sm:$0xf]
  %v371 = vld [vmem:[%s1 + $0x198] sm:$0xf]
  %v372 = vld [vmem:[%s1 + $0x19c] sm:$0xf]
  %v373 = vld [vmem:[%s1 + $0x1a0] sm:$0xf]
  %v374 = vld [vmem:[%s1 + $0x1a4] sm:$0xf]
  %v375 = vld [vmem:[%s1 + $0x1a8] sm:$0xf]
  %v376 = vld [vmem:[%s1 + $0x1ac] sm:$0xf]
  %v377 = vld [vmem:[%s1 + $0x1b0] sm:$0xf]
  %v378 = vld [vmem:[%s1 + $0x1b4] sm:$0xf]
  %v379 = vld [vmem:[%s1 + $0x1b8] sm:$0xf]
  %v380 = vld [vmem:[%s1 + $0x1bc] sm:$0xf]
  %v381 = vld [vmem:[%s1 + $0x1c0] sm:$0xf]
  %v382 = vld [vmem:[%s1 + $0x1c4] sm:$0xf]
  %v383 = vld [vmem:[%s1 + $0x1c8] sm:$0xf]
  %v384 = vld [vmem:[%s1 + $0x1cc] sm:$0xf]
  %v385 = vld [vmem:[%s1 + $0x1d0] sm:$0xf]
  %v386 = vld [vmem:[%s1 + $0x1d4] sm:$0xf]
  %v387 = vld [vmem:[%s1 + $0x1d8] sm:$0xf]
  %v388 = vld [vmem:[%s1 + $0x1dc] sm:$0xf]
  %v389 = vld [vmem:[%s1 + $0x1e0] sm:$0xf]
  %v390 = vld [vmem:[%s1 + $0x1e4] sm:$0xf]
  %v391 = vld [vmem:[%s1 + $0x1e8] sm:$0xf]
  %v392 = vld [vmem:[%s1 + $0x1ec] sm:$0xf]
  %v393 = vld [vmem:[%s1 + $0x1f0] sm:$0xf]
  %v394 = vld [vmem:[%s1 + $0x1f4] sm:$0xf]
  %v395 = vld [vmem:[%s1 + $0x1f8] sm:$0xf]
  %v396 = vld [vmem:[%s1 + $0x1fc] sm:$0xf]
  %v397 = vpack.c.bf16 %v250, %v249
  %v398 = vpack.c.bf16 %v252, %v251
  %v400 = vlaneseq
  %v401 = vshrl.u32 %v400, 7
  %v402 = vsub.s32 0, %v401
  %v403 = vrot.slane %v253, %v402
  %v533 = vunpack.c.l.b16 %v269
  %v534 = vunpack.c.l.b16 %v270
  %v535 = vunpack.c.l.b16 %v271
  %v536 = vunpack.c.l.b16 %v272
  %v537 = vunpack.c.l.b16 %v273
  %v538 = vunpack.c.l.b16 %v274
  %v539 = vunpack.c.l.b16 %v275
  %v540 = vunpack.c.l.b16 %v276
  %v541 = vunpack.c.l.b16 %v277
  %v542 = vunpack.c.l.b16 %v278
  %v543 = vunpack.c.l.b16 %v279
  %v544 = vunpack.c.l.b16 %v280
  %v545 = vunpack.c.l.b16 %v281
  %v546 = vunpack.c.l.b16 %v282
  %v547 = vunpack.c.l.b16 %v283
  %v548 = vunpack.c.l.b16 %v284
  %v549 = vunpack.c.l.b16 %v285
  %v550 = vunpack.c.l.b16 %v286
  %v551 = vunpack.c.l.b16 %v287
  %v552 = vunpack.c.l.b16 %v288
  %v553 = vunpack.c.l.b16 %v289
  %v554 = vunpack.c.l.b16 %v290
  %v555 = vunpack.c.l.b16 %v291
  %v556 = vunpack.c.l.b16 %v292
  %v557 = vunpack.c.l.b16 %v293
  %v558 = vunpack.c.l.b16 %v294
  %v559 = vunpack.c.l.b16 %v295
  %v560 = vunpack.c.l.b16 %v296
  %v561 = vunpack.c.l.b16 %v297
  %v562 = vunpack.c.l.b16 %v298
  %v563 = vunpack.c.l.b16 %v299
  %v564 = vunpack.c.l.b16 %v300
  %v565 = vunpack.c.l.b16 %v301
  %v566 = vunpack.c.l.b16 %v302
  %v567 = vunpack.c.l.b16 %v303
  %v568 = vunpack.c.l.b16 %v304
  %v569 = vunpack.c.l.b16 %v305
  %v570 = vunpack.c.l.b16 %v306
  %v571 = vunpack.c.l.b16 %v307
  %v572 = vunpack.c.l.b16 %v308
  %v573 = vunpack.c.l.b16 %v309
  %v574 = vunpack.c.l.b16 %v310
  %v575 = vunpack.c.l.b16 %v311
  %v576 = vunpack.c.l.b16 %v312
  %v577 = vunpack.c.l.b16 %v313
  %v578 = vunpack.c.l.b16 %v314
  %v579 = vunpack.c.l.b16 %v315
  %v580 = vunpack.c.l.b16 %v316
  %v581 = vunpack.c.l.b16 %v317
  %v582 = vunpack.c.l.b16 %v318
  %v583 = vunpack.c.l.b16 %v319
  %v584 = vunpack.c.l.b16 %v320
  %v585 = vunpack.c.l.b16 %v321
  %v586 = vunpack.c.l.b16 %v322
  %v587 = vunpack.c.l.b16 %v323
  %v588 = vunpack.c.l.b16 %v324
  %v589 = vunpack.c.l.b16 %v325
  %v590 = vunpack.c.l.b16 %v326
  %v591 = vunpack.c.l.b16 %v327
  %v592 = vunpack.c.l.b16 %v328
  %v593 = vunpack.c.l.b16 %v329
  %v594 = vunpack.c.l.b16 %v330
  %v595 = vunpack.c.l.b16 %v331
  %v596 = vunpack.c.l.b16 %v332
  %v597 = vunpack.c.l.b16 %v333
  %v598 = vunpack.c.l.b16 %v334
  %v599 = vunpack.c.l.b16 %v335
  %v600 = vunpack.c.l.b16 %v336
  %v601 = vunpack.c.l.b16 %v337
  %v602 = vunpack.c.l.b16 %v338
  %v603 = vunpack.c.l.b16 %v339
  %v604 = vunpack.c.l.b16 %v340
  %v605 = vunpack.c.l.b16 %v341
  %v606 = vunpack.c.l.b16 %v342
  %v607 = vunpack.c.l.b16 %v343
  %v608 = vunpack.c.l.b16 %v344
  %v609 = vunpack.c.l.b16 %v345
  %v610 = vunpack.c.l.b16 %v346
  %v611 = vunpack.c.l.b16 %v347
  %v612 = vunpack.c.l.b16 %v348
  %v613 = vunpack.c.l.b16 %v349
  %v614 = vunpack.c.l.b16 %v350
  %v615 = vunpack.c.l.b16 %v351
  %v616 = vunpack.c.l.b16 %v352
  %v617 = vunpack.c.l.b16 %v353
  %v618 = vunpack.c.l.b16 %v354
  %v619 = vunpack.c.l.b16 %v355
  %v620 = vunpack.c.l.b16 %v356
  %v621 = vunpack.c.l.b16 %v357
  %v622 = vunpack.c.l.b16 %v358
  %v623 = vunpack.c.l.b16 %v359
  %v624 = vunpack.c.l.b16 %v360
  %v625 = vunpack.c.l.b16 %v361
  %v626 = vunpack.c.l.b16 %v362
  %v627 = vunpack.c.l.b16 %v363
  %v628 = vunpack.c.l.b16 %v364
  %v629 = vunpack.c.l.b16 %v365
  %v630 = vunpack.c.l.b16 %v366
  %v631 = vunpack.c.l.b16 %v367
  %v632 = vunpack.c.l.b16 %v368
  %v633 = vunpack.c.l.b16 %v369
  %v634 = vunpack.c.l.b16 %v370
  %v635 = vunpack.c.l.b16 %v371
  %v636 = vunpack.c.l.b16 %v372
  %v637 = vunpack.c.l.b16 %v373
  %v638 = vunpack.c.l.b16 %v374
  %v639 = vunpack.c.l.b16 %v375
  %v640 = vunpack.c.l.b16 %v376
  %v641 = vunpack.c.l.b16 %v377
  %v642 = vunpack.c.l.b16 %v378
  %v643 = vunpack.c.l.b16 %v379
  %v644 = vunpack.c.l.b16 %v380
  %v645 = vunpack.c.l.b16 %v381
  %v646 = vunpack.c.l.b16 %v382
  %v647 = vunpack.c.l.b16 %v383
  %v648 = vunpack.c.l.b16 %v384
  %v649 = vunpack.c.l.b16 %v385
  %v650 = vunpack.c.l.b16 %v386
  %v651 = vunpack.c.l.b16 %v387
  %v652 = vunpack.c.l.b16 %v388
  %v653 = vunpack.c.l.b16 %v389
  %v654 = vunpack.c.l.b16 %v390
  %v655 = vunpack.c.l.b16 %v391
  %v656 = vunpack.c.l.b16 %v392
  %v657 = vunpack.c.l.b16 %v393
  %v658 = vunpack.c.l.b16 %v394
  %v659 = vunpack.c.l.b16 %v395
  %v660 = vunpack.c.l.b16 %v396
  %v661 = vpack.c.b16 %v534, %v533
  %v662 = vpack.c.b16 %v536, %v535
  %v663 = vpack.c.b16 %v538, %v537
  %v664 = vpack.c.b16 %v540, %v539
  %v665 = vpack.c.b16 %v542, %v541
  %v666 = vpack.c.b16 %v544, %v543
  %v667 = vpack.c.b16 %v546, %v545
  %v668 = vpack.c.b16 %v548, %v547
  %v669 = vpack.c.b16 %v550, %v549
  %v670 = vpack.c.b16 %v552, %v551
  %v671 = vpack.c.b16 %v554, %v553
  %v672 = vpack.c.b16 %v556, %v555
  %v673 = vpack.c.b16 %v558, %v557
  %v674 = vpack.c.b16 %v560, %v559
  %v675 = vpack.c.b16 %v562, %v561
  %v676 = vpack.c.b16 %v564, %v563
  %v677 = vpack.c.b16 %v566, %v565
  %v678 = vpack.c.b16 %v568, %v567
  %v679 = vpack.c.b16 %v570, %v569
  %v680 = vpack.c.b16 %v572, %v571
  %v681 = vpack.c.b16 %v574, %v573
  %v682 = vpack.c.b16 %v576, %v575
  %v683 = vpack.c.b16 %v578, %v577
  %v684 = vpack.c.b16 %v580, %v579
  %v685 = vpack.c.b16 %v582, %v581
  %v686 = vpack.c.b16 %v584, %v583
  %v687 = vpack.c.b16 %v586, %v585
  %v688 = vpack.c.b16 %v588, %v587
  %v689 = vpack.c.b16 %v590, %v589
  %v690 = vpack.c.b16 %v592, %v591
  %v691 = vpack.c.b16 %v594, %v593
  %v692 = vpack.c.b16 %v596, %v595
  %v693 = vpack.c.b16 %v598, %v597
  %v694 = vpack.c.b16 %v600, %v599
  %v695 = vpack.c.b16 %v602, %v601
  %v696 = vpack.c.b16 %v604, %v603
  %v697 = vpack.c.b16 %v606, %v605
  %v698 = vpack.c.b16 %v608, %v607
  %v699 = vpack.c.b16 %v610, %v609
  %v700 = vpack.c.b16 %v612, %v611
  %v701 = vpack.c.b16 %v614, %v613
  %v702 = vpack.c.b16 %v616, %v615
  %v703 = vpack.c.b16 %v618, %v617
  %v704 = vpack.c.b16 %v620, %v619
  %v705 = vpack.c.b16 %v622, %v621
  %v706 = vpack.c.b16 %v624, %v623
  %v707 = vpack.c.b16 %v626, %v625
  %v708 = vpack.c.b16 %v628, %v627
  %v709 = vpack.c.b16 %v630, %v629
  %v710 = vpack.c.b16 %v632, %v631
  %v711 = vpack.c.b16 %v634, %v633
  %v712 = vpack.c.b16 %v636, %v635
  %v713 = vpack.c.b16 %v638, %v637
  %v714 = vpack.c.b16 %v640, %v639
  %v715 = vpack.c.b16 %v642, %v641
  %v716 = vpack.c.b16 %v644, %v643
  %v717 = vpack.c.b16 %v646, %v645
  %v718 = vpack.c.b16 %v648, %v647
  %v719 = vpack.c.b16 %v650, %v649
  %v720 = vpack.c.b16 %v652, %v651
  %v721 = vpack.c.b16 %v654, %v653
  %v722 = vpack.c.b16 %v656, %v655
  %v723 = vpack.c.b16 %v658, %v657
  %v724 = vpack.c.b16 %v660, %v659
  %vm725 = vcmask 220160
  %v727 = vsel %vm725, %v661, 0
  %v730 = vsel %vm725, %v662, 0
  %v733 = vsel %vm725, %v663, 0
  %v736 = vsel %vm725, %v664, 0
  %v739 = vsel %vm725, %v665, 0
  %v742 = vsel %vm725, %v666, 0
  %v745 = vsel %vm725, %v667, 0
  %v748 = vsel %vm725, %v668, 0
  %v751 = vsel %vm725, %v669, 0
  %v754 = vsel %vm725, %v670, 0
  %v757 = vsel %vm725, %v671, 0
  %v760 = vsel %vm725, %v672, 0
  %v763 = vsel %vm725, %v673, 0
  %v766 = vsel %vm725, %v674, 0
  %v769 = vsel %vm725, %v675, 0
  %v772 = vsel %vm725, %v676, 0
  %v775 = vsel %vm725, %v677, 0
  %v778 = vsel %vm725, %v678, 0
  %v781 = vsel %vm725, %v679, 0
  %v784 = vsel %vm725, %v680, 0
  %v787 = vsel %vm725, %v681, 0
  %v790 = vsel %vm725, %v682, 0
  %v793 = vsel %vm725, %v683, 0
  %v796 = vsel %vm725, %v684, 0
  %v799 = vsel %vm725, %v685, 0
  %v802 = vsel %vm725, %v686, 0
  %v805 = vsel %vm725, %v687, 0
  %v808 = vsel %vm725, %v688, 0
  %v811 = vsel %vm725, %v689, 0
  %v814 = vsel %vm725, %v690, 0
  %v817 = vsel %vm725, %v691, 0
  %v820 = vsel %vm725, %v692, 0
  %v823 = vsel %vm725, %v693, 0
  %v826 = vsel %vm725, %v694, 0
  %v829 = vsel %vm725, %v695, 0
  %v832 = vsel %vm725, %v696, 0
  %v835 = vsel %vm725, %v697, 0
  %v838 = vsel %vm725, %v698, 0
  %v841 = vsel %vm725, %v699, 0
  %v844 = vsel %vm725, %v700, 0
  %v847 = vsel %vm725, %v701, 0
  %v850 = vsel %vm725, %v702, 0
  %v853 = vsel %vm725, %v703, 0
  %v856 = vsel %vm725, %v704, 0
  %v859 = vsel %vm725, %v705, 0
  %v862 = vsel %vm725, %v706, 0
  %v865 = vsel %vm725, %v707, 0
  %v868 = vsel %vm725, %v708, 0
  %v871 = vsel %vm725, %v709, 0
  %v874 = vsel %vm725, %v710, 0
  %v877 = vsel %vm725, %v711, 0
  %v880 = vsel %vm725, %v712, 0
  %v883 = vsel %vm725, %v713, 0
  %v886 = vsel %vm725, %v714, 0
  %v889 = vsel %vm725, %v715, 0
  %v892 = vsel %vm725, %v716, 0
  %v895 = vsel %vm725, %v717, 0
  %v898 = vsel %vm725, %v718, 0
  %v901 = vsel %vm725, %v719, 0
  %v904 = vsel %vm725, %v720, 0
  %v907 = vsel %vm725, %v721, 0
  %v910 = vsel %vm725, %v722, 0
  %v913 = vsel %vm725, %v723, 0
  %v916 = vsel %vm725, %v724, 0
  %vm918 = vcmask 1044480
  %vm919 = vcmask 1045504
  %v920 = vsel %vm918, 4294967295, 65535
  %v921 = vsel %vm919, %v920, 0
  %v923 = vand.u32 %v398, %v921
  %925 = vmatprep.subr.bf16.mxu0 0
  %926 = vmatpush1.bf16.msra.mxu0 %v397
  %927 = vmatprep.subr.bf16.mxu0 0
  %928 = vmatpush1.bf16.msra.mxu0 %v923
  %929 = vmatprep.subr.bf16.mxu0 0
  %930 = vmatpush1.bf16.msra.mxu0 0
  %931 = vmatprep.subr.bf16.mxu0 0
  %932 = vmatpush1.bf16.msra.mxu0 0
  %933 = vmatprep.subr.bf16.mxu0 0
  %934 = vmatpush1.bf16.msra.mxu0 0
  %935 = vmatprep.subr.bf16.mxu0 0
  %936 = vmatpush1.bf16.msra.mxu0 0
  %937 = vmatprep.subr.bf16.mxu0 0
  %938 = vmatpush1.bf16.msra.mxu0 0
  %939 = vmatprep.subr.bf16.mxu0 0
  %940 = vmatpush1.bf16.msra.mxu0 0
  %941 = vmatprep.subr.bf16.mxu0 0
  %942 = vmatpush1.bf16.msra.mxu0 0
  %943 = vmatprep.subr.bf16.mxu0 0
  %944 = vmatpush1.bf16.msra.mxu0 0
  %945 = vmatprep.subr.bf16.mxu0 0
  %946 = vmatpush1.bf16.msra.mxu0 0
  %947 = vmatprep.subr.bf16.mxu0 0
  %948 = vmatpush1.bf16.msra.mxu0 0
  %949 = vmatprep.subr.bf16.mxu0 0
  %950 = vmatpush1.bf16.msra.mxu0 0
  %951 = vmatprep.subr.bf16.mxu0 0
  %952 = vmatpush1.bf16.msra.mxu0 0
  %953 = vmatprep.subr.bf16.mxu0 0
  %954 = vmatpush1.bf16.msra.mxu0 0
  %955 = vmatprep.subr.bf16.mxu0 0
  %956 = vmatpush1.bf16.msra.mxu0 0
  %957 = vmatprep.mubr.bf16.mxu0 0
  %958 = vmatmul.mubr.bf16.gmra.mrb[0].mxu0 %v727
  %v959 = vpop.f32.mrb[0].mxu0
  %v960 = vadd.f32 %v403, %v959
  %v961 = vpop.f32.mrb[0].mxu0
  %v962 = vpop.f32.mrb[0].mxu0
  %v963 = vadd.f32 %v403, %v962
  %v964 = vpop.f32.mrb[0].mxu0
  %965 = vmatprep.mubr.bf16.mxu0 0
  %966 = vmatmul.mubr.bf16.gmra.mrb[0].mxu0 %v730
  %v967 = vpop.f32.mrb[0].mxu0
  %v968 = vadd.f32 %v403, %v967
  %v969 = vpop.f32.mrb[0].mxu0
  %v970 = vpop.f32.mrb[0].mxu0
  %v971 = vadd.f32 %v403, %v970
  %v972 = vpop.f32.mrb[0].mxu0
  %973 = vmatprep.mubr.bf16.mxu0 0
  %974 = vmatmul.mubr.bf16.gmra.mrb[0].mxu0 %v733
  %v975 = vpop.f32.mrb[0].mxu0
  %v976 = vadd.f32 %v403, %v975
  %v977 = vpop.f32.mrb[0].mxu0
  %v978 = vpop.f32.mrb[0].mxu0
  %v979 = vadd.f32 %v403, %v978
  %v980 = vpop.f32.mrb[0].mxu0
  %981 = vmatprep.mubr.bf16.mxu0 0
  %982 = vmatmul.mubr.bf16.gmra.mrb[0].mxu0 %v736
  %v983 = vpop.f32.mrb[0].mxu0
  %v984 = vadd.f32 %v403, %v983
  %v985 = vpop.f32.mrb[0].mxu0
  %v986 = vpop.f32.mrb[0].mxu0
  %v987 = vadd.f32 %v403, %v986
  %v988 = vpop.f32.mrb[0].mxu0
  %989 = vmatprep.mubr.bf16.mxu0 0
  %990 = vmatmul.mubr.bf16.gmra.mrb[0].mxu0 %v739
  %v991 = vpop.f32.mrb[0].mxu0
  %v992 = vadd.f32 %v403, %v991
  %v993 = vpop.f32.mrb[0].mxu0
  %v994 = vpop.f32.mrb[0].mxu0
  %v995 = vadd.f32 %v403, %v994
  %v996 = vpop.f32.mrb[0].mxu0
  %997 = vmatprep.mubr.bf16.mxu0 0
  %998 = vmatmul.mubr.bf16.gmra.mrb[0].mxu0 %v742
  %v999 = vpop.f32.mrb[0].mxu0
  %v1000 = vadd.f32 %v403, %v999
  %v1001 = vpop.f32.mrb[0].mxu0
  %v1002 = vpop.f32.mrb[0].mxu0
  %v1003 = vadd.f32 %v403, %v1002
  %v1004 = vpop.f32.mrb[0].mxu0
  %1005 = vmatprep.mubr.bf16.mxu0 0
  %1006 = vmatmul.mubr.bf16.gmra.mrb[0].mxu0 %v745
  %v1007 = vpop.f32.mrb[0].mxu0
  %v1008 = vadd.f32 %v403, %v1007
  %v1009 = vpop.f32.mrb[0].mxu0
  %v1010 = vpop.f32.mrb[0].mxu0
  %v1011 = vadd.f32 %v403, %v1010
  %v1012 = vpop.f32.mrb[0].mxu0
  %1013 = vmatprep.mubr.bf16.mxu0 0
  %1014 = vmatmul.mubr.bf16.gmra.mrb[0].mxu0 %v748
  %v1015 = vpop.f32.mrb[0].mxu0
  %v1016 = vadd.f32 %v403, %v1015
  %v1017 = vpop.f32.mrb[0].mxu0
  %v1018 = vpop.f32.mrb[0].mxu0
  %v1019 = vadd.f32 %v403, %v1018
  %v1020 = vpop.f32.mrb[0].mxu0
  %1021 = vmatprep.mubr.bf16.mxu0 0
  %1022 = vmatmul.mubr.bf16.gmra.mrb[0].mxu0 %v751
  %v1023 = vpop.f32.mrb[0].mxu0
  %v1024 = vadd.f32 %v403, %v1023
  %v1025 = vpop.f32.mrb[0].mxu0
  %v1026 = vpop.f32.mrb[0].mxu0
  %v1027 = vadd.f32 %v403, %v1026
  %v1028 = vpop.f32.mrb[0].mxu0
  %1029 = vmatprep.mubr.bf16.mxu0 0
  %1030 = vmatmul.mubr.bf16.gmra.mrb[0].mxu0 %v754
  %v1031 = vpop.f32.mrb[0].mxu0
  %v1032 = vadd.f32 %v403, %v1031
  %v1033 = vpop.f32.mrb[0].mxu0
  %v1034 = vpop.f32.mrb[0].mxu0
  %v1035 = vadd.f32 %v403, %v1034
  %v1036 = vpop.f32.mrb[0].mxu0
  %1037 = vmatprep.mubr.bf16.mxu0 0
  %1038 = vmatmul.mubr.bf16.gmra.mrb[0].mxu0 %v757
  %v1039 = vpop.f32.mrb[0].mxu0
  %v1040 = vadd.f32 %v403, %v1039
  %v1041 = vpop.f32.mrb[0].mxu0
  %v1042 = vpop.f32.mrb[0].mxu0
  %v1043 = vadd.f32 %v403, %v1042
  %v1044 = vpop.f32.mrb[0].mxu0
  %1045 = vmatprep.mubr.bf16.mxu0 0
  %1046 = vmatmul.mubr.bf16.gmra.mrb[0].mxu0 %v760
  %v1047 = vpop.f32.mrb[0].mxu0
  %v1048 = vadd.f32 %v403, %v1047
  %v1049 = vpop.f32.mrb[0].mxu0
  %v1050 = vpop.f32.mrb[0].mxu0
  %v1051 = vadd.f32 %v403, %v1050
  %v1052 = vpop.f32.mrb[0].mxu0
  %1053 = vmatprep.mubr.bf16.mxu0 0
  %1054 = vmatmul.mubr.bf16.gmra.mrb[0].mxu0 %v763
  %v1055 = vpop.f32.mrb[0].mxu0
  %v1056 = vadd.f32 %v403, %v1055
  %v1057 = vpop.f32.mrb[0].mxu0
  %v1058 = vpop.f32.mrb[0].mxu0
  %v1059 = vadd.f32 %v403, %v1058
  %v1060 = vpop.f32.mrb[0].mxu0
  %1061 = vmatprep.mubr.bf16.mxu0 0
  %1062 = vmatmul.mubr.bf16.gmra.mrb[0].mxu0 %v766
  %v1063 = vpop.f32.mrb[0].mxu0
  %v1064 = vadd.f32 %v403, %v1063
  %v1065 = vpop.f32.mrb[0].mxu0
  %v1066 = vpop.f32.mrb[0].mxu0
  %v1067 = vadd.f32 %v403, %v1066
  %v1068 = vpop.f32.mrb[0].mxu0
  %1069 = vmatprep.mubr.bf16.mxu0 0
  %1070 = vmatmul.mubr.bf16.gmra.mrb[0].mxu0 %v769
  %v1071 = vpop.f32.mrb[0].mxu0
  %v1072 = vadd.f32 %v403, %v1071
  %v1073 = vpop.f32.mrb[0].mxu0
  %v1074 = vpop.f32.mrb[0].mxu0
  %v1075 = vadd.f32 %v403, %v1074
  %v1076 = vpop.f32.mrb[0].mxu0
  %1077 = vmatprep.mubr.bf16.mxu0 0
  %1078 = vmatmul.mubr.bf16.gmra.mrb[0].mxu0 %v772
  %v1079 = vpop.f32.mrb[0].mxu0
  %v1080 = vadd.f32 %v403, %v1079
  %v1081 = vpop.f32.mrb[0].mxu0
  %v1082 = vpop.f32.mrb[0].mxu0
  %v1083 = vadd.f32 %v403, %v1082
  %v1084 = vpop.f32.mrb[0].mxu0
  %1085 = vmatprep.mubr.bf16.mxu0 0
  %1086 = vmatmul.mubr.bf16.gmra.mrb[0].mxu0 %v775
  %v1087 = vpop.f32.mrb[0].mxu0
  %v1088 = vadd.f32 %v403, %v1087
  %v1089 = vpop.f32.mrb[0].mxu0
  %v1090 = vpop.f32.mrb[0].mxu0
  %v1091 = vadd.f32 %v403, %v1090
  %v1092 = vpop.f32.mrb[0].mxu0
  %1093 = vmatprep.mubr.bf16.mxu0 0
  %1094 = vmatmul.mubr.bf16.gmra.mrb[0].mxu0 %v778
  %v1095 = vpop.f32.mrb[0].mxu0
  %v1096 = vadd.f32 %v403, %v1095
  %v1097 = vpop.f32.mrb[0].mxu0
  %v1098 = vpop.f32.mrb[0].mxu0
  %v1099 = vadd.f32 %v403, %v1098
  %v1100 = vpop.f32.mrb[0].mxu0
  %1101 = vmatprep.mubr.bf16.mxu0 0
  %1102 = vmatmul.mubr.bf16.gmra.mrb[0].mxu0 %v781
  %v1103 = vpop.f32.mrb[0].mxu0
  %v1104 = vadd.f32 %v403, %v1103
  %v1105 = vpop.f32.mrb[0].mxu0
  %v1106 = vpop.f32.mrb[0].mxu0
  %v1107 = vadd.f32 %v403, %v1106
  %v1108 = vpop.f32.mrb[0].mxu0
  %1109 = vmatprep.mubr.bf16.mxu0 0
  %1110 = vmatmul.mubr.bf16.gmra.mrb[0].mxu0 %v784
  %v1111 = vpop.f32.mrb[0].mxu0
  %v1112 = vadd.f32 %v403, %v1111
  %v1113 = vpop.f32.mrb[0].mxu0
  %v1114 = vpop.f32.mrb[0].mxu0
  %v1115 = vadd.f32 %v403, %v1114
  %v1116 = vpop.f32.mrb[0].mxu0
  %1117 = vmatprep.mubr.bf16.mxu0 0
  %1118 = vmatmul.mubr.bf16.gmra.mrb[0].mxu0 %v787
  %v1119 = vpop.f32.mrb[0].mxu0
  %v1120 = vadd.f32 %v403, %v1119
  %v1121 = vpop.f32.mrb[0].mxu0
  %v1122 = vpop.f32.mrb[0].mxu0
  %v1123 = vadd.f32 %v403, %v1122
  %v1124 = vpop.f32.mrb[0].mxu0
  %1125 = vmatprep.mubr.bf16.mxu0 0
  %1126 = vmatmul.mubr.bf16.gmra.mrb[0].mxu0 %v790
  %v1127 = vpop.f32.mrb[0].mxu0
  %v1128 = vadd.f32 %v403, %v1127
  %v1129 = vpop.f32.mrb[0].mxu0
  %v1130 = vpop.f32.mrb[0].mxu0
  %v1131 = vadd.f32 %v403, %v1130
  %v1132 = vpop.f32.mrb[0].mxu0
  %1133 = vmatprep.mubr.bf16.mxu0 0
  %1134 = vmatmul.mubr.bf16.gmra.mrb[0].mxu0 %v793
  %v1135 = vpop.f32.mrb[0].mxu0
  %v1136 = vadd.f32 %v403, %v1135
  %v1137 = vpop.f32.mrb[0].mxu0
  %v1138 = vpop.f32.mrb[0].mxu0
  %v1139 = vadd.f32 %v403, %v1138
  %v1140 = vpop.f32.mrb[0].mxu0
  %1141 = vmatprep.mubr.bf16.mxu0 0
  %1142 = vmatmul.mubr.bf16.gmra.mrb[0].mxu0 %v796
  %v1143 = vpop.f32.mrb[0].mxu0
  %v1144 = vadd.f32 %v403, %v1143
  %v1145 = vpop.f32.mrb[0].mxu0
  %v1146 = vpop.f32.mrb[0].mxu0
  %v1147 = vadd.f32 %v403, %v1146
  %v1148 = vpop.f32.mrb[0].mxu0
  %1149 = vmatprep.mubr.bf16.mxu0 0
  %1150 = vmatmul.mubr.bf16.gmra.mrb[0].mxu0 %v799
  %v1151 = vpop.f32.mrb[0].mxu0
  %v1152 = vadd.f32 %v403, %v1151
  %v1153 = vpop.f32.mrb[0].mxu0
  %v1154 = vpop.f32.mrb[0].mxu0
  %v1155 = vadd.f32 %v403, %v1154
  %v1156 = vpop.f32.mrb[0].mxu0
  %1157 = vmatprep.mubr.bf16.mxu0 0
  %1158 = vmatmul.mubr.bf16.gmra.mrb[0].mxu0 %v802
  %v1159 = vpop.f32.mrb[0].mxu0
  %v1160 = vadd.f32 %v403, %v1159
  %v1161 = vpop.f32.mrb[0].mxu0
  %v1162 = vpop.f32.mrb[0].mxu0
  %v1163 = vadd.f32 %v403, %v1162
  %v1164 = vpop.f32.mrb[0].mxu0
  %1165 = vmatprep.mubr.bf16.mxu0 0
  %1166 = vmatmul.mubr.bf16.gmra.mrb[0].mxu0 %v805
  %v1167 = vpop.f32.mrb[0].mxu0
  %v1168 = vadd.f32 %v403, %v1167
  %v1169 = vpop.f32.mrb[0].mxu0
  %v1170 = vpop.f32.mrb[0].mxu0
  %v1171 = vadd.f32 %v403, %v1170
  %v1172 = vpop.f32.mrb[0].mxu0
  %1173 = vmatprep.mubr.bf16.mxu0 0
  %1174 = vmatmul.mubr.bf16.gmra.mrb[0].mxu0 %v808
  %v1175 = vpop.f32.mrb[0].mxu0
  %v1176 = vadd.f32 %v403, %v1175
  %v1177 = vpop.f32.mrb[0].mxu0
  %v1178 = vpop.f32.mrb[0].mxu0
  %v1179 = vadd.f32 %v403, %v1178
  %v1180 = vpop.f32.mrb[0].mxu0
  %1181 = vmatprep.mubr.bf16.mxu0 0
  %1182 = vmatmul.mubr.bf16.gmra.mrb[0].mxu0 %v811
  %v1183 = vpop.f32.mrb[0].mxu0
  %v1184 = vadd.f32 %v403, %v1183
  %v1185 = vpop.f32.mrb[0].mxu0
  %v1186 = vpop.f32.mrb[0].mxu0
  %v1187 = vadd.f32 %v403, %v1186
  %v1188 = vpop.f32.mrb[0].mxu0
  %1189 = vmatprep.mubr.bf16.mxu0 0
  %1190 = vmatmul.mubr.bf16.gmra.mrb[0].mxu0 %v814
  %v1191 = vpop.f32.mrb[0].mxu0
  %v1192 = vadd.f32 %v403, %v1191
  %v1193 = vpop.f32.mrb[0].mxu0
  %v1194 = vpop.f32.mrb[0].mxu0
  %v1195 = vadd.f32 %v403, %v1194
  %v1196 = vpop.f32.mrb[0].mxu0
  %1197 = vmatprep.mubr.bf16.mxu0 0
  %1198 = vmatmul.mubr.bf16.gmra.mrb[0].mxu0 %v817
  %v1199 = vpop.f32.mrb[0].mxu0
  %v1200 = vadd.f32 %v403, %v1199
  %v1201 = vpop.f32.mrb[0].mxu0
  %v1202 = vpop.f32.mrb[0].mxu0
  %v1203 = vadd.f32 %v403, %v1202
  %v1204 = vpop.f32.mrb[0].mxu0
  %1205 = vmatprep.mubr.bf16.mxu0 0
  %1206 = vmatmul.mubr.bf16.gmra.mrb[0].mxu0 %v820
  %v1207 = vpop.f32.mrb[0].mxu0
  %v1208 = vadd.f32 %v403, %v1207
  %v1209 = vpop.f32.mrb[0].mxu0
  %v1210 = vpop.f32.mrb[0].mxu0
  %v1211 = vadd.f32 %v403, %v1210
  %v1212 = vpop.f32.mrb[0].mxu0
  %1213 = vmatprep.mubr.bf16.mxu0 0
  %1214 = vmatmul.mubr.bf16.gmra.mrb[0].mxu0 %v823
  %v1215 = vpop.f32.mrb[0].mxu0
  %v1216 = vadd.f32 %v403, %v1215
  %v1217 = vpop.f32.mrb[0].mxu0
  %v1218 = vpop.f32.mrb[0].mxu0
  %v1219 = vadd.f32 %v403, %v1218
  %v1220 = vpop.f32.mrb[0].mxu0
  %1221 = vmatprep.mubr.bf16.mxu0 0
  %1222 = vmatmul.mubr.bf16.gmra.mrb[0].mxu0 %v826
  %v1223 = vpop.f32.mrb[0].mxu0
  %v1224 = vadd.f32 %v403, %v1223
  %v1225 = vpop.f32.mrb[0].mxu0
  %v1226 = vpop.f32.mrb[0].mxu0
  %v1227 = vadd.f32 %v403, %v1226
  %v1228 = vpop.f32.mrb[0].mxu0
  %1229 = vmatprep.mubr.bf16.mxu0 0
  %1230 = vmatmul.mubr.bf16.gmra.mrb[0].mxu0 %v829
  %v1231 = vpop.f32.mrb[0].mxu0
  %v1232 = vadd.f32 %v403, %v1231
  %v1233 = vpop.f32.mrb[0].mxu0
  %v1234 = vpop.f32.mrb[0].mxu0
  %v1235 = vadd.f32 %v403, %v1234
  %v1236 = vpop.f32.mrb[0].mxu0
  %1237 = vmatprep.mubr.bf16.mxu0 0
  %1238 = vmatmul.mubr.bf16.gmra.mrb[0].mxu0 %v832
  %v1239 = vpop.f32.mrb[0].mxu0
  %v1240 = vadd.f32 %v403, %v1239
  %v1241 = vpop.f32.mrb[0].mxu0
  %v1242 = vpop.f32.mrb[0].mxu0
  %v1243 = vadd.f32 %v403, %v1242
  %v1244 = vpop.f32.mrb[0].mxu0
  %1245 = vmatprep.mubr.bf16.mxu0 0
  %1246 = vmatmul.mubr.bf16.gmra.mrb[0].mxu0 %v835
  %v1247 = vpop.f32.mrb[0].mxu0
  %v1248 = vadd.f32 %v403, %v1247
  %v1249 = vpop.f32.mrb[0].mxu0
  %v1250 = vpop.f32.mrb[0].mxu0
  %v1251 = vadd.f32 %v403, %v1250
  %v1252 = vpop.f32.mrb[0].mxu0
  %1253 = vmatprep.mubr.bf16.mxu0 0
  %1254 = vmatmul.mubr.bf16.gmra.mrb[0].mxu0 %v838
  %v1255 = vpop.f32.mrb[0].mxu0
  %v1256 = vadd.f32 %v403, %v1255
  %v1257 = vpop.f32.mrb[0].mxu0
  %v1258 = vpop.f32.mrb[0].mxu0
  %v1259 = vadd.f32 %v403, %v1258
  %v1260 = vpop.f32.mrb[0].mxu0
  %1261 = vmatprep.mubr.bf16.mxu0 0
  %1262 = vmatmul.mubr.bf16.gmra.mrb[0].mxu0 %v841
  %v1263 = vpop.f32.mrb[0].mxu0
  %v1264 = vadd.f32 %v403, %v1263
  %v1265 = vpop.f32.mrb[0].mxu0
  %v1266 = vpop.f32.mrb[0].mxu0
  %v1267 = vadd.f32 %v403, %v1266
  %v1268 = vpop.f32.mrb[0].mxu0
  %1269 = vmatprep.mubr.bf16.mxu0 0
  %1270 = vmatmul.mubr.bf16.gmra.mrb[0].mxu0 %v844
  %v1271 = vpop.f32.mrb[0].mxu0
  %v1272 = vadd.f32 %v403, %v1271
  %v1273 = vpop.f32.mrb[0].mxu0
  %v1274 = vpop.f32.mrb[0].mxu0
  %v1275 = vadd.f32 %v403, %v1274
  %v1276 = vpop.f32.mrb[0].mxu0
  %1277 = vmatprep.mubr.bf16.mxu0 0
  %1278 = vmatmul.mubr.bf16.gmra.mrb[0].mxu0 %v847
  %v1279 = vpop.f32.mrb[0].mxu0
  %v1280 = vadd.f32 %v403, %v1279
  %v1281 = vpop.f32.mrb[0].mxu0
  %v1282 = vpop.f32.mrb[0].mxu0
  %v1283 = vadd.f32 %v403, %v1282
  %v1284 = vpop.f32.mrb[0].mxu0
  %1285 = vmatprep.mubr.bf16.mxu0 0
  %1286 = vmatmul.mubr.bf16.gmra.mrb[0].mxu0 %v850
  %v1287 = vpop.f32.mrb[0].mxu0
  %v1288 = vadd.f32 %v403, %v1287
  %v1289 = vpop.f32.mrb[0].mxu0
  %v1290 = vpop.f32.mrb[0].mxu0
  %v1291 = vadd.f32 %v403, %v1290
  %v1292 = vpop.f32.mrb[0].mxu0
  %1293 = vmatprep.mubr.bf16.mxu0 0
  %1294 = vmatmul.mubr.bf16.gmra.mrb[0].mxu0 %v853
  %v1295 = vpop.f32.mrb[0].mxu0
  %v1296 = vadd.f32 %v403, %v1295
  %v1297 = vpop.f32.mrb[0].mxu0
  %v1298 = vpop.f32.mrb[0].mxu0
  %v1299 = vadd.f32 %v403, %v1298
  %v1300 = vpop.f32.mrb[0].mxu0
  %1301 = vmatprep.mubr.bf16.mxu0 0
  %1302 = vmatmul.mubr.bf16.gmra.mrb[0].mxu0 %v856
  %v1303 = vpop.f32.mrb[0].mxu0
  %v1304 = vadd.f32 %v403, %v1303
  %v1305 = vpop.f32.mrb[0].mxu0
  %v1306 = vpop.f32.mrb[0].mxu0
  %v1307 = vadd.f32 %v403, %v1306
  %v1308 = vpop.f32.mrb[0].mxu0
  %1309 = vmatprep.mubr.bf16.mxu0 0
  %1310 = vmatmul.mubr.bf16.gmra.mrb[0].mxu0 %v859
  %v1311 = vpop.f32.mrb[0].mxu0
  %v1312 = vadd.f32 %v403, %v1311
  %v1313 = vpop.f32.mrb[0].mxu0
  %v1314 = vpop.f32.mrb[0].mxu0
  %v1315 = vadd.f32 %v403, %v1314
  %v1316 = vpop.f32.mrb[0].mxu0
  %1317 = vmatprep.mubr.bf16.mxu0 0
  %1318 = vmatmul.mubr.bf16.gmra.mrb[0].mxu0 %v862
  %v1319 = vpop.f32.mrb[0].mxu0
  %v1320 = vadd.f32 %v403, %v1319
  %v1321 = vpop.f32.mrb[0].mxu0
  %v1322 = vpop.f32.mrb[0].mxu0
  %v1323 = vadd.f32 %v403, %v1322
  %v1324 = vpop.f32.mrb[0].mxu0
  %1325 = vmatprep.mubr.bf16.mxu0 0
  %1326 = vmatmul.mubr.bf16.gmra.mrb[0].mxu0 %v865
  %v1327 = vpop.f32.mrb[0].mxu0
  %v1328 = vadd.f32 %v403, %v1327
  %v1329 = vpop.f32.mrb[0].mxu0
  %v1330 = vpop.f32.mrb[0].mxu0
  %v1331 = vadd.f32 %v403, %v1330
  %v1332 = vpop.f32.mrb[0].mxu0
  %1333 = vmatprep.mubr.bf16.mxu0 0
  %1334 = vmatmul.mubr.bf16.gmra.mrb[0].mxu0 %v868
  %v1335 = vpop.f32.mrb[0].mxu0
  %v1336 = vadd.f32 %v403, %v1335
  %v1337 = vpop.f32.mrb[0].mxu0
  %v1338 = vpop.f32.mrb[0].mxu0
  %v1339 = vadd.f32 %v403, %v1338
  %v1340 = vpop.f32.mrb[0].mxu0
  %1341 = vmatprep.mubr.bf16.mxu0 0
  %1342 = vmatmul.mubr.bf16.gmra.mrb[0].mxu0 %v871
  %v1343 = vpop.f32.mrb[0].mxu0
  %v1344 = vadd.f32 %v403, %v1343
  %v1345 = vpop.f32.mrb[0].mxu0
  %v1346 = vpop.f32.mrb[0].mxu0
  %v1347 = vadd.f32 %v403, %v1346
  %v1348 = vpop.f32.mrb[0].mxu0
  %1349 = vmatprep.mubr.bf16.mxu0 0
  %1350 = vmatmul.mubr.bf16.gmra.mrb[0].mxu0 %v874
  %v1351 = vpop.f32.mrb[0].mxu0
  %v1352 = vadd.f32 %v403, %v1351
  %v1353 = vpop.f32.mrb[0].mxu0
  %v1354 = vpop.f32.mrb[0].mxu0
  %v1355 = vadd.f32 %v403, %v1354
  %v1356 = vpop.f32.mrb[0].mxu0
  %1357 = vmatprep.mubr.bf16.mxu0 0
  %1358 = vmatmul.mubr.bf16.gmra.mrb[0].mxu0 %v877
  %v1359 = vpop.f32.mrb[0].mxu0
  %v1360 = vadd.f32 %v403, %v1359
  %v1361 = vpop.f32.mrb[0].mxu0
  %v1362 = vpop.f32.mrb[0].mxu0
  %v1363 = vadd.f32 %v403, %v1362
  %v1364 = vpop.f32.mrb[0].mxu0
  %1365 = vmatprep.mubr.bf16.mxu0 0
  %1366 = vmatmul.mubr.bf16.gmra.mrb[0].mxu0 %v880
  %v1367 = vpop.f32.mrb[0].mxu0
  %v1368 = vadd.f32 %v403, %v1367
  %v1369 = vpop.f32.mrb[0].mxu0
  %v1370 = vpop.f32.mrb[0].mxu0
  %v1371 = vadd.f32 %v403, %v1370
  %v1372 = vpop.f32.mrb[0].mxu0
  %1373 = vmatprep.mubr.bf16.mxu0 0
  %1374 = vmatmul.mubr.bf16.gmra.mrb[0].mxu0 %v883
  %v1375 = vpop.f32.mrb[0].mxu0
  %v1376 = vadd.f32 %v403, %v1375
  %v1377 = vpop.f32.mrb[0].mxu0
  %v1378 = vpop.f32.mrb[0].mxu0
  %v1379 = vadd.f32 %v403, %v1378
  %v1380 = vpop.f32.mrb[0].mxu0
  %1381 = vmatprep.mubr.bf16.mxu0 0
  %1382 = vmatmul.mubr.bf16.gmra.mrb[0].mxu0 %v886
  %v1383 = vpop.f32.mrb[0].mxu0
  %v1384 = vadd.f32 %v403, %v1383
  %v1385 = vpop.f32.mrb[0].mxu0
  %v1386 = vpop.f32.mrb[0].mxu0
  %v1387 = vadd.f32 %v403, %v1386
  %v1388 = vpop.f32.mrb[0].mxu0
  %1389 = vmatprep.mubr.bf16.mxu0 0
  %1390 = vmatmul.mubr.bf16.gmra.mrb[0].mxu0 %v889
  %v1391 = vpop.f32.mrb[0].mxu0
  %v1392 = vadd.f32 %v403, %v1391
  %v1393 = vpop.f32.mrb[0].mxu0
  %v1394 = vpop.f32.mrb[0].mxu0
  %v1395 = vadd.f32 %v403, %v1394
  %v1396 = vpop.f32.mrb[0].mxu0
  %1397 = vmatprep.mubr.bf16.mxu0 0
  %1398 = vmatmul.mubr.bf16.gmra.mrb[0].mxu0 %v892
  %v1399 = vpop.f32.mrb[0].mxu0
  %v1400 = vadd.f32 %v403, %v1399
  %v1401 = vpop.f32.mrb[0].mxu0
  %v1402 = vpop.f32.mrb[0].mxu0
  %v1403 = vadd.f32 %v403, %v1402
  %v1404 = vpop.f32.mrb[0].mxu0
  %1405 = vmatprep.mubr.bf16.mxu0 0
  %1406 = vmatmul.mubr.bf16.gmra.mrb[0].mxu0 %v895
  %v1407 = vpop.f32.mrb[0].mxu0
  %v1408 = vadd.f32 %v403, %v1407
  %v1409 = vpop.f32.mrb[0].mxu0
  %v1410 = vpop.f32.mrb[0].mxu0
  %v1411 = vadd.f32 %v403, %v1410
  %v1412 = vpop.f32.mrb[0].mxu0
  %1413 = vmatprep.mubr.bf16.mxu0 0
  %1414 = vmatmul.mubr.bf16.gmra.mrb[0].mxu0 %v898
  %v1415 = vpop.f32.mrb[0].mxu0
  %v1416 = vadd.f32 %v403, %v1415
  %v1417 = vpop.f32.mrb[0].mxu0
  %v1418 = vpop.f32.mrb[0].mxu0
  %v1419 = vadd.f32 %v403, %v1418
  %v1420 = vpop.f32.mrb[0].mxu0
  %1421 = vmatprep.mubr.bf16.mxu0 0
  %1422 = vmatmul.mubr.bf16.gmra.mrb[0].mxu0 %v901
  %v1423 = vpop.f32.mrb[0].mxu0
  %v1424 = vadd.f32 %v403, %v1423
  %v1425 = vpop.f32.mrb[0].mxu0
  %v1426 = vpop.f32.mrb[0].mxu0
  %v1427 = vadd.f32 %v403, %v1426
  %v1428 = vpop.f32.mrb[0].mxu0
  %1429 = vmatprep.mubr.bf16.mxu0 0
  %1430 = vmatmul.mubr.bf16.gmra.mrb[0].mxu0 %v904
  %v1431 = vpop.f32.mrb[0].mxu0
  %v1432 = vadd.f32 %v403, %v1431
  %v1433 = vpop.f32.mrb[0].mxu0
  %v1434 = vpop.f32.mrb[0].mxu0
  %v1435 = vadd.f32 %v403, %v1434
  %v1436 = vpop.f32.mrb[0].mxu0
  %1437 = vmatprep.mubr.bf16.mxu0 0
  %1438 = vmatmul.mubr.bf16.gmra.mrb[0].mxu0 %v907
  %v1439 = vpop.f32.mrb[0].mxu0
  %v1440 = vadd.f32 %v403, %v1439
  %v1441 = vpop.f32.mrb[0].mxu0
  %v1442 = vpop.f32.mrb[0].mxu0
  %v1443 = vadd.f32 %v403, %v1442
  %v1444 = vpop.f32.mrb[0].mxu0
  %1445 = vmatprep.mubr.bf16.mxu0 0
  %1446 = vmatmul.mubr.bf16.gmra.mrb[0].mxu0 %v910
  %v1447 = vpop.f32.mrb[0].mxu0
  %v1448 = vadd.f32 %v403, %v1447
  %v1449 = vpop.f32.mrb[0].mxu0
  %v1450 = vpop.f32.mrb[0].mxu0
  %v1451 = vadd.f32 %v403, %v1450
  %v1452 = vpop.f32.mrb[0].mxu0
  %1453 = vmatprep.mubr.bf16.mxu0 0
  %1454 = vmatmul.mubr.bf16.gmra.mrb[0].mxu0 %v913
  %v1455 = vpop.f32.mrb[0].mxu0
  %v1456 = vadd.f32 %v403, %v1455
  %v1457 = vpop.f32.mrb[0].mxu0
  %v1458 = vpop.f32.mrb[0].mxu0
  %v1459 = vadd.f32 %v403, %v1458
  %v1460 = vpop.f32.mrb[0].mxu0
  %1461 = vmatprep.mubr.bf16.mxu0 0
  %1462 = vmatmul.mubr.bf16.gmra.mrb[0].mxu0 %v916
  %v1463 = vpop.f32.mrb[0].mxu0
  %v1464 = vadd.f32 %v403, %v1463
  %v1465 = vpop.f32.mrb[0].mxu0
  %v1466 = vpop.f32.mrb[0].mxu0
  %v1467 = vadd.f32 %v403, %v1466
  %v1468 = vpop.f32.mrb[0].mxu0
  %1469 = vdwg.mxu0
  %v1470 = vmax.f32 %v960, 0.0
  %v1471 = vmax.f32 %v963, 0.0
  %v1472 = vmax.f32 %v968, 0.0
  %v1473 = vmax.f32 %v971, 0.0
  %v1474 = vmax.f32 %v976, 0.0
  %v1475 = vmax.f32 %v979, 0.0
  %v1476 = vmax.f32 %v984, 0.0
  %v1477 = vmax.f32 %v987, 0.0
  %v1478 = vmax.f32 %v992, 0.0
  %v1479 = vmax.f32 %v995, 0.0
  %v1480 = vmax.f32 %v1000, 0.0
  %v1481 = vmax.f32 %v1003, 0.0
  %v1482 = vmax.f32 %v1008, 0.0
  %v1483 = vmax.f32 %v1011, 0.0
  %v1484 = vmax.f32 %v1016, 0.0
  %v1485 = vmax.f32 %v1019, 0.0
  %v1486 = vmax.f32 %v1024, 0.0
  %v1487 = vmax.f32 %v1027, 0.0
  %v1488 = vmax.f32 %v1032, 0.0
  %v1489 = vmax.f32 %v1035, 0.0
  %v1490 = vmax.f32 %v1040, 0.0
  %v1491 = vmax.f32 %v1043, 0.0
  %v1492 = vmax.f32 %v1048, 0.0
  %v1493 = vmax.f32 %v1051, 0.0
  %v1494 = vmax.f32 %v1056, 0.0
  %v1495 = vmax.f32 %v1059, 0.0
  %v1496 = vmax.f32 %v1064, 0.0
  %v1497 = vmax.f32 %v1067, 0.0
  %v1498 = vmax.f32 %v1072, 0.0
  %v1499 = vmax.f32 %v1075, 0.0
  %v1500 = vmax.f32 %v1080, 0.0
  %v1501 = vmax.f32 %v1083, 0.0
  %v1502 = vmax.f32 %v1088, 0.0
  %v1503 = vmax.f32 %v1091, 0.0
  %v1504 = vmax.f32 %v1096, 0.0
  %v1505 = vmax.f32 %v1099, 0.0
  %v1506 = vmax.f32 %v1104, 0.0
  %v1507 = vmax.f32 %v1107, 0.0
  %v1508 = vmax.f32 %v1112, 0.0
  %v1509 = vmax.f32 %v1115, 0.0
  %v1510 = vmax.f32 %v1120, 0.0
  %v1511 = vmax.f32 %v1123, 0.0
  %v1512 = vmax.f32 %v1128, 0.0
  %v1513 = vmax.f32 %v1131, 0.0
  %v1514 = vmax.f32 %v1136, 0.0
  %v1515 = vmax.f32 %v1139, 0.0
  %v1516 = vmax.f32 %v1144, 0.0
  %v1517 = vmax.f32 %v1147, 0.0
  %v1518 = vmax.f32 %v1152, 0.0
  %v1519 = vmax.f32 %v1155, 0.0
  %v1520 = vmax.f32 %v1160, 0.0
  %v1521 = vmax.f32 %v1163, 0.0
  %v1522 = vmax.f32 %v1168, 0.0
  %v1523 = vmax.f32 %v1171, 0.0
  %v1524 = vmax.f32 %v1176, 0.0
  %v1525 = vmax.f32 %v1179, 0.0
  %v1526 = vmax.f32 %v1184, 0.0
  %v1527 = vmax.f32 %v1187, 0.0
  %v1528 = vmax.f32 %v1192, 0.0
  %v1529 = vmax.f32 %v1195, 0.0
  %v1530 = vmax.f32 %v1200, 0.0
  %v1531 = vmax.f32 %v1203, 0.0
  %v1532 = vmax.f32 %v1208, 0.0
  %v1533 = vmax.f32 %v1211, 0.0
  %v1534 = vmax.f32 %v1216, 0.0
  %v1535 = vmax.f32 %v1219, 0.0
  %v1536 = vmax.f32 %v1224, 0.0
  %v1537 = vmax.f32 %v1227, 0.0
  %v1538 = vmax.f32 %v1232, 0.0
  %v1539 = vmax.f32 %v1235, 0.0
  %v1540 = vmax.f32 %v1240, 0.0
  %v1541 = vmax.f32 %v1243, 0.0
  %v1542 = vmax.f32 %v1248, 0.0
  %v1543 = vmax.f32 %v1251, 0.0
  %v1544 = vmax.f32 %v1256, 0.0
  %v1545 = vmax.f32 %v1259, 0.0
  %v1546 = vmax.f32 %v1264, 0.0
  %v1547 = vmax.f32 %v1267, 0.0
  %v1548 = vmax.f32 %v1272, 0.0
  %v1549 = vmax.f32 %v1275, 0.0
  %v1550 = vmax.f32 %v1280, 0.0
  %v1551 = vmax.f32 %v1283, 0.0
  %v1552 = vmax.f32 %v1288, 0.0
  %v1553 = vmax.f32 %v1291, 0.0
  %v1554 = vmax.f32 %v1296, 0.0
  %v1555 = vmax.f32 %v1299, 0.0
  %v1556 = vmax.f32 %v1304, 0.0
  %v1557 = vmax.f32 %v1307, 0.0
  %v1558 = vmax.f32 %v1312, 0.0
  %v1559 = vmax.f32 %v1315, 0.0
  %v1560 = vmax.f32 %v1320, 0.0
  %v1561 = vmax.f32 %v1323, 0.0
  %v1562 = vmax.f32 %v1328, 0.0
  %v1563 = vmax.f32 %v1331, 0.0
  %v1564 = vmax.f32 %v1336, 0.0
  %v1565 = vmax.f32 %v1339, 0.0
  %v1566 = vmax.f32 %v1344, 0.0
  %v1567 = vmax.f32 %v1347, 0.0
  %v1568 = vmax.f32 %v1352, 0.0
  %v1569 = vmax.f32 %v1355, 0.0
  %v1570 = vmax.f32 %v1360, 0.0
  %v1571 = vmax.f32 %v1363, 0.0
  %v1572 = vmax.f32 %v1368, 0.0
  %v1573 = vmax.f32 %v1371, 0.0
  %v1574 = vmax.f32 %v1376, 0.0
  %v1575 = vmax.f32 %v1379, 0.0
  %v1576 = vmax.f32 %v1384, 0.0
  %v1577 = vmax.f32 %v1387, 0.0
  %v1578 = vmax.f32 %v1392, 0.0
  %v1579 = vmax.f32 %v1395, 0.0
  %v1580 = vmax.f32 %v1400, 0.0
  %v1581 = vmax.f32 %v1403, 0.0
  %v1582 = vmax.f32 %v1408, 0.0
  %v1583 = vmax.f32 %v1411, 0.0
  %v1584 = vmax.f32 %v1416, 0.0
  %v1585 = vmax.f32 %v1419, 0.0
  %v1586 = vmax.f32 %v1424, 0.0
  %v1587 = vmax.f32 %v1427, 0.0
  %v1588 = vmax.f32 %v1432, 0.0
  %v1589 = vmax.f32 %v1435, 0.0
  %v1590 = vmax.f32 %v1440, 0.0
  %v1591 = vmax.f32 %v1443, 0.0
  %v1592 = vmax.f32 %v1448, 0.0
  %v1593 = vmax.f32 %v1451, 0.0
  %v1594 = vmax.f32 %v1456, 0.0
  %v1595 = vmax.f32 %v1459, 0.0
  %v1596 = vmax.f32 %v1464, 0.0
  %v1597 = vmax.f32 %v1467, 0.0
  %v1598 = vsel %vm142, %v1470, 0.0
  %v1599 = vsel %vm142, %v1471, 0.0
  %v1600 = vadd.f32 %v1598, %v1599
  %v1601 = vsel %vm142, %v1472, 0.0
  %v1602 = vadd.f32 %v1600, %v1601
  %v1603 = vsel %vm142, %v1473, 0.0
  %v1604 = vadd.f32 %v1602, %v1603
  %v1605 = vsel %vm142, %v1474, 0.0
  %v1606 = vadd.f32 %v1604, %v1605
  %v1607 = vsel %vm142, %v1475, 0.0
  %v1608 = vadd.f32 %v1606, %v1607
  %v1609 = vsel %vm142, %v1476, 0.0
  %v1610 = vadd.f32 %v1608, %v1609
  %v1611 = vsel %vm142, %v1477, 0.0
  %v1612 = vadd.f32 %v1610, %v1611
  %v1613 = vsel %vm142, %v1478, 0.0
  %v1614 = vadd.f32 %v1612, %v1613
  %v1615 = vsel %vm142, %v1479, 0.0
  %v1616 = vadd.f32 %v1614, %v1615
  %v1617 = vsel %vm142, %v1480, 0.0
  %v1618 = vadd.f32 %v1616, %v1617
  %v1619 = vsel %vm142, %v1481, 0.0
  %v1620 = vadd.f32 %v1618, %v1619
  %v1621 = vsel %vm142, %v1482, 0.0
  %v1622 = vadd.f32 %v1620, %v1621
  %v1623 = vsel %vm142, %v1483, 0.0
  %v1624 = vadd.f32 %v1622, %v1623
  %v1625 = vsel %vm142, %v1484, 0.0
  %v1626 = vadd.f32 %v1624, %v1625
  %v1627 = vsel %vm142, %v1485, 0.0
  %v1628 = vadd.f32 %v1626, %v1627
  %v1629 = vsel %vm142, %v1486, 0.0
  %v1630 = vadd.f32 %v1628, %v1629
  %v1631 = vsel %vm142, %v1487, 0.0
  %v1632 = vadd.f32 %v1630, %v1631
  %v1633 = vsel %vm142, %v1488, 0.0
  %v1634 = vadd.f32 %v1632, %v1633
  %v1635 = vsel %vm142, %v1489, 0.0
  %v1636 = vadd.f32 %v1634, %v1635
  %v1637 = vsel %vm142, %v1490, 0.0
  %v1638 = vadd.f32 %v1636, %v1637
  %v1639 = vsel %vm142, %v1491, 0.0
  %v1640 = vadd.f32 %v1638, %v1639
  %v1641 = vsel %vm142, %v1492, 0.0
  %v1642 = vadd.f32 %v1640, %v1641
  %v1643 = vsel %vm142, %v1493, 0.0
  %v1644 = vadd.f32 %v1642, %v1643
  %v1645 = vsel %vm142, %v1494, 0.0
  %v1646 = vadd.f32 %v1644, %v1645
  %v1647 = vsel %vm142, %v1495, 0.0
  %v1648 = vadd.f32 %v1646, %v1647
  %v1649 = vsel %vm142, %v1496, 0.0
  %v1650 = vadd.f32 %v1648, %v1649
  %v1651 = vsel %vm142, %v1497, 0.0
  %v1652 = vadd.f32 %v1650, %v1651
  %v1653 = vsel %vm142, %v1498, 0.0
  %v1654 = vadd.f32 %v1652, %v1653
  %v1655 = vsel %vm142, %v1499, 0.0
  %v1656 = vadd.f32 %v1654, %v1655
  %v1657 = vsel %vm142, %v1500, 0.0
  %v1658 = vadd.f32 %v1656, %v1657
  %v1659 = vsel %vm142, %v1501, 0.0
  %v1660 = vadd.f32 %v1658, %v1659
  %v1661 = vrot.slane %v1660, 4
  %v1662 = vadd.f32 %v1660, %v1661
  %v1663 = vrot.slane %v1662, 2
  %v1664 = vadd.f32 %v1662, %v1663
  %v1665 = vrot.slane %v1664, 1
  %v1666 = vadd.f32 %v1664, %v1665
  %v1667 = vrcp.pop 256.0
  %v1668 = vmul.f32 %v1666, %v1667
  %v1669 = vsel %vm142, %v1502, 0.0
  %v1670 = vsel %vm142, %v1503, 0.0
  %v1671 = vadd.f32 %v1669, %v1670
  %v1672 = vsel %vm142, %v1504, 0.0
  %v1673 = vadd.f32 %v1671, %v1672
  %v1674 = vsel %vm142, %v1505, 0.0
  %v1675 = vadd.f32 %v1673, %v1674
  %v1676 = vsel %vm142, %v1506, 0.0
  %v1677 = vadd.f32 %v1675, %v1676
  %v1678 = vsel %vm142, %v1507, 0.0
  %v1679 = vadd.f32 %v1677, %v1678
  %v1680 = vsel %vm142, %v1508, 0.0
  %v1681 = vadd.f32 %v1679, %v1680
  %v1682 = vsel %vm142, %v1509, 0.0
  %v1683 = vadd.f32 %v1681, %v1682
  %v1684 = vsel %vm142, %v1510, 0.0
  %v1685 = vadd.f32 %v1683, %v1684
  %v1686 = vsel %vm142, %v1511, 0.0
  %v1687 = vadd.f32 %v1685, %v1686
  %v1688 = vsel %vm142, %v1512, 0.0
  %v1689 = vadd.f32 %v1687, %v1688
  %v1690 = vsel %vm142, %v1513, 0.0
  %v1691 = vadd.f32 %v1689, %v1690
  %v1692 = vsel %vm142, %v1514, 0.0
  %v1693 = vadd.f32 %v1691, %v1692
  %v1694 = vsel %vm142, %v1515, 0.0
  %v1695 = vadd.f32 %v1693, %v1694
  %v1696 = vsel %vm142, %v1516, 0.0
  %v1697 = vadd.f32 %v1695, %v1696
  %v1698 = vsel %vm142, %v1517, 0.0
  %v1699 = vadd.f32 %v1697, %v1698
  %v1700 = vsel %vm142, %v1518, 0.0
  %v1701 = vadd.f32 %v1699, %v1700
  %v1702 = vsel %vm142, %v1519, 0.0
  %v1703 = vadd.f32 %v1701, %v1702
  %v1704 = vsel %vm142, %v1520, 0.0
  %v1705 = vadd.f32 %v1703, %v1704
  %v1706 = vsel %vm142, %v1521, 0.0
  %v1707 = vadd.f32 %v1705, %v1706
  %v1708 = vsel %vm142, %v1522, 0.0
  %v1709 = vadd.f32 %v1707, %v1708
  %v1710 = vsel %vm142, %v1523, 0.0
  %v1711 = vadd.f32 %v1709, %v1710
  %v1712 = vsel %vm142, %v1524, 0.0
  %v1713 = vadd.f32 %v1711, %v1712
  %v1714 = vsel %vm142, %v1525, 0.0
  %v1715 = vadd.f32 %v1713, %v1714
  %v1716 = vsel %vm142, %v1526, 0.0
  %v1717 = vadd.f32 %v1715, %v1716
  %v1718 = vsel %vm142, %v1527, 0.0
  %v1719 = vadd.f32 %v1717, %v1718
  %v1720 = vsel %vm142, %v1528, 0.0
  %v1721 = vadd.f32 %v1719, %v1720
  %v1722 = vsel %vm142, %v1529, 0.0
  %v1723 = vadd.f32 %v1721, %v1722
  %v1724 = vsel %vm142, %v1530, 0.0
  %v1725 = vadd.f32 %v1723, %v1724
  %v1726 = vsel %vm142, %v1531, 0.0
  %v1727 = vadd.f32 %v1725, %v1726
  %v1728 = vsel %vm142, %v1532, 0.0
  %v1729 = vadd.f32 %v1727, %v1728
  %v1730 = vsel %vm142, %v1533, 0.0
  %v1731 = vadd.f32 %v1729, %v1730
  %v1732 = vrot.slane %v1731, 4
  %v1733 = vadd.f32 %v1731, %v1732
  %v1734 = vrot.slane %v1733, 2
  %v1735 = vadd.f32 %v1733, %v1734
  %v1736 = vrot.slane %v1735, 1
  %v1737 = vadd.f32 %v1735, %v1736
  %v1738 = vmul.f32 %v1737, %v1667
  %vm1739 = vcmask 1040384
  %v1740 = vsel %vm1739, %v1668, %v1738
  %v1741 = vpack.c.bf16 %v1740, %v1740
  %v1742 = vpack.c.bf16 %v254, %v254
  %v1744 = vlaneseq
  %v1745 = vshrl.u32 %v1744, 7
  %v1746 = vsub.s32 0, %v1745
  %v1747 = vrot.slane %v255, %v1746
  %v1750 = vsel %vm142, %v1741, 0
  %vm1752 = vcmask 1043456
  %v1754 = vsel %vm1752, %v1742, 0
  %1756 = vmatprep.subr.bf16.mxu0 0
  %1757 = vmatpush1.bf16.msra.mxu0 %v1754
  %1758 = vmatprep.subr.bf16.mxu0 0
  %1759 = vmatpush1.bf16.msra.mxu0 0
  %1760 = vmatprep.subr.bf16.mxu0 0
  %1761 = vmatpush1.bf16.msra.mxu0 0
  %1762 = vmatprep.subr.bf16.mxu0 0
  %1763 = vmatpush1.bf16.msra.mxu0 0
  %1764 = vmatprep.subr.bf16.mxu0 0
  %1765 = vmatpush1.bf16.msra.mxu0 0
  %1766 = vmatprep.subr.bf16.mxu0 0
  %1767 = vmatpush1.bf16.msra.mxu0 0
  %1768 = vmatprep.subr.bf16.mxu0 0
  %1769 = vmatpush1.bf16.msra.mxu0 0
  %1770 = vmatprep.subr.bf16.mxu0 0
  %1771 = vmatpush1.bf16.msra.mxu0 0
  %1772 = vmatprep.subr.bf16.mxu0 0
  %1773 = vmatpush1.bf16.msra.mxu0 0
  %1774 = vmatprep.subr.bf16.mxu0 0
  %1775 = vmatpush1.bf16.msra.mxu0 0
  %1776 = vmatprep.subr.bf16.mxu0 0
  %1777 = vmatpush1.bf16.msra.mxu0 0
  %1778 = vmatprep.subr.bf16.mxu0 0
  %1779 = vmatpush1.bf16.msra.mxu0 0
  %1780 = vmatprep.subr.bf16.mxu0 0
  %1781 = vmatpush1.bf16.msra.mxu0 0
  %1782 = vmatprep.subr.bf16.mxu0 0
  %1783 = vmatpush1.bf16.msra.mxu0 0
  %1784 = vmatprep.subr.bf16.mxu0 0
  %1785 = vmatpush1.bf16.msra.mxu0 0
  %1786 = vmatprep.subr.bf16.mxu0 0
  %1787 = vmatpush1.bf16.msra.mxu0 0
  %1788 = vmatprep.mubr.bf16.mxu0 0
  %1789 = vmatmul.mubr.bf16.gmra.mrb[0].mxu0 %v1750
  %v1790 = vpop.f32.mrb[0].mxu0
  %v1791 = vadd.f32 %v1747, %v1790
  %v1792 = vpop.f32.mrb[0].mxu0
  %v1793 = vpop.f32.mrb[0].mxu0
  %v1794 = vpop.f32.mrb[0].mxu0
  %1795 = vdwg.mxu0
  %vm1796 = vcmask 254976
  %v1797 = vsel %vm1796, %v1791, 0.0
  %v1798 = vrot.slane %v1797, 4
  %v1799 = vadd.f32 %v1797, %v1798
  %v1800 = vrot.slane %v1799, 2
  %v1801 = vadd.f32 %v1799, %v1800
  %v1802 = vrot.slane %v1801, 1
  %v1803 = vadd.f32 %v1801, %v1802
  %v1804 = vrcp.pop 2.0
  %v1805 = vmul.f32 %v1803, %v1804
  %v1806 = vsub.f32 %v1791, %v1805
  %v1807 = vmul.f32 %v1806, %v1806
  %v1808 = vsel %vm1796, %v1807, 0.0
  %v1809 = vrot.slane %v1808, 4
  %v1810 = vadd.f32 %v1808, %v1809
  %v1811 = vrot.slane %v1810, 2
  %v1812 = vadd.f32 %v1810, %v1811
  %v1813 = vrot.slane %v1812, 1
  %v1814 = vadd.f32 %v1812, %v1813
  %v1815 = vmul.f32 %v1814, %v1804
  %v1816 = vadd.f32 %v1815, 1e-05
  %v1817 = vrsqrt.pop %v1816
  %v1818 = vmul.f32 %v1806, %v1817
  %v1820 = vlaneseq
  %v1821 = vshrl.u32 %v1820, 7
  %v1822 = vsub.s32 0, %v1821
  %v1823 = vrot.slane %v256, %v1822
  %v1825 = vmul.f32 %v1818, %v1823
  %v1827 = vlaneseq
  %v1828 = vshrl.u32 %v1827, 7
  %v1829 = vsub.s32 0, %v1828
  %v1830 = vrot.slane %v257, %v1829
  %v1832 = vadd.f32 %v1825, %v1830
  %v1833 = vmax.f32 %v1832, 0.0
  %v1834 = vpack.c.bf16 %v1833, %v1833
  %v1835 = vpack.c.bf16 %v259, %v258
  %v1836 = vpack.c.bf16 %v261, %v260
  %v1838 = vsel %vm160, %v1834, 0
  %1840 = vmatprep.subr.bf16.mxu0 0
  %1841 = vmatpush1.bf16.msra.mxu0 %v1835
  %1842 = vmatprep.subr.bf16.mxu0 0
  %1843 = vmatpush1.bf16.msra.mxu0 %v1836
  %1844 = vmatprep.subr.bf16.mxu0 0
  %1845 = vmatpush1.bf16.msra.mxu0 0
  %1846 = vmatprep.subr.bf16.mxu0 0
  %1847 = vmatpush1.bf16.msra.mxu0 0
  %1848 = vmatprep.subr.bf16.mxu0 0
  %1849 = vmatpush1.bf16.msra.mxu0 0
  %1850 = vmatprep.subr.bf16.mxu0 0
  %1851 = vmatpush1.bf16.msra.mxu0 0
  %1852 = vmatprep.subr.bf16.mxu0 0
  %1853 = vmatpush1.bf16.msra.mxu0 0
  %1854 = vmatprep.subr.bf16.mxu0 0
  %1855 = vmatpush1.bf16.msra.mxu0 0
  %1856 = vmatprep.subr.bf16.mxu0 0
  %1857 = vmatpush1.bf16.msra.mxu0 0
  %1858 = vmatprep.subr.bf16.mxu0 0
  %1859 = vmatpush1.bf16.msra.mxu0 0
  %1860 = vmatprep.subr.bf16.mxu0 0
  %1861 = vmatpush1.bf16.msra.mxu0 0
  %1862 = vmatprep.subr.bf16.mxu0 0
  %1863 = vmatpush1.bf16.msra.mxu0 0
  %1864 = vmatprep.subr.bf16.mxu0 0
  %1865 = vmatpush1.bf16.msra.mxu0 0
  %1866 = vmatprep.subr.bf16.mxu0 0
  %1867 = vmatpush1.bf16.msra.mxu0 0
  %1868 = vmatprep.subr.bf16.mxu0 0
  %1869 = vmatpush1.bf16.msra.mxu0 0
  %1870 = vmatprep.subr.bf16.mxu0 0
  %1871 = vmatpush1.bf16.msra.mxu0 0
  %1872 = vmatprep.mubr.bf16.mxu0 0
  %1873 = vmatmul.mubr.bf16.gmra.mrb[0].mxu0 %v1838
  %v1874 = vpop.f32.mrb[0].mxu0
  %v1875 = vadd.f32 0.0, %v1874
  %v1876 = vpop.f32.mrb[0].mxu0
  %v1877 = vpop.f32.mrb[0].mxu0
  %v1878 = vpop.f32.mrb[0].mxu0
  %1879 = vdwg.mxu0
  %v1880 = vsel %vm1796, %v1875, 0.0
  %v1881 = vrot.slane %v1880, 4
  %v1882 = vadd.f32 %v1880, %v1881
  %v1883 = vrot.slane %v1882, 2
  %v1884 = vadd.f32 %v1882, %v1883
  %v1885 = vrot.slane %v1884, 1
  %v1886 = vadd.f32 %v1884, %v1885
  %v1887 = vmul.f32 %v1886, %v1804
  %v1888 = vsub.f32 %v1875, %v1887
  %v1889 = vmul.f32 %v1888, %v1888
  %v1890 = vsel %vm1796, %v1889, 0.0
  %v1891 = vrot.slane %v1890, 4
  %v1892 = vadd.f32 %v1890, %v1891
  %v1893 = vrot.slane %v1892, 2
  %v1894 = vadd.f32 %v1892, %v1893
  %v1895 = vrot.slane %v1894, 1
  %v1896 = vadd.f32 %v1894, %v1895
  %v1897 = vmul.f32 %v1896, %v1804
  %v1898 = vadd.f32 %v1897, 1e-05
  %v1899 = vrsqrt.pop %v1898
  %v1900 = vmul.f32 %v1888, %v1899
  %v1902 = vlaneseq
  %v1903 = vshrl.u32 %v1902, 7
  %v1904 = vsub.s32 0, %v1903
  %v1905 = vrot.slane %v262, %v1904
  %v1907 = vmul.f32 %v1900, %v1905
  %v1909 = vlaneseq
  %v1910 = vshrl.u32 %v1909, 7
  %v1911 = vsub.s32 0, %v1910
  %v1912 = vrot.slane %v263, %v1911
  %v1914 = vadd.f32 %v1907, %v1912
  %v1915 = vmax.f32 %v1914, 0.0
  %v1916 = vpack.c.bf16 %v1915, %v1915
  %v1917 = vpack.c.bf16 %v265, %v264
  %v1918 = vpack.c.bf16 %v267, %v266
  %v1920 = vlaneseq
  %v1921 = vshrl.u32 %v1920, 7
  %v1922 = vsub.s32 0, %v1921
  %v1923 = vrot.slane %v268, %v1922
  %v1926 = vsel %vm160, %v1916, 0
  %1928 = vmatprep.subr.bf16.mxu0 0
  %1929 = vmatpush1.bf16.msra.mxu0 %v1917
  %1930 = vmatprep.subr.bf16.mxu0 0
  %1931 = vmatpush1.bf16.msra.mxu0 %v1918
  %1932 = vmatprep.subr.bf16.mxu0 0
  %1933 = vmatpush1.bf16.msra.mxu0 0
  %1934 = vmatprep.subr.bf16.mxu0 0
  %1935 = vmatpush1.bf16.msra.mxu0 0
  %1936 = vmatprep.subr.bf16.mxu0 0
  %1937 = vmatpush1.bf16.msra.mxu0 0
  %1938 = vmatprep.subr.bf16.mxu0 0
  %1939 = vmatpush1.bf16.msra.mxu0 0
  %1940 = vmatprep.subr.bf16.mxu0 0
  %1941 = vmatpush1.bf16.msra.mxu0 0
  %1942 = vmatprep.subr.bf16.mxu0 0
  %1943 = vmatpush1.bf16.msra.mxu0 0
  %1944 = vmatprep.subr.bf16.mxu0 0
  %1945 = vmatpush1.bf16.msra.mxu0 0
  %1946 = vmatprep.subr.bf16.mxu0 0
  %1947 = vmatpush1.bf16.msra.mxu0 0
  %1948 = vmatprep.subr.bf16.mxu0 0
  %1949 = vmatpush1.bf16.msra.mxu0 0
  %1950 = vmatprep.subr.bf16.mxu0 0
  %1951 = vmatpush1.bf16.msra.mxu0 0
  %1952 = vmatprep.subr.bf16.mxu0 0
  %1953 = vmatpush1.bf16.msra.mxu0 0
  %1954 = vmatprep.subr.bf16.mxu0 0
  %1955 = vmatpush1.bf16.msra.mxu0 0
  %1956 = vmatprep.subr.bf16.mxu0 0
  %1957 = vmatpush1.bf16.msra.mxu0 0
  %1958 = vmatprep.subr.bf16.mxu0 0
  %1959 = vmatpush1.bf16.msra.mxu0 0
  %1960 = vmatprep.mubr.bf16.mxu0 0
  %1961 = vmatmul.mubr.bf16.gmra.mrb[0].mxu0 %v1926
  %v1962 = vpop.f32.mrb[0].mxu0
  %v1963 = vadd.f32 %v1923, %v1962
  %v1964 = vpop.f32.mrb[0].mxu0
  %v1965 = vpop.f32.mrb[0].mxu0
  %v1966 = vpop.f32.mrb[0].mxu0
  %1967 = vdwg.mxu0
  %v1968 = vsel %vm142, %v1534, 0.0
  %v1969 = vsel %vm142, %v1535, 0.0
  %v1970 = vadd.f32 %v1968, %v1969
  %v1971 = vsel %vm142, %v1536, 0.0
  %v1972 = vadd.f32 %v1970, %v1971
  %v1973 = vsel %vm142, %v1537, 0.0
  %v1974 = vadd.f32 %v1972, %v1973
  %v1975 = vsel %vm142, %v1538, 0.0
  %v1976 = vadd.f32 %v1974, %v1975
  %v1977 = vsel %vm142, %v1539, 0.0
  %v1978 = vadd.f32 %v1976, %v1977
  %v1979 = vsel %vm142, %v1540, 0.0
  %v1980 = vadd.f32 %v1978, %v1979
  %v1981 = vsel %vm142, %v1541, 0.0
  %v1982 = vadd.f32 %v1980, %v1981
  %v1983 = vsel %vm142, %v1542, 0.0
  %v1984 = vadd.f32 %v1982, %v1983
  %v1985 = vsel %vm142, %v1543, 0.0
  %v1986 = vadd.f32 %v1984, %v1985
  %v1987 = vsel %vm142, %v1544, 0.0
  %v1988 = vadd.f32 %v1986, %v1987
  %v1989 = vsel %vm142, %v1545, 0.0
  %v1990 = vadd.f32 %v1988, %v1989
  %v1991 = vsel %vm142, %v1546, 0.0
  %v1992 = vadd.f32 %v1990, %v1991
  %v1993 = vsel %vm142, %v1547, 0.0
  %v1994 = vadd.f32 %v1992, %v1993
  %v1995 = vsel %vm142, %v1548, 0.0
  %v1996 = vadd.f32 %v1994, %v1995
  %v1997 = vsel %vm142, %v1549, 0.0
  %v1998 = vadd.f32 %v1996, %v1997
  %v1999 = vsel %vm142, %v1550, 0.0
  %v2000 = vadd.f32 %v1998, %v1999
  %v2001 = vsel %vm142, %v1551, 0.0
  %v2002 = vadd.f32 %v2000, %v2001
  %v2003 = vsel %vm142, %v1552, 0.0
  %v2004 = vadd.f32 %v2002, %v2003
  %v2005 = vsel %vm142, %v1553, 0.0
  %v2006 = vadd.f32 %v2004, %v2005
  %v2007 = vsel %vm142, %v1554, 0.0
  %v2008 = vadd.f32 %v2006, %v2007
  %v2009 = vsel %vm142, %v1555, 0.0
  %v2010 = vadd.f32 %v2008, %v2009
  %v2011 = vsel %vm142, %v1556, 0.0
  %v2012 = vadd.f32 %v2010, %v2011
  %v2013 = vsel %vm142, %v1557, 0.0
  %v2014 = vadd.f32 %v2012, %v2013
  %v2015 = vsel %vm142, %v1558, 0.0
  %v2016 = vadd.f32 %v2014, %v2015
  %v2017 = vsel %vm142, %v1559, 0.0
  %v2018 = vadd.f32 %v2016, %v2017
  %v2019 = vsel %vm142, %v1560, 0.0
  %v2020 = vadd.f32 %v2018, %v2019
  %v2021 = vsel %vm142, %v1561, 0.0
  %v2022 = vadd.f32 %v2020, %v2021
  %v2023 = vsel %vm142, %v1562, 0.0
  %v2024 = vadd.f32 %v2022, %v2023
  %v2025 = vsel %vm142, %v1563, 0.0
  %v2026 = vadd.f32 %v2024, %v2025
  %v2027 = vsel %vm142, %v1564, 0.0
  %v2028 = vadd.f32 %v2026, %v2027
  %v2029 = vsel %vm142, %v1565, 0.0
  %v2030 = vadd.f32 %v2028, %v2029
  %v2031 = vrot.slane %v2030, 4
  %v2032 = vadd.f32 %v2030, %v2031
  %v2033 = vrot.slane %v2032, 2
  %v2034 = vadd.f32 %v2032, %v2033
  %v2035 = vrot.slane %v2034, 1
  %v2036 = vadd.f32 %v2034, %v2035
  %v2037 = vmul.f32 %v2036, %v1667
  %v2038 = vsel %vm142, %v1566, 0.0
  %v2039 = vsel %vm142, %v1567, 0.0
  %v2040 = vadd.f32 %v2038, %v2039
  %v2041 = vsel %vm142, %v1568, 0.0
  %v2042 = vadd.f32 %v2040, %v2041
  %v2043 = vsel %vm142, %v1569, 0.0
  %v2044 = vadd.f32 %v2042, %v2043
  %v2045 = vsel %vm142, %v1570, 0.0
  %v2046 = vadd.f32 %v2044, %v2045
  %v2047 = vsel %vm142, %v1571, 0.0
  %v2048 = vadd.f32 %v2046, %v2047
  %v2049 = vsel %vm142, %v1572, 0.0
  %v2050 = vadd.f32 %v2048, %v2049
  %v2051 = vsel %vm142, %v1573, 0.0
  %v2052 = vadd.f32 %v2050, %v2051
  %v2053 = vsel %vm142, %v1574, 0.0
  %v2054 = vadd.f32 %v2052, %v2053
  %v2055 = vsel %vm142, %v1575, 0.0
  %v2056 = vadd.f32 %v2054, %v2055
  %v2057 = vsel %vm142, %v1576, 0.0
  %v2058 = vadd.f32 %v2056, %v2057
  %v2059 = vsel %vm142, %v1577, 0.0
  %v2060 = vadd.f32 %v2058, %v2059
  %v2061 = vsel %vm142, %v1578, 0.0
  %v2062 = vadd.f32 %v2060, %v2061
  %v2063 = vsel %vm142, %v1579, 0.0
  %v2064 = vadd.f32 %v2062, %v2063
  %v2065 = vsel %vm142, %v1580, 0.0
  %v2066 = vadd.f32 %v2064, %v2065
  %v2067 = vsel %vm142, %v1581, 0.0
  %v2068 = vadd.f32 %v2066, %v2067
  %v2069 = vsel %vm142, %v1582, 0.0
  %v2070 = vadd.f32 %v2068, %v2069
  %v2071 = vsel %vm142, %v1583, 0.0
  %v2072 = vadd.f32 %v2070, %v2071
  %v2073 = vsel %vm142, %v1584, 0.0
  %v2074 = vadd.f32 %v2072, %v2073
  %v2075 = vsel %vm142, %v1585, 0.0
  %v2076 = vadd.f32 %v2074, %v2075
  %v2077 = vsel %vm142, %v1586, 0.0
  %v2078 = vadd.f32 %v2076, %v2077
  %v2079 = vsel %vm142, %v1587, 0.0
  %v2080 = vadd.f32 %v2078, %v2079
  %v2081 = vsel %vm142, %v1588, 0.0
  %v2082 = vadd.f32 %v2080, %v2081
  %v2083 = vsel %vm142, %v1589, 0.0
  %v2084 = vadd.f32 %v2082, %v2083
  %v2085 = vsel %vm142, %v1590, 0.0
  %v2086 = vadd.f32 %v2084, %v2085
  %v2087 = vsel %vm142, %v1591, 0.0
  %v2088 = vadd.f32 %v2086, %v2087
  %v2089 = vsel %vm142, %v1592, 0.0
  %v2090 = vadd.f32 %v2088, %v2089
  %v2091 = vsel %vm142, %v1593, 0.0
  %v2092 = vadd.f32 %v2090, %v2091
  %v2093 = vsel %vm142, %v1594, 0.0
  %v2094 = vadd.f32 %v2092, %v2093
  %v2095 = vsel %vm142, %v1595, 0.0
  %v2096 = vadd.f32 %v2094, %v2095
  %v2097 = vsel %vm142, %v1596, 0.0
  %v2098 = vadd.f32 %v2096, %v2097
  %v2099 = vsel %vm142, %v1597, 0.0
  %v2100 = vadd.f32 %v2098, %v2099
  %v2101 = vrot.slane %v2100, 4
  %v2102 = vadd.f32 %v2100, %v2101
  %v2103 = vrot.slane %v2102, 2
  %v2104 = vadd.f32 %v2102, %v2103
  %v2105 = vrot.slane %v2104, 1
  %v2106 = vadd.f32 %v2104, %v2105
  %v2107 = vmul.f32 %v2106, %v1667
  %v2108 = vsel %vm1739, %v2037, %v2107
  %v2109 = vpack.c.bf16 %v2108, %v2108
  %v2111 = vsel %vm142, %v2109, 0
  %2113 = vmatprep.subr.bf16.mxu0 0
  %2114 = vmatpush1.bf16.msra.mxu0 %v1754
  %2115 = vmatprep.subr.bf16.mxu0 0
  %2116 = vmatpush1.bf16.msra.mxu0 0
  %2117 = vmatprep.subr.bf16.mxu0 0
  %2118 = vmatpush1.bf16.msra.mxu0 0
  %2119 = vmatprep.subr.bf16.mxu0 0
  %2120 = vmatpush1.bf16.msra.mxu0 0
  %2121 = vmatprep.subr.bf16.mxu0 0
  %2122 = vmatpush1.bf16.msra.mxu0 0
  %2123 = vmatprep.subr.bf16.mxu0 0
  %2124 = vmatpush1.bf16.msra.mxu0 0
  %2125 = vmatprep.subr.bf16.mxu0 0
  %2126 = vmatpush1.bf16.msra.mxu0 0
  %2127 = vmatprep.subr.bf16.mxu0 0
  %2128 = vmatpush1.bf16.msra.mxu0 0
  %2129 = vmatprep.subr.bf16.mxu0 0
  %2130 = vmatpush1.bf16.msra.mxu0 0
  %2131 = vmatprep.subr.bf16.mxu0 0
  %2132 = vmatpush1.bf16.msra.mxu0 0
  %2133 = vmatprep.subr.bf16.mxu0 0
  %2134 = vmatpush1.bf16.msra.mxu0 0
  %2135 = vmatprep.subr.bf16.mxu0 0
  %2136 = vmatpush1.bf16.msra.mxu0 0
  %2137 = vmatprep.subr.bf16.mxu0 0
  %2138 = vmatpush1.bf16.msra.mxu0 0
  %2139 = vmatprep.subr.bf16.mxu0 0
  %2140 = vmatpush1.bf16.msra.mxu0 0
  %2141 = vmatprep.subr.bf16.mxu0 0
  %2142 = vmatpush1.bf16.msra.mxu0 0
  %2143 = vmatprep.subr.bf16.mxu0 0
  %2144 = vmatpush1.bf16.msra.mxu0 0
  %2145 = vmatprep.mubr.bf16.mxu0 0
  %2146 = vmatmul.mubr.bf16.gmra.mrb[0].mxu0 %v2111
  %v2147 = vpop.f32.mrb[0].mxu0
  %v2148 = vadd.f32 %v1747, %v2147
  %v2149 = vpop.f32.mrb[0].mxu0
  %v2150 = vpop.f32.mrb[0].mxu0
  %v2151 = vpop.f32.mrb[0].mxu0
  %2152 = vdwg.mxu0
  %v2153 = vsel %vm1796, %v2148, 0.0
  %v2154 = vrot.slane %v2153, 4
  %v2155 = vadd.f32 %v2153, %v2154
  %v2156 = vrot.slane %v2155, 2
  %v2157 = vadd.f32 %v2155, %v2156
  %v2158 = vrot.slane %v2157, 1
  %v2159 = vadd.f32 %v2157, %v2158
  %v2160 = vmul.f32 %v2159, %v1804
  %v2161 = vsub.f32 %v2148, %v2160
  %v2162 = vmul.f32 %v2161, %v2161
  %v2163 = vsel %vm1796, %v2162, 0.0
  %v2164 = vrot.slane %v2163, 4
  %v2165 = vadd.f32 %v2163, %v2164
  %v2166 = vrot.slane %v2165, 2
  %v2167 = vadd.f32 %v2165, %v2166
  %v2168 = vrot.slane %v2167, 1
  %v2169 = vadd.f32 %v2167, %v2168
  %v2170 = vmul.f32 %v2169, %v1804
  %v2171 = vadd.f32 %v2170, 1e-05
  %v2172 = vrsqrt.pop %v2171
  %v2173 = vmul.f32 %v2161, %v2172
  %v2174 = vmul.f32 %v2173, %v1823
  %v2175 = vadd.f32 %v2174, %v1830
  %v2176 = vmax.f32 %v2175, 0.0
  %v2177 = vpack.c.bf16 %v2176, %v2176
  %v2179 = vsel %vm160, %v2177, 0
  %2181 = vmatprep.subr.bf16.mxu0 0
  %2182 = vmatpush1.bf16.msra.mxu0 %v1835
  %2183 = vmatprep.subr.bf16.mxu0 0
  %2184 = vmatpush1.bf16.msra.mxu0 %v1836
  %2185 = vmatprep.subr.bf16.mxu0 0
  %2186 = vmatpush1.bf16.msra.mxu0 0
  %2187 = vmatprep.subr.bf16.mxu0 0
  %2188 = vmatpush1.bf16.msra.mxu0 0
  %2189 = vmatprep.subr.bf16.mxu0 0
  %2190 = vmatpush1.bf16.msra.mxu0 0
  %2191 = vmatprep.subr.bf16.mxu0 0
  %2192 = vmatpush1.bf16.msra.mxu0 0
  %2193 = vmatprep.subr.bf16.mxu0 0
  %2194 = vmatpush1.bf16.msra.mxu0 0
  %2195 = vmatprep.subr.bf16.mxu0 0
  %2196 = vmatpush1.bf16.msra.mxu0 0
  %2197 = vmatprep.subr.bf16.mxu0 0
  %2198 = vmatpush1.bf16.msra.mxu0 0
  %2199 = vmatprep.subr.bf16.mxu0 0
  %2200 = vmatpush1.bf16.msra.mxu0 0
  %2201 = vmatprep.subr.bf16.mxu0 0
  %2202 = vmatpush1.bf16.msra.mxu0 0
  %2203 = vmatprep.subr.bf16.mxu0 0
  %2204 = vmatpush1.bf16.msra.mxu0 0
  %2205 = vmatprep.subr.bf16.mxu0 0
  %2206 = vmatpush1.bf16.msra.mxu0 0
  %2207 = vmatprep.subr.bf16.mxu0 0
  %2208 = vmatpush1.bf16.msra.mxu0 0
  %2209 = vmatprep.subr.bf16.mxu0 0
  %2210 = vmatpush1.bf16.msra.mxu0 0
  %2211 = vmatprep.subr.bf16.mxu0 0
  %2212 = vmatpush1.bf16.msra.mxu0 0
  %2213 = vmatprep.mubr.bf16.mxu0 0
  %2214 = vmatmul.mubr.bf16.gmra.mrb[0].mxu0 %v2179
  %v2215 = vpop.f32.mrb[0].mxu0
  %v2216 = vadd.f32 0.0, %v2215
  %v2217 = vpop.f32.mrb[0].mxu0
  %v2218 = vpop.f32.mrb[0].mxu0
  %v2219 = vpop.f32.mrb[0].mxu0
  %2220 = vdwg.mxu0
  %v2221 = vsel %vm1796, %v2216, 0.0
  %v2222 = vrot.slane %v2221, 4
  %v2223 = vadd.f32 %v2221, %v2222
  %v2224 = vrot.slane %v2223, 2
  %v2225 = vadd.f32 %v2223, %v2224
  %v2226 = vrot.slane %v2225, 1
  %v2227 = vadd.f32 %v2225, %v2226
  %v2228 = vmul.f32 %v2227, %v1804
  %v2229 = vsub.f32 %v2216, %v2228
  %v2230 = vmul.f32 %v2229, %v2229
  %v2231 = vsel %vm1796, %v2230, 0.0
  %v2232 = vrot.slane %v2231, 4
  %v2233 = vadd.f32 %v2231, %v2232
  %v2234 = vrot.slane %v2233, 2
  %v2235 = vadd.f32 %v2233, %v2234
  %v2236 = vrot.slane %v2235, 1
  %v2237 = vadd.f32 %v2235, %v2236
  %v2238 = vmul.f32 %v2237, %v1804
  %v2239 = vadd.f32 %v2238, 1e-05
  %v2240 = vrsqrt.pop %v2239
  %v2241 = vmul.f32 %v2229, %v2240
  %v2242 = vmul.f32 %v2241, %v1905
  %v2243 = vadd.f32 %v2242, %v1912
  %v2244 = vmax.f32 %v2243, 0.0
  %v2245 = vpack.c.bf16 %v2244, %v2244
  %v2247 = vsel %vm160, %v2245, 0
  %2249 = vmatprep.subr.bf16.mxu0 0
  %2250 = vmatpush1.bf16.msra.mxu0 %v1917
  %2251 = vmatprep.subr.bf16.mxu0 0
  %2252 = vmatpush1.bf16.msra.mxu0 %v1918
  %2253 = vmatprep.subr.bf16.mxu0 0
  %2254 = vmatpush1.bf16.msra.mxu0 0
  %2255 = vmatprep.subr.bf16.mxu0 0
  %2256 = vmatpush1.bf16.msra.mxu0 0
  %2257 = vmatprep.subr.bf16.mxu0 0
  %2258 = vmatpush1.bf16.msra.mxu0 0
  %2259 = vmatprep.subr.bf16.mxu0 0
  %2260 = vmatpush1.bf16.msra.mxu0 0
  %2261 = vmatprep.subr.bf16.mxu0 0
  %2262 = vmatpush1.bf16.msra.mxu0 0
  %2263 = vmatprep.subr.bf16.mxu0 0
  %2264 = vmatpush1.bf16.msra.mxu0 0
  %2265 = vmatprep.subr.bf16.mxu0 0
  %2266 = vmatpush1.bf16.msra.mxu0 0
  %2267 = vmatprep.subr.bf16.mxu0 0
  %2268 = vmatpush1.bf16.msra.mxu0 0
  %2269 = vmatprep.subr.bf16.mxu0 0
  %2270 = vmatpush1.bf16.msra.mxu0 0
  %2271 = vmatprep.subr.bf16.mxu0 0
  %2272 = vmatpush1.bf16.msra.mxu0 0
  %2273 = vmatprep.subr.bf16.mxu0 0
  %2274 = vmatpush1.bf16.msra.mxu0 0
  %2275 = vmatprep.subr.bf16.mxu0 0
  %2276 = vmatpush1.bf16.msra.mxu0 0
  %2277 = vmatprep.subr.bf16.mxu0 0
  %2278 = vmatpush1.bf16.msra.mxu0 0
  %2279 = vmatprep.subr.bf16.mxu0 0
  %2280 = vmatpush1.bf16.msra.mxu0 0
  %2281 = vmatprep.mubr.bf16.mxu0 0
  %2282 = vmatmul.mubr.bf16.gmra.mrb[0].mxu0 %v2247
  %v2283 = vpop.f32.mrb[0].mxu0
  %v2284 = vadd.f32 %v1923, %v2283
  %v2285 = vpop.f32.mrb[0].mxu0
  %v2286 = vpop.f32.mrb[0].mxu0
  %v2287 = vpop.f32.mrb[0].mxu0
  %2288 = vdwg.mxu0
  %2290 = vrot.lane.b32.xlu0 %v2284, 64
  %v2291 = vpop.permute.xlu0 %2290
  %v2293 = vsel %vm237, %v1963, %v2291
  %2294 = vst [vmem:[%s69] sm:$0x3] %v2293
  // Predicated region
  $region94: #{simsiam_momentum_forward.3} parent=0 // pred_check
    _
  $region95: #{simsiam_momentum_forward.3} parent=0 // pred_check_branch
    %2296 = sbr.rel (0) target = $region97
  $region96: #{simsiam_momentum_forward.3} parent=0 // pred_region
    _
  $region97: #{simsiam_momentum_forward.3} parent=0 // pred_fallthru
    _
  // Predicated region
  $region98: #{simsiam_momentum_forward.3} parent=0 // pred_check
    _
  $region99: #{simsiam_momentum_forward.3} parent=0 // pred_check_branch
    %2298 = sbr.rel (0) target = $region101
  $region100: #{simsiam_momentum_forward.3} parent=0 // pred_region
    _
  $region101: #{simsiam_momentum_forward.3} parent=0 // pred_fallthru
    _
  // Predicated region
  $region102: #{simsiam_momentum_forward.3} parent=0 // pred_check
    _
  $region103: #{simsiam_momentum_forward.3} parent=0 // pred_check_branch
    %2300 = sbr.rel (0) target = $region105
  $region104: #{simsiam_momentum_forward.3} parent=0 // pred_region
    _
  $region105: #{simsiam_momentum_forward.3} parent=0 // pred_fallthru
    _
  // Predicated region
  $region106: #{simsiam_momentum_forward.3} parent=0 // pred_check
    _
  $region107: #{simsiam_momentum_forward.3} parent=0 // pred_check_branch
    %2302 = sbr.rel (0) target = $region109
  $region108: #{simsiam_momentum_forward.3} parent=0 // pred_region
    _
  $region109: #{simsiam_momentum_forward.3} parent=0 // pred_fallthru
    _
  // Predicated region
  $region110: #{simsiam_momentum_forward.3} parent=0 // pred_check
    _
  $region111: #{simsiam_momentum_forward.3} parent=0 // pred_check_branch
    %2304 = sbr.rel (0) target = $region113
  $region112: #{simsiam_momentum_forward.3} parent=0 // pred_region
    _
  $region113: #{simsiam_momentum_forward.3} parent=0 // pred_fallthru
    _
  // Predicated region
  $region114: #{simsiam_momentum_forward.3} parent=0 // pred_check
    _
  $region115: #{simsiam_momentum_forward.3} parent=0 // pred_check_branch
    %2306 = sbr.rel (0) target = $region117
  $region116: #{simsiam_momentum_forward.3} parent=0 // pred_region
    _
  $region117: #{simsiam_momentum_forward.3} parent=0 // pred_fallthru
    _
  // Predicated region
  $region118: #{simsiam_momentum_forward.3} parent=0 // pred_check
    _
  $region119: #{simsiam_momentum_forward.3} parent=0 // pred_check_branch
    %2308 = sbr.rel (0) target = $region121
  $region120: #{simsiam_momentum_forward.3} parent=0 // pred_region
    _
  $region121: #{simsiam_momentum_forward.3} parent=0 // pred_fallthru
    _
  // Predicated region
  $region122: #{simsiam_momentum_forward.3} parent=0 // pred_check
    _
  $region123: #{simsiam_momentum_forward.3} parent=0 // pred_check_branch
    %2310 = sbr.rel (0) target = $region125
  $region124: #{simsiam_momentum_forward.3} parent=0 // pred_region
    _
  $region125: #{simsiam_momentum_forward.3} parent=0 // pred_fallthru
    _
  // Predicated region
  $region126: #{simsiam_momentum_forward.3} parent=0 // pred_check
    _
  $region127: #{simsiam_momentum_forward.3} parent=0 // pred_check_branch
    %2312 = sbr.rel (0) target = $region129
  $region128: #{simsiam_momentum_forward.3} parent=0 // pred_region
    _
  $region129: #{simsiam_momentum_forward.3} parent=0 // pred_fallthru
    _
  // Predicated region
  $region130: #{simsiam_momentum_forward.3} parent=0 // pred_check
    _
  $region131: #{simsiam_momentum_forward.3} parent=0 // pred_check_branch
    %2314 = sbr.rel (0) target = $region133
  $region132: #{simsiam_momentum_forward.3} parent=0 // pred_region
    _
  $region133: #{simsiam_momentum_forward.3} parent=0 // pred_fallthru
    _
  // Predicated region
  $region134: #{simsiam_momentum_forward.3} parent=0 // pred_check
    _
  $region135: #{simsiam_momentum_forward.3} parent=0 // pred_check_branch
    %2316 = sbr.rel (0) target = $region137
  $region136: #{simsiam_momentum_forward.3} parent=0 // pred_region
    _
  $region137: #{simsiam_momentum_forward.3} parent=0 // pred_fallthru
    _
  // Predicated region
  $region138: #{simsiam_momentum_forward.3} parent=0 // pred_check
    _
  $region139: #{simsiam_momentum_forward.3} parent=0 // pred_check_branch
    %2318 = sbr.rel (0) target = $region141
  $region140: #{simsiam_momentum_forward.3} parent=0 // pred_region
    _
  $region141: #{simsiam_momentum_forward.3} parent=0 // pred_fallthru
    _
  // Predicated region
  $region142: #{simsiam_momentum_forward.3} parent=0 // pred_check
    _
  $region143: #{simsiam_momentum_forward.3} parent=0 // pred_check_branch
    %2320 = sbr.rel (0) target = $region145
  $region144: #{simsiam_momentum_forward.3} parent=0 // pred_region
    _
  $region145: #{simsiam_momentum_forward.3} parent=0 // pred_fallthru
    _
  // Predicated region
  $region146: #{simsiam_momentum_forward.3} parent=0 // pred_check
    _
  $region147: #{simsiam_momentum_forward.3} parent=0 // pred_check_branch
    %2322 = sbr.rel (0) target = $region149
  $region148: #{simsiam_momentum_forward.3} parent=0 // pred_region
    _
  $region149: #{simsiam_momentum_forward.3} parent=0 // pred_fallthru
    _
  // Predicated region
  $region150: #{simsiam_momentum_forward.3} parent=0 // pred_check
    _
  $region151: #{simsiam_momentum_forward.3} parent=0 // pred_check_branch
    %2324 = sbr.rel (0) target = $region153
  $region152: #{simsiam_momentum_forward.3} parent=0 // pred_region
    _
  $region153: #{simsiam_momentum_forward.3} parent=0 // pred_fallthru
    _
  // Predicated region
  $region154: #{simsiam_momentum_forward.3} parent=0 // pred_check
    _
  $region155: #{simsiam_momentum_forward.3} parent=0 // pred_check_branch
    %2326 = sbr.rel (0) target = $region157
  $region156: #{simsiam_momentum_forward.3} parent=0 // pred_region
    _
  $region157: #{simsiam_momentum_forward.3} parent=0 // pred_fallthru
    _
  // Predicated region
  $region158: #{simsiam_momentum_forward.3} parent=0 // pred_check
    _
  $region159: #{simsiam_momentum_forward.3} parent=0 // pred_check_branch
    %2328 = sbr.rel (0) target = $region161
  $region160: #{simsiam_momentum_forward.3} parent=0 // pred_region
    _
  $region161: #{simsiam_momentum_forward.3} parent=0 // pred_fallthru
    _
  // Predicated region
  $region162: #{simsiam_momentum_forward.3} parent=0 // pred_check
    _
  $region163: #{simsiam_momentum_forward.3} parent=0 // pred_check_branch
    %2330 = sbr.rel (0) target = $region165
  $region164: #{simsiam_momentum_forward.3} parent=0 // pred_region
    _
  $region165: #{simsiam_momentum_forward.3} parent=0 // pred_fallthru
    _
  // Predicated region
  $region166: #{simsiam_momentum_forward.3} parent=0 // pred_check
    _
  $region167: #{simsiam_momentum_forward.3} parent=0 // pred_check_branch
    %2332 = sbr.rel (0) target = $region169
  $region168: #{simsiam_momentum_forward.3} parent=0 // pred_region
    _
  $region169: #{simsiam_momentum_forward.3} parent=0 // pred_fallthru
    _
  // Predicated region
  $region170: #{simsiam_momentum_forward.3} parent=0 // pred_check
    _
  $region171: #{simsiam_momentum_forward.3} parent=0 // pred_check_branch
    %2334 = sbr.rel (0) target = $region173
  $region172: #{simsiam_momentum_forward.3} parent=0 // pred_region
    _
  $region173: #{simsiam_momentum_forward.3} parent=0 // pred_fallthru
    _
  // Predicated region
  $region174: #{simsiam_momentum_forward.3} parent=0 // pred_check
    _
  $region175: #{simsiam_momentum_forward.3} parent=0 // pred_check_branch
    %2336 = sbr.rel (0) target = $region177
  $region176: #{simsiam_momentum_forward.3} parent=0 // pred_region
    _
  $region177: #{simsiam_momentum_forward.3} parent=0 // pred_fallthru
    _
  // Predicated region
  $region178: #{simsiam_momentum_forward.3} parent=0 // pred_check
    _
  $region179: #{simsiam_momentum_forward.3} parent=0 // pred_check_branch
    %2338 = sbr.rel (0) target = $region181
  $region180: #{simsiam_momentum_forward.3} parent=0 // pred_region
    _
  $region181: #{simsiam_momentum_forward.3} parent=0 // pred_fallthru
    _
  // Predicated region
  $region182: #{simsiam_momentum_forward.3} parent=0 // pred_check
    _
  $region183: #{simsiam_momentum_forward.3} parent=0 // pred_check_branch
    %2340 = sbr.rel (0) target = $region185
  $region184: #{simsiam_momentum_forward.3} parent=0 // pred_region
    _
  $region185: #{simsiam_momentum_forward.3} parent=0 // pred_fallthru
    _
  // Predicated region
  $region186: #{simsiam_momentum_forward.3} parent=0 // pred_check
    _
  $region187: #{simsiam_momentum_forward.3} parent=0 // pred_check_branch
    %2342 = sbr.rel (0) target = $region189
  $region188: #{simsiam_momentum_forward.3} parent=0 // pred_region
    _
  $region189: #{simsiam_momentum_forward.3} parent=0 // pred_fallthru
    _

</llo_original>
